<compile_context>
chip_gen: v6e
topology: v6e:2x2x1
jax: 0.10.0
libtpu: 0.0.40
codegen_flags: <defaults>
</compile_context>

<pallas_src>
import functools

import jax
import jax.numpy as jnp
from jax import lax
from jax.experimental import pallas as pl
from jax.experimental.pallas import tpu as pltpu


def _round_up(x, m):
    return ((x + m - 1) // m) * m


def _attention_kernel(out_ref, ctx_ref, wmT_ref, woT_ref, b_ref, y_ref, attn_ref,
                      *, valid_s):
    """One (batch element, L-tile) block per grid step.

    out_ref : (TL, Dp)   decoder outputs tile (feature dim zero-padded to Dp)
    ctx_ref : (Sp, Dp)   encoder context for this batch element (zero-padded)
    wmT_ref : (Dp, Dp)   W[:, :D].T  (applied to mix), zero-padded
    woT_ref : (Dp, Dp)   W[:, D:].T  (applied to output), zero-padded
    b_ref   : (1, Dp)    bias (f32), zero-padded
    y_ref   : (TL, Dp)   attended output tile
    attn_ref: (TL, Sp)   attention weights tile (input dtype)
    """
    out = out_ref[...]                                    # (TL, Dp), input dtype
    ctx = ctx_ref[...]                                    # (Sp, Dp), input dtype

    # Exact-f32 contractions for f32 operands (TPU default matmul precision would
    # silently drop to bf16 passes and diverge from the reference). bf16 operands run
    # at full bf16 MXU rate with f32 accumulation.
    prec = lax.Precision.HIGHEST if out.dtype == jnp.float32 else None

    # scores[l, s] = sum_d out[l, d] * ctx[s, d]   (NT contraction, no ctx.T copy)
    scores = lax.dot_general(
        out, ctx,
        dimension_numbers=(((1,), (1,)), ((), ())),
        preferred_element_type=jnp.float32,
        precision=prec)                                   # (TL, Sp) f32

    sp = scores.shape[-1]
    if valid_s < sp:
        # Mask the zero-padded context rows so they get zero attention weight.
        col = lax.broadcasted_iota(jnp.int32, scores.shape, 1)
        scores = jnp.where(col < valid_s, scores, -1e30)

    # Numerically-stable softmax over the context axis; exact normalization so the
    # emitted attention weights sum to 1 (matches F.softmax).
    m = jnp.max(scores, axis=-1, keepdims=True)
    e = jnp.exp(scores - m)
    attn = e / jnp.sum(e, axis=-1, keepdims=True)         # (TL, Sp) f32
    attn_ref[...] = attn.astype(attn_ref.dtype)

    # mix[l, d] = sum_s attn[l, s] * ctx[s, d]; MXU operands stay in the input dtype,
    # accumulation in f32.
    mix = jnp.dot(attn.astype(ctx.dtype), ctx,
                  preferred_element_type=jnp.float32, precision=prec)   # (TL, Dp) f32

    # tanh(Linear([mix, out])) == tanh(mix @ Wm^T + out @ Wo^T + b)
    pre = (jnp.dot(mix.astype(wmT_ref.dtype), wmT_ref[...],
                   preferred_element_type=jnp.float32, precision=prec)
           + jnp.dot(out, woT_ref[...],
                     preferred_element_type=jnp.float32, precision=prec)
           + b_ref[...])                                  # (TL, Dp) + (1, Dp)
    y_ref[...] = jnp.tanh(pre).astype(y_ref.dtype)


def _pick_l_tile(L, Sp, Dp, itemsize, vmem_budget_bytes):
    """Pick the L tile: MXU-friendly (256) when tiling, shrunk if the per-step VMEM
    working set (with double-buffering, weight blocks and f32 intermediates) would not
    fit the budget."""
    tl = _round_up(L, 8) if L <= 256 else 256

    def est(t):
        blocks = 2 * itemsize * (2 * t * Dp + Sp * Dp + t * Sp)   # out, y, ctx, attn (x2 bufs)
        weights = 2 * (2 * itemsize * Dp * Dp + 4 * Dp)           # wmT, woT, bias (x2 bufs)
        interm = 4 * (t * Sp + 2 * t * Dp)                        # scores/attn, mix, pre (f32)
        return blocks + weights + interm

    while est(tl) > vmem_budget_bytes and tl > 8:
        tl = max(8, _round_up(tl // 2, 8))
    return tl, est(tl)


def attention_forward(output, context, weight, bias):
    """output: (B, L, D), context: (B, S, D), weight: (D, 2D), bias: (D,).

    Returns (y, attn) with the same semantics as the PyTorch Attention.forward.
    """
    B, L, D = output.shape
    S = context.shape[1]
    dt = output.dtype
    itemsize = jnp.dtype(dt).itemsize

    # Lane-dense layout: pad feature (D) and context (S) axes to multiples of 128 so all
    # output blocks are written with full-width (unmasked) vector stores; pad L up to the
    # L tile. Padded context rows are masked inside the kernel, padded D/L are zeros and
    # sliced off on return.
    Dp = _round_up(D, 128)
    Sp = _round_up(S, 128)

    TL, vmem_est = _pick_l_tile(L, Sp, Dp, itemsize, vmem_budget_bytes=20 * 1024 * 1024)
    Lp = _round_up(L, TL)

    out_p = jnp.pad(output, ((0, 0), (0, Lp - L), (0, Dp - D)))
    ctx_p = jnp.pad(context, ((0, 0), (0, Sp - S), (0, Dp - D)))

    # Pre-transpose + pre-split the grid-invariant weight on the host:
    # [mix, out] @ W.T == mix @ W[:, :D].T + out @ W[:, D:].T
    w_mixT = jnp.pad(weight[:, :D].T, ((0, Dp - D), (0, Dp - D))).astype(dt)
    w_outT = jnp.pad(weight[:, D:].T, ((0, Dp - D), (0, Dp - D))).astype(dt)
    bias_p = jnp.pad(bias.astype(jnp.float32), (0, Dp - D)).reshape(1, Dp)

    grid = (B, Lp // TL)          # L-tile axis innermost -> ctx / weight blocks re-used

    cost = pl.CostEstimate(
        flops=int(2 * B * Lp * Sp * Dp        # scores
                  + 2 * B * Lp * Sp * Dp      # mix
                  + 4 * B * Lp * Dp * Dp),    # two (Dp, Dp) projections
        transcendentals=int(B * Lp * Sp + B * Lp * Dp),           # exp + tanh
        bytes_accessed=int(itemsize * (2 * B * Lp * Dp + B * Sp * Dp
                                       + 2 * Dp * Dp + B * Lp * Sp) + 4 * Dp),
    )

    kernel = functools.partial(_attention_kernel, valid_s=S)

    y_p, attn_p = pl.pallas_call(
        kernel,
        out_shape=(
            jax.ShapeDtypeStruct((B, Lp, Dp), dt),
            jax.ShapeDtypeStruct((B, Lp, Sp), dt),    # attn kept in the input dtype
        ),
        grid_spec=pltpu.PrefetchScalarGridSpec(
            num_scalar_prefetch=0,
            grid=grid,
            in_specs=[
                pl.BlockSpec((None, TL, Dp), lambda b, l: (b, l, 0)),
                pl.BlockSpec((None, Sp, Dp), lambda b, l: (b, 0, 0)),
                # Grid-invariant weights / bias (constant index_map -> no re-DMA).
                # TODO(synk): pipeline_mode=pl.Buffered(1) here would reclaim one weight
                #             buffer each for large D.
                pl.BlockSpec((Dp, Dp), lambda b, l: (0, 0)),
                pl.BlockSpec((Dp, Dp), lambda b, l: (0, 0)),
                pl.BlockSpec((1, Dp), lambda b, l: (0, 0)),
            ],
            out_specs=(
                pl.BlockSpec((None, TL, Dp), lambda b, l: (b, l, 0)),
                pl.BlockSpec((None, TL, Sp), lambda b, l: (b, l, 0)),
            ),
        ),
        compiler_params=pltpu.CompilerParams(
            dimension_semantics=("parallel", "parallel"),
            vmem_limit_bytes=int(min(max(2 * vmem_est, 16 * 1024 * 1024),
                                     48 * 1024 * 1024)),
        ),
        cost_estimate=cost,
    )(out_p, ctx_p, w_mixT, w_outT, bias_p)

    return y_p[:, :L, :D], attn_p[:, :L, :S]


def _reference(output, context, weight, bias):
    # Pure-JAX reference mirroring the PyTorch forward, at exact f32 matmul precision so
    # it is backend-independent.
    hp = lax.Precision.HIGHEST
    out = output.astype(jnp.float32)
    ctx = context.astype(jnp.float32)
    w = weight.astype(jnp.float32)
    b = bias.astype(jnp.float32)
    scores = jnp.einsum("bld,bsd->bls", out, ctx, precision=hp)
    attn = jax.nn.softmax(scores, axis=-1)
    mix = jnp.einsum("bls,bsd->bld", attn, ctx, precision=hp)
    combined = jnp.concatenate([mix, out], axis=-1)                 # (B, L, 2D)
    y = jnp.tanh(jnp.einsum("blk,dk->bld", combined, w, precision=hp) + b)
    return y.astype(output.dtype), attn.astype(output.dtype)


if __name__ == "__main__":
    B, L, S, D = 2, 8, 8, 32

    key = jax.random.PRNGKey(0)
    k1, k2, k3, k4 = jax.random.split(key, 4)
    output = jax.random.normal(k1, (B, L, D), dtype=jnp.float32)
    context = jax.random.normal(k2, (B, S, D), dtype=jnp.float32)
    # nn.Linear(dim*2, dim): weight (D, 2D), bias (D,) — deterministic init
    bound = 1.0 / jnp.sqrt(2.0 * D)
    weight = jax.random.uniform(k3, (D, 2 * D), dtype=jnp.float32,
                                minval=-bound, maxval=bound)
    bias = jax.random.uniform(k4, (D,), dtype=jnp.float32,
                              minval=-bound, maxval=bound)

    y, attn = attention_forward(output, context, weight, bias)
    jax.block_until_ready((y, attn))

    y_ref, attn_ref = _reference(output, context, weight, bias)
    assert y.shape == y_ref.shape and attn.shape == attn_ref.shape
    # Both kernel and reference run exact-f32 contractions; tolerance leaves generous
    # headroom for transcendental / accumulation-order differences only.
    assert jnp.allclose(y, y_ref, atol=2e-3, rtol=2e-3), \
        float(jnp.max(jnp.abs(y - y_ref)))
    assert jnp.allclose(attn, attn_ref, atol=2e-3, rtol=2e-3), \
        float(jnp.max(jnp.abs(attn - attn_ref)))

    print("KERNEL_OK")
</pallas_src>

<mosaic_0001>
module attributes {stable_mosaic.version = 11 : i64} {
  func.func @_attention_kernel(%arg0: i32, %arg1: i32, %arg2: memref<1x8x128xf32, #tpu.memory_space<vmem>>, %arg3: memref<1x128x128xf32, #tpu.memory_space<vmem>>, %arg4: memref<128x128xf32, #tpu.memory_space<vmem>>, %arg5: memref<128x128xf32, #tpu.memory_space<vmem>>, %arg6: memref<1x128xf32, #tpu.memory_space<vmem>>, %arg7: memref<1x8x128xf32, #tpu.memory_space<vmem>>, %arg8: memref<1x8x128xf32, #tpu.memory_space<vmem>>) attributes {dimension_semantics = [#tpu.dimension_semantics<parallel>, #tpu.dimension_semantics<parallel>], iteration_bounds = array<i64: 2, 1>, scalar_prefetch = 0 : i64, scratch_operands = 0 : i64, tpu.core_type = #tpu.core_type<tc>, window_params = [{transform_indices = @transform_0, window_bounds = array<i64: 1, 8, 128>}, {transform_indices = @transform_1, window_bounds = array<i64: 1, 128, 128>}, {pipeline_mode = #tpu.pipeline_mode<synchronous>, transform_indices = @transform_2, window_bounds = array<i64: 128, 128>}, {pipeline_mode = #tpu.pipeline_mode<synchronous>, transform_indices = @transform_3, window_bounds = array<i64: 128, 128>}, {pipeline_mode = #tpu.pipeline_mode<synchronous>, transform_indices = @transform_4, window_bounds = array<i64: 1, 128>}, {transform_indices = @transform_5, window_bounds = array<i64: 1, 8, 128>}, {transform_indices = @transform_6, window_bounds = array<i64: 1, 8, 128>}]} {
    %c0 = arith.constant 0 : index
    %c0_0 = arith.constant 0 : index
    %c0_1 = arith.constant 0 : index
    %0 = vector.load %arg2[%c0, %c0_0, %c0_1] : memref<1x8x128xf32, #tpu.memory_space<vmem>>, vector<1x8x128xf32>
    %1 = vector.shape_cast %0 : vector<1x8x128xf32> to vector<8x128xf32>
    %c0_2 = arith.constant 0 : index
    %c0_3 = arith.constant 0 : index
    %c0_4 = arith.constant 0 : index
    %2 = vector.load %arg3[%c0_2, %c0_3, %c0_4] : memref<1x128x128xf32, #tpu.memory_space<vmem>>, vector<1x128x128xf32>
    %3 = vector.shape_cast %2 : vector<1x128x128xf32> to vector<128x128xf32>
    %cst = arith.constant dense<0.000000e+00> : vector<8x128xf32>
    %4 = tpu.matmul %1, %3, %cst {dimension_numbers = #tpu.dot_dimension_numbers<[1], [1], [0], [0], [0, 0, 1, 0], [], []>, precision = #tpu.contract_precision<fp32>} : vector<8x128xf32>, vector<128x128xf32>, vector<8x128xf32> -> vector<8x128xf32>
    %5 = tpu.iota {dimensions = array<i32: 1>} : vector<8x128xi32>
    %c8_i32 = arith.constant 8 : i32
    %6 = vector.broadcast %c8_i32 : i32 to vector<8x128xi32>
    %7 = arith.cmpi slt, %5, %6 : vector<8x128xi32>
    %cst_5 = arith.constant -1.000000e+30 : f32
    %8 = vector.broadcast %cst_5 : f32 to vector<8x128xf32>
    %9 = arith.select %7, %4, %8 : vector<8x128xi1>, vector<8x128xf32>
    %cst_6 = arith.constant dense<0xFF800000> : vector<8xf32>
    %10 = vector.multi_reduction <maximumf>, %9, %cst_6 [1] : vector<8x128xf32> to vector<8xf32>
    %11 = vector.shape_cast %10 : vector<8xf32> to vector<8x1xf32>
    %12 = vector.broadcast %11 : vector<8x1xf32> to vector<8x128xf32>
    %13 = arith.subf %9, %12 : vector<8x128xf32>
    %14 = math.exp %13 : vector<8x128xf32>
    %cst_7 = arith.constant dense<0.000000e+00> : vector<8xf32>
    %15 = vector.multi_reduction <add>, %14, %cst_7 [1] : vector<8x128xf32> to vector<8xf32>
    %16 = vector.shape_cast %15 : vector<8xf32> to vector<8x1xf32>
    %17 = vector.broadcast %16 : vector<8x1xf32> to vector<8x128xf32>
    %18 = arith.divf %14, %17 : vector<8x128xf32>
    %c0_8 = arith.constant 0 : index
    %c0_9 = arith.constant 0 : index
    %c0_10 = arith.constant 0 : index
    %19 = vector.load %arg8[%c0_8, %c0_9, %c0_10] : memref<1x8x128xf32, #tpu.memory_space<vmem>>, vector<1x8x128xf32>
    %20 = vector.shape_cast %19 : vector<1x8x128xf32> to vector<8x128xf32>
    %21 = vector.shape_cast %18 : vector<8x128xf32> to vector<1x8x128xf32>
    tpu.vector_store %arg8[%c0_8, %c0_9, %c0_10], %21 {strides = array<i32>} : memref<1x8x128xf32, #tpu.memory_space<vmem>>, vector<1x8x128xf32>,
    %cst_11 = arith.constant dense<0.000000e+00> : vector<8x128xf32>
    %22 = tpu.matmul %18, %3, %cst_11 {dimension_numbers = #tpu.dot_dimension_numbers<[1], [0], [0], [1], [0, 0, 1, 1], [], []>, precision = #tpu.contract_precision<fp32>} : vector<8x128xf32>, vector<128x128xf32>, vector<8x128xf32> -> vector<8x128xf32>
    %c0_12 = arith.constant 0 : index
    %c0_13 = arith.constant 0 : index
    %23 = vector.load %arg4[%c0_12, %c0_13] : memref<128x128xf32, #tpu.memory_space<vmem>>, vector<128x128xf32>
    %cst_14 = arith.constant dense<0.000000e+00> : vector<8x128xf32>
    %24 = tpu.matmul %22, %23, %cst_14 {dimension_numbers = #tpu.dot_dimension_numbers<[1], [0], [0], [1], [0, 0, 1, 1], [], []>, precision = #tpu.contract_precision<fp32>} : vector<8x128xf32>, vector<128x128xf32>, vector<8x128xf32> -> vector<8x128xf32>
    %c0_15 = arith.constant 0 : index
    %c0_16 = arith.constant 0 : index
    %25 = vector.load %arg5[%c0_15, %c0_16] : memref<128x128xf32, #tpu.memory_space<vmem>>, vector<128x128xf32>
    %cst_17 = arith.constant dense<0.000000e+00> : vector<8x128xf32>
    %26 = tpu.matmul %1, %25, %cst_17 {dimension_numbers = #tpu.dot_dimension_numbers<[1], [0], [0], [1], [0, 0, 1, 1], [], []>, precision = #tpu.contract_precision<fp32>} : vector<8x128xf32>, vector<128x128xf32>, vector<8x128xf32> -> vector<8x128xf32>
    %27 = arith.addf %24, %26 : vector<8x128xf32>
    %c0_18 = arith.constant 0 : index
    %c0_19 = arith.constant 0 : index
    %28 = vector.load %arg6[%c0_18, %c0_19] : memref<1x128xf32, #tpu.memory_space<vmem>>, vector<1x128xf32>
    %29 = vector.broadcast %28 : vector<1x128xf32> to vector<8x128xf32>
    %30 = arith.addf %27, %29 : vector<8x128xf32>
    %31 = math.tanh %30 : vector<8x128xf32>
    %c0_20 = arith.constant 0 : index
    %c0_21 = arith.constant 0 : index
    %c0_22 = arith.constant 0 : index
    %32 = vector.load %arg7[%c0_20, %c0_21, %c0_22] : memref<1x8x128xf32, #tpu.memory_space<vmem>>, vector<1x8x128xf32>
    %33 = vector.shape_cast %32 : vector<1x8x128xf32> to vector<8x128xf32>
    %34 = vector.shape_cast %31 : vector<8x128xf32> to vector<1x8x128xf32>
    tpu.vector_store %arg7[%c0_20, %c0_21, %c0_22], %34 {strides = array<i32>} : memref<1x8x128xf32, #tpu.memory_space<vmem>>, vector<1x8x128xf32>,
    return
  }
  func.func @transform_0(%arg0: i32, %arg1: i32) -> (i32, i32, i32) {
    %c0_i32 = arith.constant 0 : i32
    %c0_i32_0 = arith.constant 0 : i32
    return %arg0, %arg1, %c0_i32 : i32, i32, i32
  }
  func.func @transform_1(%arg0: i32, %arg1: i32) -> (i32, i32, i32) {
    %c0_i32 = arith.constant 0 : i32
    %c0_i32_0 = arith.constant 0 : i32
    %c0_i32_1 = arith.constant 0 : i32
    return %arg0, %c0_i32, %c0_i32_0 : i32, i32, i32
  }
  func.func @transform_2(%arg0: i32, %arg1: i32) -> (i32, i32) {
    %c0_i32 = arith.constant 0 : i32
    %c0_i32_0 = arith.constant 0 : i32
    %c0_i32_1 = arith.constant 0 : i32
    return %c0_i32, %c0_i32_0 : i32, i32
  }
  func.func @transform_3(%arg0: i32, %arg1: i32) -> (i32, i32) {
    %c0_i32 = arith.constant 0 : i32
    %c0_i32_0 = arith.constant 0 : i32
    %c0_i32_1 = arith.constant 0 : i32
    return %c0_i32, %c0_i32_0 : i32, i32
  }
  func.func @transform_4(%arg0: i32, %arg1: i32) -> (i32, i32) {
    %c0_i32 = arith.constant 0 : i32
    %c0_i32_0 = arith.constant 0 : i32
    %c0_i32_1 = arith.constant 0 : i32
    return %c0_i32, %c0_i32_0 : i32, i32
  }
  func.func @transform_5(%arg0: i32, %arg1: i32) -> (i32, i32, i32) {
    %c0_i32 = arith.constant 0 : i32
    %c0_i32_0 = arith.constant 0 : i32
    return %arg0, %arg1, %c0_i32 : i32, i32, i32
  }
  func.func @transform_6(%arg0: i32, %arg1: i32) -> (i32, i32, i32) {
    %c0_i32 = arith.constant 0 : i32
    %c0_i32_0 = arith.constant 0 : i32
    return %arg0, %arg1, %c0_i32 : i32, i32, i32
  }
}

</mosaic_0001>

<llo_original>
// kernel: tpu_custom_call.1
$region0: #{tpu_custom_call.1}
  #allocation0 [shape = 'u32[]', space=smem, size = 0x4, offset = 0x4, fixed_abs, tag = 'smem constant byte address 0x4 - core index']
  #allocation1 [shape = 'u32[144,128]{1,0:T(1,128)}', space=vmem, size = 0x12000, scoped, tag = 'internal scratch']
  %s0 = inlined_call_operand.hbm [shape: f32[2,8,128], index: 0, kind: input, shape index: {}]
  %s1 = inlined_call_operand.hbm [shape: f32[2,128,128], index: 1, kind: input, shape index: {}]
  %s2 = inlined_call_operand.hbm [shape: f32[128,128], index: 2, kind: input, shape index: {}]
  %s3 = inlined_call_operand.hbm [shape: f32[128,128], index: 3, kind: input, shape index: {}]
  %s4 = inlined_call_operand.vmem [shape: f32[1,128], index: 4, kind: input, shape index: {}]
  %s5 = inlined_call_operand.hbm [shape: f32[2,8,128], index: 5, kind: output, shape index: {0}]
  %s6 = inlined_call_operand.hbm [shape: f32[2,8,128], index: 6, kind: output, shape index: {1}]
  %7 = xla_tuple %s5, %s6
  %s8 = sld [smem:[#allocation0]]
  $region77: #{tpu_custom_call.1} parent=0
    _
  %s10 = ssub.s32 1, %s8
  %s11 = scalar_select 0, %s10, %s8
  $region1: #{tpu_custom_call.1} parent=0
    #allocation2 [shape = 'u8[8192]{0}', space=vmem, size = 0x2000, scoped, tag = 'input window, operand 0']
    #allocation3 [shape = 's32[2]{0}', space=sflag, size = 0x8, scoped, tag = 'scoped memory for tpu_custom_call.1']
    #allocation4 [shape = 's32[2]{0}', space=sflag, size = 0x8, scoped, tag = 'scoped memory for tpu_custom_call.1']
    #allocation5 [shape = 'u8[131072]{0}', space=vmem, size = 0x20000, scoped, tag = 'input window, operand 1']
    #allocation6 [shape = 's32[2]{0}', space=sflag, size = 0x8, scoped, tag = 'scoped memory for tpu_custom_call.1']
    #allocation7 [shape = 'u8[65536]{0}', space=vmem, size = 0x10000, scoped, tag = 'input window, operand 2, single buffered']
    #allocation8 [shape = 'u8[65536]{0}', space=vmem, size = 0x10000, scoped, tag = 'input window, operand 3, single buffered']
    #allocation9 [shape = 's32[1]{0}', space=sflag, size = 0x4, scoped, tag = 'scoped memory for tpu_custom_call.1']
    #allocation10 [shape = 'u8[8192]{0}', space=vmem, size = 0x2000, scoped, tag = 'output window, operand 0']
    #allocation11 [shape = 'u8[8192]{0}', space=vmem, size = 0x2000, scoped, tag = 'output window, operand 1']
    #allocation12 [shape = 's32[2]{0}', space=sflag, size = 0x8, scoped, tag = 'scoped memory for tpu_custom_call.1']
    %12 = vsyncpa [#allocation3], 0
    %s13 = scalar_lea.sflag [#allocation3], 1
    %14 = vsyncpa %s13, 0
    %15 = vsyncpa [#allocation6], 0
    %s16 = scalar_lea.sflag [#allocation6], 1
    %17 = vsyncpa %s16, 0
    %18 = vsyncpa [#allocation9], 0
    %19 = vsyncpa [#allocation4], 0
    %s20 = scalar_lea.sflag [#allocation4], 1
    %21 = vsyncpa %s20, 0
    %22 = vsyncpa [#allocation12], 0
    %s23 = scalar_lea.sflag [#allocation12], 1
    %24 = vsyncpa %s23, 0
    loop: start=0, step=1, limit=4
    $region2: #{tpu_custom_call.1} parent=1 // loop_pre_header
      _
    $region3: #{tpu_custom_call.1} parent=1 // loop_header
      %s26 = sphi 0, %s30
      %p27 = scmp.ge.s32.totalorder %s26, 4
      %s33 = sphi 0, %s45
      %s34 = sphi 0, %s41
      %s35 = sphi 0, %s33
      %s36 = sphi 0, %s34
      %s37 = sphi 0, %s35
      %s38 = sphi 0, %s36
      %s50 = sphi 0, %s52
      %s53 = sphi 0, %s50
      %s54 = sphi 0, %s53
      %s70 = sphi 0, %s54
      %s76 = sphi 0, %s78
      %s79 = sphi 0, %s76
      %s80 = sphi 0, %s79
      %s96 = sphi 0, %s80
      %s100 = sphi 0, %s100
      %s102 = sphi 0, %s100
      %s103 = sphi 0, %s102
      %s117 = sphi 0, %s103
      %s121 = sphi 0, %s121
      %s123 = sphi 0, %s121
      %s124 = sphi 0, %s123
      %s138 = sphi 0, %s124
      %s142 = sphi 0, %s142
      %s144 = sphi 0, %s142
      %s145 = sphi 0, %s144
      %s159 = sphi 0, %s145
      %s167 = sphi 0, %s169
      %s170 = sphi 0, %s167
      %s171 = sphi 0, %s170
      %s187 = sphi 0, %s171
      %s195 = sphi 0, %s197
      %s198 = sphi 0, %s195
      %s199 = sphi 0, %s198
      %s215 = sphi 0, %s199
    $region4: #{tpu_custom_call.1} parent=1 // loop_header_branch
      %29 = sbr.rel (%p27) target = $region8
    $region5: #{tpu_custom_call.1} parent=1 // loop_body
      %s31 = ssub.s32 %s26, 1
      %s32 = ssub.s32 %s26, 2
      %s39 = sadd.s32 1, %s34
      %p40 = scmp.ge.s32.totalorder %s39, 1
      %s41 = scalar_select %p40, 0, %s39
      %s42 = sadd.s32 1, %s33
      %s43 = scalar_select %p40, %s42, %s33
      %p44 = scmp.ge.s32.totalorder %s43, 2
      %s45 = scalar_select %p44, 0, %s43
      %s46 = ssub.s32 %s33, %s45
      %s47 = ssub.s32 %s34, %s41
      %s48 = sor.u32 %s46, %s47
      %p49 = scmp.eq.s32.totalorder %s48, 0
      %s51 = sadd.s32 %s50, 1
      %s52 = scalar_select %p49, %s50, %s51
      %p55 = pneg %p49
      %p56 = scmp.eq.s32.totalorder %s26, 1
      %p57 = por %p55, %p56
      %p58 = scmp.ne.s32.totalorder %s50, %s53
      %p59 = scmp.eq.s32.totalorder %s26, 0
      %p60 = por %p58, %p59
      %p61 = scmp.ne.s32.totalorder %s50, %s53
      %p62 = scmp.eq.s32.totalorder %s31, 1
      %p63 = por %p61, %p62
      %p64 = scmp.ne.s32.totalorder %s53, %s54
      %p65 = scmp.eq.s32.totalorder %s31, 0
      %p66 = por %p64, %p65
      %p67 = scmp.ne.s32.totalorder %s53, %s54
      %p68 = scmp.eq.s32.totalorder %s32, 1
      %p69 = por %p67, %p68
      %p71 = scmp.ne.s32.totalorder %s54, %s70
      %p72 = scmp.eq.s32.totalorder %s32, 0
      %p73 = por %p71, %p72
      %s74 = ssub.s32 %s33, %s45
      %p75 = scmp.eq.s32.totalorder %s74, 0
      %s77 = sadd.s32 %s76, 1
      %s78 = scalar_select %p75, %s76, %s77
      %p81 = pneg %p75
      %p82 = scmp.eq.s32.totalorder %s26, 1
      %p83 = por %p81, %p82
      %p84 = scmp.ne.s32.totalorder %s76, %s79
      %p85 = scmp.eq.s32.totalorder %s26, 0
      %p86 = por %p84, %p85
      %p87 = scmp.ne.s32.totalorder %s76, %s79
      %p88 = scmp.eq.s32.totalorder %s31, 1
      %p89 = por %p87, %p88
      %p90 = scmp.ne.s32.totalorder %s79, %s80
      %p91 = scmp.eq.s32.totalorder %s31, 0
      %p92 = por %p90, %p91
      %p93 = scmp.ne.s32.totalorder %s79, %s80
      %p94 = scmp.eq.s32.totalorder %s32, 1
      %p95 = por %p93, %p94
      %p97 = scmp.ne.s32.totalorder %s80, %s96
      %p98 = scmp.eq.s32.totalorder %s32, 0
      %p99 = por %p97, %p98
      %s101 = sadd.s32 %s100, 1
      %p104 = scmp.eq.s32.totalorder %s26, 1
      %p105 = scmp.ne.s32.totalorder %s100, %s102
      %p106 = scmp.eq.s32.totalorder %s26, 0
      %p107 = por %p105, %p106
      %p108 = scmp.ne.s32.totalorder %s100, %s102
      %p109 = scmp.eq.s32.totalorder %s31, 1
      %p110 = por %p108, %p109
      %p111 = scmp.ne.s32.totalorder %s102, %s103
      %p112 = scmp.eq.s32.totalorder %s31, 0
      %p113 = por %p111, %p112
      %p114 = scmp.ne.s32.totalorder %s102, %s103
      %p115 = scmp.eq.s32.totalorder %s32, 1
      %p116 = por %p114, %p115
      %p118 = scmp.ne.s32.totalorder %s103, %s117
      %p119 = scmp.eq.s32.totalorder %s32, 0
      %p120 = por %p118, %p119
      %s122 = sadd.s32 %s121, 1
      %p125 = scmp.eq.s32.totalorder %s26, 1
      %p126 = scmp.ne.s32.totalorder %s121, %s123
      %p127 = scmp.eq.s32.totalorder %s26, 0
      %p128 = por %p126, %p127
      %p129 = scmp.ne.s32.totalorder %s121, %s123
      %p130 = scmp.eq.s32.totalorder %s31, 1
      %p131 = por %p129, %p130
      %p132 = scmp.ne.s32.totalorder %s123, %s124
      %p133 = scmp.eq.s32.totalorder %s31, 0
      %p134 = por %p132, %p133
      %p135 = scmp.ne.s32.totalorder %s123, %s124
      %p136 = scmp.eq.s32.totalorder %s32, 1
      %p137 = por %p135, %p136
      %p139 = scmp.ne.s32.totalorder %s124, %s138
      %p140 = scmp.eq.s32.totalorder %s32, 0
      %p141 = por %p139, %p140
      %s143 = sadd.s32 %s142, 1
      %p146 = scmp.eq.s32.totalorder %s26, 1
      %p147 = scmp.ne.s32.totalorder %s142, %s144
      %p148 = scmp.eq.s32.totalorder %s26, 0
      %p149 = por %p147, %p148
      %p150 = scmp.ne.s32.totalorder %s142, %s144
      %p151 = scmp.eq.s32.totalorder %s31, 1
      %p152 = por %p150, %p151
      %p153 = scmp.ne.s32.totalorder %s144, %s145
      %p154 = scmp.eq.s32.totalorder %s31, 0
      %p155 = por %p153, %p154
      %p156 = scmp.ne.s32.totalorder %s144, %s145
      %p157 = scmp.eq.s32.totalorder %s32, 1
      %p158 = por %p156, %p157
      %p160 = scmp.ne.s32.totalorder %s145, %s159
      %p161 = scmp.eq.s32.totalorder %s32, 0
      %p162 = por %p160, %p161
      %s163 = ssub.s32 %s33, %s45
      %s164 = ssub.s32 %s34, %s41
      %s165 = sor.u32 %s163, %s164
      %p166 = scmp.eq.s32.totalorder %s165, 0
      %s168 = sadd.s32 %s167, 1
      %s169 = scalar_select %p166, %s167, %s168
      %p172 = pneg %p166
      %p173 = scmp.eq.s32.totalorder %s26, 1
      %p174 = por %p172, %p173
      %p175 = scmp.ne.s32.totalorder %s167, %s170
      %p176 = scmp.eq.s32.totalorder %s26, 0
      %p177 = por %p175, %p176
      %p178 = scmp.ne.s32.totalorder %s167, %s170
      %p179 = scmp.eq.s32.totalorder %s31, 1
      %p180 = por %p178, %p179
      %p181 = scmp.ne.s32.totalorder %s170, %s171
      %p182 = scmp.eq.s32.totalorder %s31, 0
      %p183 = por %p181, %p182
      %p184 = scmp.ne.s32.totalorder %s170, %s171
      %p185 = scmp.eq.s32.totalorder %s32, 1
      %p186 = por %p184, %p185
      %p188 = scmp.ne.s32.totalorder %s171, %s187
      %p189 = scmp.eq.s32.totalorder %s32, 0
      %p190 = por %p188, %p189
      %s191 = ssub.s32 %s33, %s45
      %s192 = ssub.s32 %s34, %s41
      %s193 = sor.u32 %s191, %s192
      %p194 = scmp.eq.s32.totalorder %s193, 0
      %s196 = sadd.s32 %s195, 1
      %s197 = scalar_select %p194, %s195, %s196
      %p200 = pneg %p194
      %p201 = scmp.eq.s32.totalorder %s26, 1
      %p202 = por %p200, %p201
      %p203 = scmp.ne.s32.totalorder %s195, %s198
      %p204 = scmp.eq.s32.totalorder %s26, 0
      %p205 = por %p203, %p204
      %p206 = scmp.ne.s32.totalorder %s195, %s198
      %p207 = scmp.eq.s32.totalorder %s31, 1
      %p208 = por %p206, %p207
      %p209 = scmp.ne.s32.totalorder %s198, %s199
      %p210 = scmp.eq.s32.totalorder %s31, 0
      %p211 = por %p209, %p210
      %p212 = scmp.ne.s32.totalorder %s198, %s199
      %p213 = scmp.eq.s32.totalorder %s32, 1
      %p214 = por %p212, %p213
      %p216 = scmp.ne.s32.totalorder %s199, %s215
      %p217 = scmp.eq.s32.totalorder %s32, 0
      %p218 = por %p216, %p217
      %p219 = scmp.le.s32.totalorder 1, %s26
      %p220 = scmp.lt.s32.totalorder %s26, 3
      %p221 = pnand %p219, %p220
      %p222 = pneg %p221
      // Predicated region
      $region9: #{tpu_custom_call.1} parent=5 // pred_check
        _
      $region10: #{tpu_custom_call.1} parent=5 // pred_check_branch
        %224 = sbr.rel (%p221) target = $region12
      $region11: #{tpu_custom_call.1} parent=5 // pred_region
        %s225 = ssub.s32 %s26, 1
        // Predicated region
        $region13: #{tpu_custom_call.1} parent=11 // pred_check
          %p226 = pneg %p113
        $region14: #{tpu_custom_call.1} parent=11 // pred_check_branch
          %228 = sbr.rel (%p226) target = $region16
        $region15: #{tpu_custom_call.1} parent=11 // pred_region
          %s230 = ssub.s32 2048, 2048
          %231 = vsyncadd [#allocation6], %s230
          %s232 = sshll.u32 [#allocation7], 4
          %s233 = int_to_ptr.vmem [resolvable:$true] %s232
          %238 = dma.hbm_to_vmem [thread:$0]  %s2, 2048, %s233, [#allocation6], 128, 128, 8
        $region16: #{tpu_custom_call.1} parent=11 // pred_fallthru
          _
        // Predicated region
        $region17: #{tpu_custom_call.1} parent=11 // pred_check
          %p239 = pneg %p134
        $region18: #{tpu_custom_call.1} parent=11 // pred_check_branch
          %241 = sbr.rel (%p239) target = $region20
        $region19: #{tpu_custom_call.1} parent=11 // pred_region
          %s243 = ssub.s32 2048, 2048
          %244 = vsyncadd [#allocation9], %s243
          %s245 = sshll.u32 [#allocation8], 4
          %s246 = int_to_ptr.vmem [resolvable:$true] %s245
          %251 = dma.hbm_to_vmem [thread:$0]  %s3, 2048, %s246, [#allocation9], 128, 128, 8
        $region20: #{tpu_custom_call.1} parent=11 // pred_fallthru
          _
        // Predicated region
        $region21: #{tpu_custom_call.1} parent=11 // pred_check
          %p252 = pneg %p155
        $region22: #{tpu_custom_call.1} parent=11 // pred_check_branch
          %254 = sbr.rel (%p252) target = $region24
        $region23: #{tpu_custom_call.1} parent=11 // pred_region
          _
        $region24: #{tpu_custom_call.1} parent=11 // pred_fallthru
          _
      $region12: #{tpu_custom_call.1} parent=5 // pred_fallthru
        _
      %p255 = scmp.lt.s32.totalorder %s26, 2
      // Predicated region
      $region25: #{tpu_custom_call.1} parent=5 // pred_check
        %p256 = pneg %p255
      $region26: #{tpu_custom_call.1} parent=5 // pred_check_branch
        %258 = sbr.rel (%p256) target = $region28
      $region27: #{tpu_custom_call.1} parent=5 // pred_region
        // Predicated region
        $region29: #{tpu_custom_call.1} parent=27 // pred_check
          %p259 = pneg %p60
        $region30: #{tpu_custom_call.1} parent=27 // pred_check_branch
          %261 = sbr.rel (%p259) target = $region32
        $region31: #{tpu_custom_call.1} parent=27 // pred_region
          %s262 = sand.u32 %s50, 1
          %s263 = scalar_lea.sflag [#allocation3], %s262
          %s264 = sand.u32 %s50, 1
          %s265 = smul.addr %s264, 8
          %s266 = scalar_lea.vmem [#allocation2], %s265
          %s268 = ssub.s32 128, 128
          %269 = vsyncadd %s263, %s268
          %s270 = sadd.s32 %s34, %s33
          %s271 = smul.addr %s270, 128
          %s272 = scalar_lea.hbm %s0, %s271
          %s274 = sshll.u32 %s266, 4
          %s275 = int_to_ptr.vmem [resolvable:$true] %s274
          %277 = dma.hbm_to_vmem [thread:$0]  %s272, 128, %s275, %s263
        $region32: #{tpu_custom_call.1} parent=27 // pred_fallthru
          _
        // Predicated region
        $region33: #{tpu_custom_call.1} parent=27 // pred_check
          %p278 = pneg %p86
        $region34: #{tpu_custom_call.1} parent=27 // pred_check_branch
          %280 = sbr.rel (%p278) target = $region36
        $region35: #{tpu_custom_call.1} parent=27 // pred_region
          %s281 = sand.u32 %s26, 1
          %s282 = scalar_lea.sflag [#allocation6], %s281
          %s283 = sand.u32 %s76, 1
          %s284 = smul.addr %s283, 128
          %s285 = scalar_lea.vmem [#allocation5], %s284
          %s287 = ssub.s32 2048, 2048
          %288 = vsyncadd %s282, %s287
          %s289 = smul.addr %s33, 16
          %s290 = smul.addr %s289, 128
          %s291 = scalar_lea.hbm %s1, %s290
          %s292 = sshll.u32 %s285, 4
          %s293 = int_to_ptr.vmem [resolvable:$true] %s292
          %298 = dma.hbm_to_vmem [thread:$0]  %s291, 2048, %s293, %s282, 128, 128, 8
        $region36: #{tpu_custom_call.1} parent=27 // pred_fallthru
          _
      $region28: #{tpu_custom_call.1} parent=5 // pred_fallthru
        _
      %p299 = scmp.le.s32.totalorder 1, %s26
      %p300 = scmp.lt.s32.totalorder %s26, 3
      %p301 = pnand %p299, %p300
      %p302 = pneg %p301
      // Predicated region
      $region37: #{tpu_custom_call.1} parent=5 // pred_check
        _
      $region38: #{tpu_custom_call.1} parent=5 // pred_check_branch
        %304 = sbr.rel (%p301) target = $region40
      $region39: #{tpu_custom_call.1} parent=5 // pred_region
        %s305 = ssub.s32 %s26, 1
        %s306 = sand.u32 %s53, 1
        %s307 = scalar_lea.sflag [#allocation3], %s306
        %s308 = sand.u32 %s53, 1
        %s309 = smul.addr %s308, 8
        %s310 = scalar_lea.vmem [#allocation2], %s309
        // Predicated region
        $region41: #{tpu_custom_call.1} parent=39 // pred_check
          %p311 = pneg %p66
        $region42: #{tpu_custom_call.1} parent=39 // pred_check_branch
          %313 = sbr.rel (%p311) target = $region44
        $region43: #{tpu_custom_call.1} parent=39 // pred_region
          %314 = dma.done %s307, 128
        $region44: #{tpu_custom_call.1} parent=39 // pred_fallthru
          _
        %s315 = sand.u32 %s31, 1
        %s316 = scalar_lea.sflag [#allocation6], %s315
        %s317 = sand.u32 %s79, 1
        %s318 = smul.addr %s317, 128
        %s319 = scalar_lea.vmem [#allocation5], %s318
        // Predicated region
        $region45: #{tpu_custom_call.1} parent=39 // pred_check
          %p320 = pneg %p92
        $region46: #{tpu_custom_call.1} parent=39 // pred_check_branch
          %322 = sbr.rel (%p320) target = $region48
        $region47: #{tpu_custom_call.1} parent=39 // pred_region
          %323 = dma.done %s316, 2048
        $region48: #{tpu_custom_call.1} parent=39 // pred_fallthru
          _
        // Predicated region
        $region49: #{tpu_custom_call.1} parent=39 // pred_check
          %p324 = pneg %p113
        $region50: #{tpu_custom_call.1} parent=39 // pred_check_branch
          %326 = sbr.rel (%p324) target = $region52
        $region51: #{tpu_custom_call.1} parent=39 // pred_region
          %327 = dma.done [#allocation6], 2048
        $region52: #{tpu_custom_call.1} parent=39 // pred_fallthru
          _
        // Predicated region
        $region53: #{tpu_custom_call.1} parent=39 // pred_check
          %p328 = pneg %p134
        $region54: #{tpu_custom_call.1} parent=39 // pred_check_branch
          %330 = sbr.rel (%p328) target = $region56
        $region55: #{tpu_custom_call.1} parent=39 // pred_region
          %331 = dma.done [#allocation9], 2048
        $region56: #{tpu_custom_call.1} parent=39 // pred_fallthru
          _
        %s332 = sand.u32 %s53, 1
        %s333 = scalar_lea.sflag [#allocation3], %s332
        %s334 = sand.u32 %s53, 1
        %s335 = smul.addr %s334, 8
        %s336 = scalar_lea.vmem [#allocation2], %s335
        %p337 = pneg %p66
        %p338 = pneg %p63
        %s339 = sand.u32 %s31, 1
        %s340 = scalar_lea.sflag [#allocation6], %s339
        %s341 = sand.u32 %s79, 1
        %s342 = smul.addr %s341, 128
        %s343 = scalar_lea.vmem [#allocation5], %s342
        %p344 = pneg %p92
        %p345 = pneg %p89
        %p346 = pneg %p113
        %p347 = pneg %p110
        %p348 = pneg %p134
        %p349 = pneg %p131
        %p350 = pneg %p155
        %p351 = pneg %p152
        %p352 = pneg %p183
        %p353 = pneg %p180
        %s354 = sand.u32 %s170, 1
        %s355 = scalar_lea.sflag [#allocation4], %s354
        %s356 = sand.u32 %s170, 1
        %s357 = smul.addr %s356, 8
        %s358 = scalar_lea.vmem [#allocation10], %s357
        %p359 = pneg %p211
        %p360 = pneg %p208
        %s361 = sand.u32 %s198, 1
        %s362 = scalar_lea.sflag [#allocation12], %s361
        %s363 = sand.u32 %s198, 1
        %s364 = smul.addr %s363, 8
        %s365 = scalar_lea.vmem [#allocation11], %s364
        %v366 = vld [vmem:[%s310] sm:$0xff]
        %v367 = vld [vmem:[%s319] sm:$0xff]
        %v368 = vld [vmem:[%s319 + $0x8] sm:$0xff]
        %v369 = vld [vmem:[%s319 + $0x10] sm:$0xff]
        %v370 = vld [vmem:[%s319 + $0x18] sm:$0xff]
        %v371 = vld [vmem:[%s319 + $0x20] sm:$0xff]
        %v372 = vld [vmem:[%s319 + $0x28] sm:$0xff]
        %v373 = vld [vmem:[%s319 + $0x30] sm:$0xff]
        %v374 = vld [vmem:[%s319 + $0x38] sm:$0xff]
        %v375 = vld [vmem:[%s319 + $0x40] sm:$0xff]
        %v376 = vld [vmem:[%s319 + $0x48] sm:$0xff]
        %v377 = vld [vmem:[%s319 + $0x50] sm:$0xff]
        %v378 = vld [vmem:[%s319 + $0x58] sm:$0xff]
        %v379 = vld [vmem:[%s319 + $0x60] sm:$0xff]
        %v380 = vld [vmem:[%s319 + $0x68] sm:$0xff]
        %v381 = vld [vmem:[%s319 + $0x70] sm:$0xff]
        %v382 = vld [vmem:[%s319 + $0x78] sm:$0xff]
        %383 = vmatprep.subr.mxu0 0.0
        %v384 = vand.u32 %v382, 4294901760
        %385 = vmatpush1.xpose.msra.mxu0 %v384
        %386 = vmatprep.subr.mxu0 0.0
        %v387 = vand.u32 %v381, 4294901760
        %388 = vmatpush1.xpose.msra.mxu0 %v387
        %389 = vmatprep.subr.mxu0 0.0
        %v390 = vand.u32 %v380, 4294901760
        %391 = vmatpush1.xpose.msra.mxu0 %v390
        %392 = vmatprep.subr.mxu0 0.0
        %v393 = vand.u32 %v379, 4294901760
        %394 = vmatpush1.xpose.msra.mxu0 %v393
        %395 = vmatprep.subr.mxu0 0.0
        %v396 = vand.u32 %v378, 4294901760
        %397 = vmatpush1.xpose.msra.mxu0 %v396
        %398 = vmatprep.subr.mxu0 0.0
        %v399 = vand.u32 %v377, 4294901760
        %400 = vmatpush1.xpose.msra.mxu0 %v399
        %401 = vmatprep.subr.mxu0 0.0
        %v402 = vand.u32 %v376, 4294901760
        %403 = vmatpush1.xpose.msra.mxu0 %v402
        %404 = vmatprep.subr.mxu0 0.0
        %v405 = vand.u32 %v375, 4294901760
        %406 = vmatpush1.xpose.msra.mxu0 %v405
        %407 = vmatprep.subr.mxu0 0.0
        %v408 = vand.u32 %v374, 4294901760
        %409 = vmatpush1.xpose.msra.mxu0 %v408
        %410 = vmatprep.subr.mxu0 0.0
        %v411 = vand.u32 %v373, 4294901760
        %412 = vmatpush1.xpose.msra.mxu0 %v411
        %413 = vmatprep.subr.mxu0 0.0
        %v414 = vand.u32 %v372, 4294901760
        %415 = vmatpush1.xpose.msra.mxu0 %v414
        %416 = vmatprep.subr.mxu0 0.0
        %v417 = vand.u32 %v371, 4294901760
        %418 = vmatpush1.xpose.msra.mxu0 %v417
        %419 = vmatprep.subr.mxu0 0.0
        %v420 = vand.u32 %v370, 4294901760
        %421 = vmatpush1.xpose.msra.mxu0 %v420
        %422 = vmatprep.subr.mxu0 0.0
        %v423 = vand.u32 %v369, 4294901760
        %424 = vmatpush1.xpose.msra.mxu0 %v423
        %425 = vmatprep.subr.mxu0 0.0
        %v426 = vand.u32 %v368, 4294901760
        %427 = vmatpush1.xpose.msra.mxu0 %v426
        %428 = vmatprep.subr.mxu0 0.0
        %v429 = vand.u32 %v367, 4294901760
        %430 = vmatpush1.xpose.msra.mxu0 %v429
        %431 = vmatprep.subr.mxu0 0.0
        %432 = vmatpush2.xpose.msra.mxu0 0.0
        %433 = vmatprep.subr.mxu0 0.0
        %434 = vmatpush2.xpose.msra.mxu0 0.0
        %435 = vmatprep.subr.mxu0 0.0
        %436 = vmatpush2.xpose.msra.mxu0 0.0
        %437 = vmatprep.subr.mxu0 0.0
        %438 = vmatpush2.xpose.msra.mxu0 0.0
        %439 = vmatprep.subr.mxu0 0.0
        %440 = vmatpush2.xpose.msra.mxu0 0.0
        %441 = vmatprep.subr.mxu0 0.0
        %442 = vmatpush2.xpose.msra.mxu0 0.0
        %443 = vmatprep.subr.mxu0 0.0
        %444 = vmatpush2.xpose.msra.mxu0 0.0
        %445 = vmatprep.subr.mxu0 0.0
        %446 = vmatpush2.xpose.msra.mxu0 0.0
        %447 = vmatprep.subr.mxu0 0.0
        %448 = vmatpush2.xpose.msra.mxu0 0.0
        %449 = vmatprep.subr.mxu0 0.0
        %450 = vmatpush2.xpose.msra.mxu0 0.0
        %451 = vmatprep.subr.mxu0 0.0
        %452 = vmatpush2.xpose.msra.mxu0 0.0
        %453 = vmatprep.subr.mxu0 0.0
        %454 = vmatpush2.xpose.msra.mxu0 0.0
        %455 = vmatprep.subr.mxu0 0.0
        %456 = vmatpush2.xpose.msra.mxu0 0.0
        %457 = vmatprep.subr.mxu0 0.0
        %458 = vmatpush2.xpose.msra.mxu0 0.0
        %459 = vmatprep.subr.mxu0 0.0
        %460 = vmatpush2.xpose.msra.mxu0 0.0
        %461 = vmatprep.subr.mxu0 0.0
        %462 = vmatpush2.xpose.msra.mxu0 0.0
        %463 = vmatprep.mubr.f32.mxu0 0.0
        %v464 = vand.u32 %v366, 4294901760
        %v465 = vsub.f32 %v366, %v464
        %v466 = vand.u32 %v465, 4294901760
        %v467 = vsub.f32 %v465, %v466
        %v468 = vand.u32 %v467, 4294901760
        %469 = vmatmul.mubr.f32.gmra.mxu0 %v468
        %v470 = vpop.f32.mrf.mxu0
        %v471 = vadd.f32 0.0, %v470
        %v472 = vpop.f32.mrf.mxu0
        %473 = vdwg.mxu0
        %474 = vmatprep.subr.mxu0 0.0
        %v475 = vand.u32 %v382, 4294901760
        %v476 = vsub.f32 %v382, %v475
        %v477 = vand.u32 %v476, 4294901760
        %v478 = vsub.f32 %v476, %v477
        %v479 = vand.u32 %v478, 4294901760
        %480 = vmatpush1.xpose.msra.mxu0 %v479
        %481 = vmatprep.subr.mxu0 0.0
        %v482 = vand.u32 %v381, 4294901760
        %v483 = vsub.f32 %v381, %v482
        %v484 = vand.u32 %v483, 4294901760
        %v485 = vsub.f32 %v483, %v484
        %v486 = vand.u32 %v485, 4294901760
        %487 = vmatpush1.xpose.msra.mxu0 %v486
        %488 = vmatprep.subr.mxu0 0.0
        %v489 = vand.u32 %v380, 4294901760
        %v490 = vsub.f32 %v380, %v489
        %v491 = vand.u32 %v490, 4294901760
        %v492 = vsub.f32 %v490, %v491
        %v493 = vand.u32 %v492, 4294901760
        %494 = vmatpush1.xpose.msra.mxu0 %v493
        %495 = vmatprep.subr.mxu0 0.0
        %v496 = vand.u32 %v379, 4294901760
        %v497 = vsub.f32 %v379, %v496
        %v498 = vand.u32 %v497, 4294901760
        %v499 = vsub.f32 %v497, %v498
        %v500 = vand.u32 %v499, 4294901760
        %501 = vmatpush1.xpose.msra.mxu0 %v500
        %502 = vmatprep.subr.mxu0 0.0
        %v503 = vand.u32 %v378, 4294901760
        %v504 = vsub.f32 %v378, %v503
        %v505 = vand.u32 %v504, 4294901760
        %v506 = vsub.f32 %v504, %v505
        %v507 = vand.u32 %v506, 4294901760
        %508 = vmatpush1.xpose.msra.mxu0 %v507
        %509 = vmatprep.subr.mxu0 0.0
        %v510 = vand.u32 %v377, 4294901760
        %v511 = vsub.f32 %v377, %v510
        %v512 = vand.u32 %v511, 4294901760
        %v513 = vsub.f32 %v511, %v512
        %v514 = vand.u32 %v513, 4294901760
        %515 = vmatpush1.xpose.msra.mxu0 %v514
        %516 = vmatprep.subr.mxu0 0.0
        %v517 = vand.u32 %v376, 4294901760
        %v518 = vsub.f32 %v376, %v517
        %v519 = vand.u32 %v518, 4294901760
        %v520 = vsub.f32 %v518, %v519
        %v521 = vand.u32 %v520, 4294901760
        %522 = vmatpush1.xpose.msra.mxu0 %v521
        %523 = vmatprep.subr.mxu0 0.0
        %v524 = vand.u32 %v375, 4294901760
        %v525 = vsub.f32 %v375, %v524
        %v526 = vand.u32 %v525, 4294901760
        %v527 = vsub.f32 %v525, %v526
        %v528 = vand.u32 %v527, 4294901760
        %529 = vmatpush1.xpose.msra.mxu0 %v528
        %530 = vmatprep.subr.mxu0 0.0
        %v531 = vand.u32 %v374, 4294901760
        %v532 = vsub.f32 %v374, %v531
        %v533 = vand.u32 %v532, 4294901760
        %v534 = vsub.f32 %v532, %v533
        %v535 = vand.u32 %v534, 4294901760
        %536 = vmatpush1.xpose.msra.mxu0 %v535
        %537 = vmatprep.subr.mxu0 0.0
        %v538 = vand.u32 %v373, 4294901760
        %v539 = vsub.f32 %v373, %v538
        %v540 = vand.u32 %v539, 4294901760
        %v541 = vsub.f32 %v539, %v540
        %v542 = vand.u32 %v541, 4294901760
        %543 = vmatpush1.xpose.msra.mxu0 %v542
        %544 = vmatprep.subr.mxu0 0.0
        %v545 = vand.u32 %v372, 4294901760
        %v546 = vsub.f32 %v372, %v545
        %v547 = vand.u32 %v546, 4294901760
        %v548 = vsub.f32 %v546, %v547
        %v549 = vand.u32 %v548, 4294901760
        %550 = vmatpush1.xpose.msra.mxu0 %v549
        %551 = vmatprep.subr.mxu0 0.0
        %v552 = vand.u32 %v371, 4294901760
        %v553 = vsub.f32 %v371, %v552
        %v554 = vand.u32 %v553, 4294901760
        %v555 = vsub.f32 %v553, %v554
        %v556 = vand.u32 %v555, 4294901760
        %557 = vmatpush1.xpose.msra.mxu0 %v556
        %558 = vmatprep.subr.mxu0 0.0
        %v559 = vand.u32 %v370, 4294901760
        %v560 = vsub.f32 %v370, %v559
        %v561 = vand.u32 %v560, 4294901760
        %v562 = vsub.f32 %v560, %v561
        %v563 = vand.u32 %v562, 4294901760
        %564 = vmatpush1.xpose.msra.mxu0 %v563
        %565 = vmatprep.subr.mxu0 0.0
        %v566 = vand.u32 %v369, 4294901760
        %v567 = vsub.f32 %v369, %v566
        %v568 = vand.u32 %v567, 4294901760
        %v569 = vsub.f32 %v567, %v568
        %v570 = vand.u32 %v569, 4294901760
        %571 = vmatpush1.xpose.msra.mxu0 %v570
        %572 = vmatprep.subr.mxu0 0.0
        %v573 = vand.u32 %v368, 4294901760
        %v574 = vsub.f32 %v368, %v573
        %v575 = vand.u32 %v574, 4294901760
        %v576 = vsub.f32 %v574, %v575
        %v577 = vand.u32 %v576, 4294901760
        %578 = vmatpush1.xpose.msra.mxu0 %v577
        %579 = vmatprep.subr.mxu0 0.0
        %v580 = vand.u32 %v367, 4294901760
        %v581 = vsub.f32 %v367, %v580
        %v582 = vand.u32 %v581, 4294901760
        %v583 = vsub.f32 %v581, %v582
        %v584 = vand.u32 %v583, 4294901760
        %585 = vmatpush1.xpose.msra.mxu0 %v584
        %586 = vmatprep.subr.mxu0 0.0
        %587 = vmatpush2.xpose.msra.mxu0 0.0
        %588 = vmatprep.subr.mxu0 0.0
        %589 = vmatpush2.xpose.msra.mxu0 0.0
        %590 = vmatprep.subr.mxu0 0.0
        %591 = vmatpush2.xpose.msra.mxu0 0.0
        %592 = vmatprep.subr.mxu0 0.0
        %593 = vmatpush2.xpose.msra.mxu0 0.0
        %594 = vmatprep.subr.mxu0 0.0
        %595 = vmatpush2.xpose.msra.mxu0 0.0
        %596 = vmatprep.subr.mxu0 0.0
        %597 = vmatpush2.xpose.msra.mxu0 0.0
        %598 = vmatprep.subr.mxu0 0.0
        %599 = vmatpush2.xpose.msra.mxu0 0.0
        %600 = vmatprep.subr.mxu0 0.0
        %601 = vmatpush2.xpose.msra.mxu0 0.0
        %602 = vmatprep.subr.mxu0 0.0
        %603 = vmatpush2.xpose.msra.mxu0 0.0
        %604 = vmatprep.subr.mxu0 0.0
        %605 = vmatpush2.xpose.msra.mxu0 0.0
        %606 = vmatprep.subr.mxu0 0.0
        %607 = vmatpush2.xpose.msra.mxu0 0.0
        %608 = vmatprep.subr.mxu0 0.0
        %609 = vmatpush2.xpose.msra.mxu0 0.0
        %610 = vmatprep.subr.mxu0 0.0
        %611 = vmatpush2.xpose.msra.mxu0 0.0
        %612 = vmatprep.subr.mxu0 0.0
        %613 = vmatpush2.xpose.msra.mxu0 0.0
        %614 = vmatprep.subr.mxu0 0.0
        %615 = vmatpush2.xpose.msra.mxu0 0.0
        %616 = vmatprep.subr.mxu0 0.0
        %617 = vmatpush2.xpose.msra.mxu0 0.0
        %618 = vmatprep.mubr.f32.mxu0 0.0
        %v619 = vand.u32 %v366, 4294901760
        %620 = vmatmul.mubr.f32.gmra.mxu0 %v619
        %v621 = vpop.f32.mrf.mxu0
        %v622 = vadd.f32 %v471, %v621
        %v623 = vpop.f32.mrf.mxu0
        %624 = vdwg.mxu0
        %625 = vmatprep.subr.mxu0 0.0
        %v626 = vand.u32 %v382, 4294901760
        %v627 = vsub.f32 %v382, %v626
        %628 = vmatpush1.xpose.msra.mxu0 %v627
        %629 = vmatprep.subr.mxu0 0.0
        %v630 = vand.u32 %v381, 4294901760
        %v631 = vsub.f32 %v381, %v630
        %632 = vmatpush1.xpose.msra.mxu0 %v631
        %633 = vmatprep.subr.mxu0 0.0
        %v634 = vand.u32 %v380, 4294901760
        %v635 = vsub.f32 %v380, %v634
        %636 = vmatpush1.xpose.msra.mxu0 %v635
        %637 = vmatprep.subr.mxu0 0.0
        %v638 = vand.u32 %v379, 4294901760
        %v639 = vsub.f32 %v379, %v638
        %640 = vmatpush1.xpose.msra.mxu0 %v639
        %641 = vmatprep.subr.mxu0 0.0
        %v642 = vand.u32 %v378, 4294901760
        %v643 = vsub.f32 %v378, %v642
        %644 = vmatpush1.xpose.msra.mxu0 %v643
        %645 = vmatprep.subr.mxu0 0.0
        %v646 = vand.u32 %v377, 4294901760
        %v647 = vsub.f32 %v377, %v646
        %648 = vmatpush1.xpose.msra.mxu0 %v647
        %649 = vmatprep.subr.mxu0 0.0
        %v650 = vand.u32 %v376, 4294901760
        %v651 = vsub.f32 %v376, %v650
        %652 = vmatpush1.xpose.msra.mxu0 %v651
        %653 = vmatprep.subr.mxu0 0.0
        %v654 = vand.u32 %v375, 4294901760
        %v655 = vsub.f32 %v375, %v654
        %656 = vmatpush1.xpose.msra.mxu0 %v655
        %657 = vmatprep.subr.mxu0 0.0
        %v658 = vand.u32 %v374, 4294901760
        %v659 = vsub.f32 %v374, %v658
        %660 = vmatpush1.xpose.msra.mxu0 %v659
        %661 = vmatprep.subr.mxu0 0.0
        %v662 = vand.u32 %v373, 4294901760
        %v663 = vsub.f32 %v373, %v662
        %664 = vmatpush1.xpose.msra.mxu0 %v663
        %665 = vmatprep.subr.mxu0 0.0
        %v666 = vand.u32 %v372, 4294901760
        %v667 = vsub.f32 %v372, %v666
        %668 = vmatpush1.xpose.msra.mxu0 %v667
        %669 = vmatprep.subr.mxu0 0.0
        %v670 = vand.u32 %v371, 4294901760
        %v671 = vsub.f32 %v371, %v670
        %672 = vmatpush1.xpose.msra.mxu0 %v671
        %673 = vmatprep.subr.mxu0 0.0
        %v674 = vand.u32 %v370, 4294901760
        %v675 = vsub.f32 %v370, %v674
        %676 = vmatpush1.xpose.msra.mxu0 %v675
        %677 = vmatprep.subr.mxu0 0.0
        %v678 = vand.u32 %v369, 4294901760
        %v679 = vsub.f32 %v369, %v678
        %680 = vmatpush1.xpose.msra.mxu0 %v679
        %681 = vmatprep.subr.mxu0 0.0
        %v682 = vand.u32 %v368, 4294901760
        %v683 = vsub.f32 %v368, %v682
        %684 = vmatpush1.xpose.msra.mxu0 %v683
        %685 = vmatprep.subr.mxu0 0.0
        %v686 = vand.u32 %v367, 4294901760
        %v687 = vsub.f32 %v367, %v686
        %688 = vmatpush1.xpose.msra.mxu0 %v687
        %689 = vmatprep.subr.mxu0 0.0
        %690 = vmatpush2.xpose.msra.mxu0 0.0
        %691 = vmatprep.subr.mxu0 0.0
        %692 = vmatpush2.xpose.msra.mxu0 0.0
        %693 = vmatprep.subr.mxu0 0.0
        %694 = vmatpush2.xpose.msra.mxu0 0.0
        %695 = vmatprep.subr.mxu0 0.0
        %696 = vmatpush2.xpose.msra.mxu0 0.0
        %697 = vmatprep.subr.mxu0 0.0
        %698 = vmatpush2.xpose.msra.mxu0 0.0
        %699 = vmatprep.subr.mxu0 0.0
        %700 = vmatpush2.xpose.msra.mxu0 0.0
        %701 = vmatprep.subr.mxu0 0.0
        %702 = vmatpush2.xpose.msra.mxu0 0.0
        %703 = vmatprep.subr.mxu0 0.0
        %704 = vmatpush2.xpose.msra.mxu0 0.0
        %705 = vmatprep.subr.mxu0 0.0
        %706 = vmatpush2.xpose.msra.mxu0 0.0
        %707 = vmatprep.subr.mxu0 0.0
        %708 = vmatpush2.xpose.msra.mxu0 0.0
        %709 = vmatprep.subr.mxu0 0.0
        %710 = vmatpush2.xpose.msra.mxu0 0.0
        %711 = vmatprep.subr.mxu0 0.0
        %712 = vmatpush2.xpose.msra.mxu0 0.0
        %713 = vmatprep.subr.mxu0 0.0
        %714 = vmatpush2.xpose.msra.mxu0 0.0
        %715 = vmatprep.subr.mxu0 0.0
        %716 = vmatpush2.xpose.msra.mxu0 0.0
        %717 = vmatprep.subr.mxu0 0.0
        %718 = vmatpush2.xpose.msra.mxu0 0.0
        %719 = vmatprep.subr.mxu0 0.0
        %720 = vmatpush2.xpose.msra.mxu0 0.0
        %721 = vmatprep.mubr.f32.mxu0 0.0
        %v722 = vand.u32 %v366, 4294901760
        %v723 = vsub.f32 %v366, %v722
        %724 = vmatmul.mubr.f32.gmra.mxu0 %v723
        %v725 = vpop.f32.mrf.mxu0
        %v726 = vadd.f32 %v622, %v725
        %v727 = vpop.f32.mrf.mxu0
        %728 = vdwg.mxu0
        %729 = vmatprep.subr.mxu0 0.0
        %v730 = vand.u32 %v382, 4294901760
        %731 = vmatpush1.xpose.msra.mxu0 %v730
        %732 = vmatprep.subr.mxu0 0.0
        %v733 = vand.u32 %v381, 4294901760
        %734 = vmatpush1.xpose.msra.mxu0 %v733
        %735 = vmatprep.subr.mxu0 0.0
        %v736 = vand.u32 %v380, 4294901760
        %737 = vmatpush1.xpose.msra.mxu0 %v736
        %738 = vmatprep.subr.mxu0 0.0
        %v739 = vand.u32 %v379, 4294901760
        %740 = vmatpush1.xpose.msra.mxu0 %v739
        %741 = vmatprep.subr.mxu0 0.0
        %v742 = vand.u32 %v378, 4294901760
        %743 = vmatpush1.xpose.msra.mxu0 %v742
        %744 = vmatprep.subr.mxu0 0.0
        %v745 = vand.u32 %v377, 4294901760
        %746 = vmatpush1.xpose.msra.mxu0 %v745
        %747 = vmatprep.subr.mxu0 0.0
        %v748 = vand.u32 %v376, 4294901760
        %749 = vmatpush1.xpose.msra.mxu0 %v748
        %750 = vmatprep.subr.mxu0 0.0
        %v751 = vand.u32 %v375, 4294901760
        %752 = vmatpush1.xpose.msra.mxu0 %v751
        %753 = vmatprep.subr.mxu0 0.0
        %v754 = vand.u32 %v374, 4294901760
        %755 = vmatpush1.xpose.msra.mxu0 %v754
        %756 = vmatprep.subr.mxu0 0.0
        %v757 = vand.u32 %v373, 4294901760
        %758 = vmatpush1.xpose.msra.mxu0 %v757
        %759 = vmatprep.subr.mxu0 0.0
        %v760 = vand.u32 %v372, 4294901760
        %761 = vmatpush1.xpose.msra.mxu0 %v760
        %762 = vmatprep.subr.mxu0 0.0
        %v763 = vand.u32 %v371, 4294901760
        %764 = vmatpush1.xpose.msra.mxu0 %v763
        %765 = vmatprep.subr.mxu0 0.0
        %v766 = vand.u32 %v370, 4294901760
        %767 = vmatpush1.xpose.msra.mxu0 %v766
        %768 = vmatprep.subr.mxu0 0.0
        %v769 = vand.u32 %v369, 4294901760
        %770 = vmatpush1.xpose.msra.mxu0 %v769
        %771 = vmatprep.subr.mxu0 0.0
        %v772 = vand.u32 %v368, 4294901760
        %773 = vmatpush1.xpose.msra.mxu0 %v772
        %774 = vmatprep.subr.mxu0 0.0
        %v775 = vand.u32 %v367, 4294901760
        %776 = vmatpush1.xpose.msra.mxu0 %v775
        %777 = vmatprep.subr.mxu0 0.0
        %778 = vmatpush2.xpose.msra.mxu0 0.0
        %779 = vmatprep.subr.mxu0 0.0
        %780 = vmatpush2.xpose.msra.mxu0 0.0
        %781 = vmatprep.subr.mxu0 0.0
        %782 = vmatpush2.xpose.msra.mxu0 0.0
        %783 = vmatprep.subr.mxu0 0.0
        %784 = vmatpush2.xpose.msra.mxu0 0.0
        %785 = vmatprep.subr.mxu0 0.0
        %786 = vmatpush2.xpose.msra.mxu0 0.0
        %787 = vmatprep.subr.mxu0 0.0
        %788 = vmatpush2.xpose.msra.mxu0 0.0
        %789 = vmatprep.subr.mxu0 0.0
        %790 = vmatpush2.xpose.msra.mxu0 0.0
        %791 = vmatprep.subr.mxu0 0.0
        %792 = vmatpush2.xpose.msra.mxu0 0.0
        %793 = vmatprep.subr.mxu0 0.0
        %794 = vmatpush2.xpose.msra.mxu0 0.0
        %795 = vmatprep.subr.mxu0 0.0
        %796 = vmatpush2.xpose.msra.mxu0 0.0
        %797 = vmatprep.subr.mxu0 0.0
        %798 = vmatpush2.xpose.msra.mxu0 0.0
        %799 = vmatprep.subr.mxu0 0.0
        %800 = vmatpush2.xpose.msra.mxu0 0.0
        %801 = vmatprep.subr.mxu0 0.0
        %802 = vmatpush2.xpose.msra.mxu0 0.0
        %803 = vmatprep.subr.mxu0 0.0
        %804 = vmatpush2.xpose.msra.mxu0 0.0
        %805 = vmatprep.subr.mxu0 0.0
        %806 = vmatpush2.xpose.msra.mxu0 0.0
        %807 = vmatprep.subr.mxu0 0.0
        %808 = vmatpush2.xpose.msra.mxu0 0.0
        %809 = vmatprep.mubr.f32.mxu0 0.0
        %v810 = vand.u32 %v366, 4294901760
        %v811 = vsub.f32 %v366, %v810
        %v812 = vand.u32 %v811, 4294901760
        %813 = vmatmul.mubr.f32.gmra.mxu0 %v812
        %v814 = vpop.f32.mrf.mxu0
        %v815 = vadd.f32 %v726, %v814
        %v816 = vpop.f32.mrf.mxu0
        %817 = vdwg.mxu0
        %818 = vmatprep.subr.mxu0 0.0
        %v819 = vand.u32 %v382, 4294901760
        %v820 = vsub.f32 %v382, %v819
        %v821 = vand.u32 %v820, 4294901760
        %822 = vmatpush1.xpose.msra.mxu0 %v821
        %823 = vmatprep.subr.mxu0 0.0
        %v824 = vand.u32 %v381, 4294901760
        %v825 = vsub.f32 %v381, %v824
        %v826 = vand.u32 %v825, 4294901760
        %827 = vmatpush1.xpose.msra.mxu0 %v826
        %828 = vmatprep.subr.mxu0 0.0
        %v829 = vand.u32 %v380, 4294901760
        %v830 = vsub.f32 %v380, %v829
        %v831 = vand.u32 %v830, 4294901760
        %832 = vmatpush1.xpose.msra.mxu0 %v831
        %833 = vmatprep.subr.mxu0 0.0
        %v834 = vand.u32 %v379, 4294901760
        %v835 = vsub.f32 %v379, %v834
        %v836 = vand.u32 %v835, 4294901760
        %837 = vmatpush1.xpose.msra.mxu0 %v836
        %838 = vmatprep.subr.mxu0 0.0
        %v839 = vand.u32 %v378, 4294901760
        %v840 = vsub.f32 %v378, %v839
        %v841 = vand.u32 %v840, 4294901760
        %842 = vmatpush1.xpose.msra.mxu0 %v841
        %843 = vmatprep.subr.mxu0 0.0
        %v844 = vand.u32 %v377, 4294901760
        %v845 = vsub.f32 %v377, %v844
        %v846 = vand.u32 %v845, 4294901760
        %847 = vmatpush1.xpose.msra.mxu0 %v846
        %848 = vmatprep.subr.mxu0 0.0
        %v849 = vand.u32 %v376, 4294901760
        %v850 = vsub.f32 %v376, %v849
        %v851 = vand.u32 %v850, 4294901760
        %852 = vmatpush1.xpose.msra.mxu0 %v851
        %853 = vmatprep.subr.mxu0 0.0
        %v854 = vand.u32 %v375, 4294901760
        %v855 = vsub.f32 %v375, %v854
        %v856 = vand.u32 %v855, 4294901760
        %857 = vmatpush1.xpose.msra.mxu0 %v856
        %858 = vmatprep.subr.mxu0 0.0
        %v859 = vand.u32 %v374, 4294901760
        %v860 = vsub.f32 %v374, %v859
        %v861 = vand.u32 %v860, 4294901760
        %862 = vmatpush1.xpose.msra.mxu0 %v861
        %863 = vmatprep.subr.mxu0 0.0
        %v864 = vand.u32 %v373, 4294901760
        %v865 = vsub.f32 %v373, %v864
        %v866 = vand.u32 %v865, 4294901760
        %867 = vmatpush1.xpose.msra.mxu0 %v866
        %868 = vmatprep.subr.mxu0 0.0
        %v869 = vand.u32 %v372, 4294901760
        %v870 = vsub.f32 %v372, %v869
        %v871 = vand.u32 %v870, 4294901760
        %872 = vmatpush1.xpose.msra.mxu0 %v871
        %873 = vmatprep.subr.mxu0 0.0
        %v874 = vand.u32 %v371, 4294901760
        %v875 = vsub.f32 %v371, %v874
        %v876 = vand.u32 %v875, 4294901760
        %877 = vmatpush1.xpose.msra.mxu0 %v876
        %878 = vmatprep.subr.mxu0 0.0
        %v879 = vand.u32 %v370, 4294901760
        %v880 = vsub.f32 %v370, %v879
        %v881 = vand.u32 %v880, 4294901760
        %882 = vmatpush1.xpose.msra.mxu0 %v881
        %883 = vmatprep.subr.mxu0 0.0
        %v884 = vand.u32 %v369, 4294901760
        %v885 = vsub.f32 %v369, %v884
        %v886 = vand.u32 %v885, 4294901760
        %887 = vmatpush1.xpose.msra.mxu0 %v886
        %888 = vmatprep.subr.mxu0 0.0
        %v889 = vand.u32 %v368, 4294901760
        %v890 = vsub.f32 %v368, %v889
        %v891 = vand.u32 %v890, 4294901760
        %892 = vmatpush1.xpose.msra.mxu0 %v891
        %893 = vmatprep.subr.mxu0 0.0
        %v894 = vand.u32 %v367, 4294901760
        %v895 = vsub.f32 %v367, %v894
        %v896 = vand.u32 %v895, 4294901760
        %897 = vmatpush1.xpose.msra.mxu0 %v896
        %898 = vmatprep.subr.mxu0 0.0
        %899 = vmatpush2.xpose.msra.mxu0 0.0
        %900 = vmatprep.subr.mxu0 0.0
        %901 = vmatpush2.xpose.msra.mxu0 0.0
        %902 = vmatprep.subr.mxu0 0.0
        %903 = vmatpush2.xpose.msra.mxu0 0.0
        %904 = vmatprep.subr.mxu0 0.0
        %905 = vmatpush2.xpose.msra.mxu0 0.0
        %906 = vmatprep.subr.mxu0 0.0
        %907 = vmatpush2.xpose.msra.mxu0 0.0
        %908 = vmatprep.subr.mxu0 0.0
        %909 = vmatpush2.xpose.msra.mxu0 0.0
        %910 = vmatprep.subr.mxu0 0.0
        %911 = vmatpush2.xpose.msra.mxu0 0.0
        %912 = vmatprep.subr.mxu0 0.0
        %913 = vmatpush2.xpose.msra.mxu0 0.0
        %914 = vmatprep.subr.mxu0 0.0
        %915 = vmatpush2.xpose.msra.mxu0 0.0
        %916 = vmatprep.subr.mxu0 0.0
        %917 = vmatpush2.xpose.msra.mxu0 0.0
        %918 = vmatprep.subr.mxu0 0.0
        %919 = vmatpush2.xpose.msra.mxu0 0.0
        %920 = vmatprep.subr.mxu0 0.0
        %921 = vmatpush2.xpose.msra.mxu0 0.0
        %922 = vmatprep.subr.mxu0 0.0
        %923 = vmatpush2.xpose.msra.mxu0 0.0
        %924 = vmatprep.subr.mxu0 0.0
        %925 = vmatpush2.xpose.msra.mxu0 0.0
        %926 = vmatprep.subr.mxu0 0.0
        %927 = vmatpush2.xpose.msra.mxu0 0.0
        %928 = vmatprep.subr.mxu0 0.0
        %929 = vmatpush2.xpose.msra.mxu0 0.0
        %930 = vmatprep.mubr.f32.mxu0 0.0
        %v931 = vand.u32 %v366, 4294901760
        %932 = vmatmul.mubr.f32.gmra.mxu0 %v931
        %v933 = vpop.f32.mrf.mxu0
        %v934 = vadd.f32 %v815, %v933
        %v935 = vpop.f32.mrf.mxu0
        %936 = vdwg.mxu0
        %937 = vmatprep.subr.mxu0 0.0
        %v938 = vand.u32 %v382, 4294901760
        %939 = vmatpush1.xpose.msra.mxu0 %v938
        %940 = vmatprep.subr.mxu0 0.0
        %v941 = vand.u32 %v381, 4294901760
        %942 = vmatpush1.xpose.msra.mxu0 %v941
        %943 = vmatprep.subr.mxu0 0.0
        %v944 = vand.u32 %v380, 4294901760
        %945 = vmatpush1.xpose.msra.mxu0 %v944
        %946 = vmatprep.subr.mxu0 0.0
        %v947 = vand.u32 %v379, 4294901760
        %948 = vmatpush1.xpose.msra.mxu0 %v947
        %949 = vmatprep.subr.mxu0 0.0
        %v950 = vand.u32 %v378, 4294901760
        %951 = vmatpush1.xpose.msra.mxu0 %v950
        %952 = vmatprep.subr.mxu0 0.0
        %v953 = vand.u32 %v377, 4294901760
        %954 = vmatpush1.xpose.msra.mxu0 %v953
        %955 = vmatprep.subr.mxu0 0.0
        %v956 = vand.u32 %v376, 4294901760
        %957 = vmatpush1.xpose.msra.mxu0 %v956
        %958 = vmatprep.subr.mxu0 0.0
        %v959 = vand.u32 %v375, 4294901760
        %960 = vmatpush1.xpose.msra.mxu0 %v959
        %961 = vmatprep.subr.mxu0 0.0
        %v962 = vand.u32 %v374, 4294901760
        %963 = vmatpush1.xpose.msra.mxu0 %v962
        %964 = vmatprep.subr.mxu0 0.0
        %v965 = vand.u32 %v373, 4294901760
        %966 = vmatpush1.xpose.msra.mxu0 %v965
        %967 = vmatprep.subr.mxu0 0.0
        %v968 = vand.u32 %v372, 4294901760
        %969 = vmatpush1.xpose.msra.mxu0 %v968
        %970 = vmatprep.subr.mxu0 0.0
        %v971 = vand.u32 %v371, 4294901760
        %972 = vmatpush1.xpose.msra.mxu0 %v971
        %973 = vmatprep.subr.mxu0 0.0
        %v974 = vand.u32 %v370, 4294901760
        %975 = vmatpush1.xpose.msra.mxu0 %v974
        %976 = vmatprep.subr.mxu0 0.0
        %v977 = vand.u32 %v369, 4294901760
        %978 = vmatpush1.xpose.msra.mxu0 %v977
        %979 = vmatprep.subr.mxu0 0.0
        %v980 = vand.u32 %v368, 4294901760
        %981 = vmatpush1.xpose.msra.mxu0 %v980
        %982 = vmatprep.subr.mxu0 0.0
        %v983 = vand.u32 %v367, 4294901760
        %984 = vmatpush1.xpose.msra.mxu0 %v983
        %985 = vmatprep.subr.mxu0 0.0
        %986 = vmatpush2.xpose.msra.mxu0 0.0
        %987 = vmatprep.subr.mxu0 0.0
        %988 = vmatpush2.xpose.msra.mxu0 0.0
        %989 = vmatprep.subr.mxu0 0.0
        %990 = vmatpush2.xpose.msra.mxu0 0.0
        %991 = vmatprep.subr.mxu0 0.0
        %992 = vmatpush2.xpose.msra.mxu0 0.0
        %993 = vmatprep.subr.mxu0 0.0
        %994 = vmatpush2.xpose.msra.mxu0 0.0
        %995 = vmatprep.subr.mxu0 0.0
        %996 = vmatpush2.xpose.msra.mxu0 0.0
        %997 = vmatprep.subr.mxu0 0.0
        %998 = vmatpush2.xpose.msra.mxu0 0.0
        %999 = vmatprep.subr.mxu0 0.0
        %1000 = vmatpush2.xpose.msra.mxu0 0.0
        %1001 = vmatprep.subr.mxu0 0.0
        %1002 = vmatpush2.xpose.msra.mxu0 0.0
        %1003 = vmatprep.subr.mxu0 0.0
        %1004 = vmatpush2.xpose.msra.mxu0 0.0
        %1005 = vmatprep.subr.mxu0 0.0
        %1006 = vmatpush2.xpose.msra.mxu0 0.0
        %1007 = vmatprep.subr.mxu0 0.0
        %1008 = vmatpush2.xpose.msra.mxu0 0.0
        %1009 = vmatprep.subr.mxu0 0.0
        %1010 = vmatpush2.xpose.msra.mxu0 0.0
        %1011 = vmatprep.subr.mxu0 0.0
        %1012 = vmatpush2.xpose.msra.mxu0 0.0
        %1013 = vmatprep.subr.mxu0 0.0
        %1014 = vmatpush2.xpose.msra.mxu0 0.0
        %1015 = vmatprep.subr.mxu0 0.0
        %1016 = vmatpush2.xpose.msra.mxu0 0.0
        %1017 = vmatprep.mubr.f32.mxu0 0.0
        %v1018 = vand.u32 %v366, 4294901760
        %1019 = vmatmul.mubr.f32.gmra.mxu0 %v1018
        %v1020 = vpop.f32.mrf.mxu0
        %v1021 = vadd.f32 %v934, %v1020
        %v1022 = vpop.f32.mrf.mxu0
        %1023 = vdwg.mxu0
        %v1024 = vlaneseq
        %v1025 = vand.u32 %v1024, 127
        %vm1026 = vcmp.lt.s32.totalorder %v1025, 8
        %v1027 = vsel %vm1026, %v1021, -1e+30
        %1028 = vmax.xlane.f32.xlu0 %v1027
        %v1029 = vpop.xlane.xlu0 %1028
        %v1030 = vsub.f32 %v1027, %v1029
        %v1031 = vmul.f32 %v1030, 1.442695
        %v1032 = vpow.pop %v1031
        %1033 = vadd.xlane.f32.xlu0 %v1032
        %v1034 = vpop.xlane.xlu0 %1033
        %v1035 = vrcp.pop %v1034
        %v1036 = vmul.f32 %v1032, %v1035
        %1037 = vst [vmem:[%s365] sm:$0xff] %v1036
        %1038 = vmatprep.subr.mxu0 0.0
        %v1039 = vand.u32 %v382, 4294901760
        %1040 = vmatpush1.msra.mxu0 %v1039
        %1041 = vmatprep.subr.mxu0 0.0
        %v1042 = vand.u32 %v381, 4294901760
        %1043 = vmatpush1.msra.mxu0 %v1042
        %1044 = vmatprep.subr.mxu0 0.0
        %v1045 = vand.u32 %v380, 4294901760
        %1046 = vmatpush1.msra.mxu0 %v1045
        %1047 = vmatprep.subr.mxu0 0.0
        %v1048 = vand.u32 %v379, 4294901760
        %1049 = vmatpush1.msra.mxu0 %v1048
        %1050 = vmatprep.subr.mxu0 0.0
        %v1051 = vand.u32 %v378, 4294901760
        %1052 = vmatpush1.msra.mxu0 %v1051
        %1053 = vmatprep.subr.mxu0 0.0
        %v1054 = vand.u32 %v377, 4294901760
        %1055 = vmatpush1.msra.mxu0 %v1054
        %1056 = vmatprep.subr.mxu0 0.0
        %v1057 = vand.u32 %v376, 4294901760
        %1058 = vmatpush1.msra.mxu0 %v1057
        %1059 = vmatprep.subr.mxu0 0.0
        %v1060 = vand.u32 %v375, 4294901760
        %1061 = vmatpush1.msra.mxu0 %v1060
        %1062 = vmatprep.subr.mxu0 0.0
        %v1063 = vand.u32 %v374, 4294901760
        %1064 = vmatpush1.msra.mxu0 %v1063
        %1065 = vmatprep.subr.mxu0 0.0
        %v1066 = vand.u32 %v373, 4294901760
        %1067 = vmatpush1.msra.mxu0 %v1066
        %1068 = vmatprep.subr.mxu0 0.0
        %v1069 = vand.u32 %v372, 4294901760
        %1070 = vmatpush1.msra.mxu0 %v1069
        %1071 = vmatprep.subr.mxu0 0.0
        %v1072 = vand.u32 %v371, 4294901760
        %1073 = vmatpush1.msra.mxu0 %v1072
        %1074 = vmatprep.subr.mxu0 0.0
        %v1075 = vand.u32 %v370, 4294901760
        %1076 = vmatpush1.msra.mxu0 %v1075
        %1077 = vmatprep.subr.mxu0 0.0
        %v1078 = vand.u32 %v369, 4294901760
        %1079 = vmatpush1.msra.mxu0 %v1078
        %1080 = vmatprep.subr.mxu0 0.0
        %v1081 = vand.u32 %v368, 4294901760
        %1082 = vmatpush1.msra.mxu0 %v1081
        %1083 = vmatprep.subr.mxu0 0.0
        %v1084 = vand.u32 %v367, 4294901760
        %1085 = vmatpush1.msra.mxu0 %v1084
        %1086 = vmatprep.subr.mxu0 0.0
        %1087 = vmatpush2.msra.mxu0 0.0
        %1088 = vmatprep.subr.mxu0 0.0
        %1089 = vmatpush2.msra.mxu0 0.0
        %1090 = vmatprep.subr.mxu0 0.0
        %1091 = vmatpush2.msra.mxu0 0.0
        %1092 = vmatprep.subr.mxu0 0.0
        %1093 = vmatpush2.msra.mxu0 0.0
        %1094 = vmatprep.subr.mxu0 0.0
        %1095 = vmatpush2.msra.mxu0 0.0
        %1096 = vmatprep.subr.mxu0 0.0
        %1097 = vmatpush2.msra.mxu0 0.0
        %1098 = vmatprep.subr.mxu0 0.0
        %1099 = vmatpush2.msra.mxu0 0.0
        %1100 = vmatprep.subr.mxu0 0.0
        %1101 = vmatpush2.msra.mxu0 0.0
        %1102 = vmatprep.subr.mxu0 0.0
        %1103 = vmatpush2.msra.mxu0 0.0
        %1104 = vmatprep.subr.mxu0 0.0
        %1105 = vmatpush2.msra.mxu0 0.0
        %1106 = vmatprep.subr.mxu0 0.0
        %1107 = vmatpush2.msra.mxu0 0.0
        %1108 = vmatprep.subr.mxu0 0.0
        %1109 = vmatpush2.msra.mxu0 0.0
        %1110 = vmatprep.subr.mxu0 0.0
        %1111 = vmatpush2.msra.mxu0 0.0
        %1112 = vmatprep.subr.mxu0 0.0
        %1113 = vmatpush2.msra.mxu0 0.0
        %1114 = vmatprep.subr.mxu0 0.0
        %1115 = vmatpush2.msra.mxu0 0.0
        %1116 = vmatprep.subr.mxu0 0.0
        %1117 = vmatpush2.msra.mxu0 0.0
        %1118 = vmatprep.mubr.f32.mxu0 0.0
        %v1119 = vand.u32 %v1036, 4294901760
        %v1120 = vsub.f32 %v1036, %v1119
        %v1121 = vand.u32 %v1120, 4294901760
        %v1122 = vsub.f32 %v1120, %v1121
        %v1123 = vand.u32 %v1122, 4294901760
        %1124 = vmatmul.mubr.f32.gmra.mxu0 %v1123
        %v1125 = vpop.f32.mrf.mxu0
        %v1126 = vadd.f32 0.0, %v1125
        %v1127 = vpop.f32.mrf.mxu0
        %1128 = vdwg.mxu0
        %1129 = vmatprep.subr.mxu0 0.0
        %v1130 = vand.u32 %v382, 4294901760
        %v1131 = vsub.f32 %v382, %v1130
        %v1132 = vand.u32 %v1131, 4294901760
        %v1133 = vsub.f32 %v1131, %v1132
        %v1134 = vand.u32 %v1133, 4294901760
        %1135 = vmatpush1.msra.mxu0 %v1134
        %1136 = vmatprep.subr.mxu0 0.0
        %v1137 = vand.u32 %v381, 4294901760
        %v1138 = vsub.f32 %v381, %v1137
        %v1139 = vand.u32 %v1138, 4294901760
        %v1140 = vsub.f32 %v1138, %v1139
        %v1141 = vand.u32 %v1140, 4294901760
        %1142 = vmatpush1.msra.mxu0 %v1141
        %1143 = vmatprep.subr.mxu0 0.0
        %v1144 = vand.u32 %v380, 4294901760
        %v1145 = vsub.f32 %v380, %v1144
        %v1146 = vand.u32 %v1145, 4294901760
        %v1147 = vsub.f32 %v1145, %v1146
        %v1148 = vand.u32 %v1147, 4294901760
        %1149 = vmatpush1.msra.mxu0 %v1148
        %1150 = vmatprep.subr.mxu0 0.0
        %v1151 = vand.u32 %v379, 4294901760
        %v1152 = vsub.f32 %v379, %v1151
        %v1153 = vand.u32 %v1152, 4294901760
        %v1154 = vsub.f32 %v1152, %v1153
        %v1155 = vand.u32 %v1154, 4294901760
        %1156 = vmatpush1.msra.mxu0 %v1155
        %1157 = vmatprep.subr.mxu0 0.0
        %v1158 = vand.u32 %v378, 4294901760
        %v1159 = vsub.f32 %v378, %v1158
        %v1160 = vand.u32 %v1159, 4294901760
        %v1161 = vsub.f32 %v1159, %v1160
        %v1162 = vand.u32 %v1161, 4294901760
        %1163 = vmatpush1.msra.mxu0 %v1162
        %1164 = vmatprep.subr.mxu0 0.0
        %v1165 = vand.u32 %v377, 4294901760
        %v1166 = vsub.f32 %v377, %v1165
        %v1167 = vand.u32 %v1166, 4294901760
        %v1168 = vsub.f32 %v1166, %v1167
        %v1169 = vand.u32 %v1168, 4294901760
        %1170 = vmatpush1.msra.mxu0 %v1169
        %1171 = vmatprep.subr.mxu0 0.0
        %v1172 = vand.u32 %v376, 4294901760
        %v1173 = vsub.f32 %v376, %v1172
        %v1174 = vand.u32 %v1173, 4294901760
        %v1175 = vsub.f32 %v1173, %v1174
        %v1176 = vand.u32 %v1175, 4294901760
        %1177 = vmatpush1.msra.mxu0 %v1176
        %1178 = vmatprep.subr.mxu0 0.0
        %v1179 = vand.u32 %v375, 4294901760
        %v1180 = vsub.f32 %v375, %v1179
        %v1181 = vand.u32 %v1180, 4294901760
        %v1182 = vsub.f32 %v1180, %v1181
        %v1183 = vand.u32 %v1182, 4294901760
        %1184 = vmatpush1.msra.mxu0 %v1183
        %1185 = vmatprep.subr.mxu0 0.0
        %v1186 = vand.u32 %v374, 4294901760
        %v1187 = vsub.f32 %v374, %v1186
        %v1188 = vand.u32 %v1187, 4294901760
        %v1189 = vsub.f32 %v1187, %v1188
        %v1190 = vand.u32 %v1189, 4294901760
        %1191 = vmatpush1.msra.mxu0 %v1190
        %1192 = vmatprep.subr.mxu0 0.0
        %v1193 = vand.u32 %v373, 4294901760
        %v1194 = vsub.f32 %v373, %v1193
        %v1195 = vand.u32 %v1194, 4294901760
        %v1196 = vsub.f32 %v1194, %v1195
        %v1197 = vand.u32 %v1196, 4294901760
        %1198 = vmatpush1.msra.mxu0 %v1197
        %1199 = vmatprep.subr.mxu0 0.0
        %v1200 = vand.u32 %v372, 4294901760
        %v1201 = vsub.f32 %v372, %v1200
        %v1202 = vand.u32 %v1201, 4294901760
        %v1203 = vsub.f32 %v1201, %v1202
        %v1204 = vand.u32 %v1203, 4294901760
        %1205 = vmatpush1.msra.mxu0 %v1204
        %1206 = vmatprep.subr.mxu0 0.0
        %v1207 = vand.u32 %v371, 4294901760
        %v1208 = vsub.f32 %v371, %v1207
        %v1209 = vand.u32 %v1208, 4294901760
        %v1210 = vsub.f32 %v1208, %v1209
        %v1211 = vand.u32 %v1210, 4294901760
        %1212 = vmatpush1.msra.mxu0 %v1211
        %1213 = vmatprep.subr.mxu0 0.0
        %v1214 = vand.u32 %v370, 4294901760
        %v1215 = vsub.f32 %v370, %v1214
        %v1216 = vand.u32 %v1215, 4294901760
        %v1217 = vsub.f32 %v1215, %v1216
        %v1218 = vand.u32 %v1217, 4294901760
        %1219 = vmatpush1.msra.mxu0 %v1218
        %1220 = vmatprep.subr.mxu0 0.0
        %v1221 = vand.u32 %v369, 4294901760
        %v1222 = vsub.f32 %v369, %v1221
        %v1223 = vand.u32 %v1222, 4294901760
        %v1224 = vsub.f32 %v1222, %v1223
        %v1225 = vand.u32 %v1224, 4294901760
        %1226 = vmatpush1.msra.mxu0 %v1225
        %1227 = vmatprep.subr.mxu0 0.0
        %v1228 = vand.u32 %v368, 4294901760
        %v1229 = vsub.f32 %v368, %v1228
        %v1230 = vand.u32 %v1229, 4294901760
        %v1231 = vsub.f32 %v1229, %v1230
        %v1232 = vand.u32 %v1231, 4294901760
        %1233 = vmatpush1.msra.mxu0 %v1232
        %1234 = vmatprep.subr.mxu0 0.0
        %v1235 = vand.u32 %v367, 4294901760
        %v1236 = vsub.f32 %v367, %v1235
        %v1237 = vand.u32 %v1236, 4294901760
        %v1238 = vsub.f32 %v1236, %v1237
        %v1239 = vand.u32 %v1238, 4294901760
        %1240 = vmatpush1.msra.mxu0 %v1239
        %1241 = vmatprep.subr.mxu0 0.0
        %1242 = vmatpush2.msra.mxu0 0.0
        %1243 = vmatprep.subr.mxu0 0.0
        %1244 = vmatpush2.msra.mxu0 0.0
        %1245 = vmatprep.subr.mxu0 0.0
        %1246 = vmatpush2.msra.mxu0 0.0
        %1247 = vmatprep.subr.mxu0 0.0
        %1248 = vmatpush2.msra.mxu0 0.0
        %1249 = vmatprep.subr.mxu0 0.0
        %1250 = vmatpush2.msra.mxu0 0.0
        %1251 = vmatprep.subr.mxu0 0.0
        %1252 = vmatpush2.msra.mxu0 0.0
        %1253 = vmatprep.subr.mxu0 0.0
        %1254 = vmatpush2.msra.mxu0 0.0
        %1255 = vmatprep.subr.mxu0 0.0
        %1256 = vmatpush2.msra.mxu0 0.0
        %1257 = vmatprep.subr.mxu0 0.0
        %1258 = vmatpush2.msra.mxu0 0.0
        %1259 = vmatprep.subr.mxu0 0.0
        %1260 = vmatpush2.msra.mxu0 0.0
        %1261 = vmatprep.subr.mxu0 0.0
        %1262 = vmatpush2.msra.mxu0 0.0
        %1263 = vmatprep.subr.mxu0 0.0
        %1264 = vmatpush2.msra.mxu0 0.0
        %1265 = vmatprep.subr.mxu0 0.0
        %1266 = vmatpush2.msra.mxu0 0.0
        %1267 = vmatprep.subr.mxu0 0.0
        %1268 = vmatpush2.msra.mxu0 0.0
        %1269 = vmatprep.subr.mxu0 0.0
        %1270 = vmatpush2.msra.mxu0 0.0
        %1271 = vmatprep.subr.mxu0 0.0
        %1272 = vmatpush2.msra.mxu0 0.0
        %1273 = vmatprep.mubr.f32.mxu0 0.0
        %v1274 = vand.u32 %v1036, 4294901760
        %1275 = vmatmul.mubr.f32.gmra.mxu0 %v1274
        %v1276 = vpop.f32.mrf.mxu0
        %v1277 = vadd.f32 %v1126, %v1276
        %v1278 = vpop.f32.mrf.mxu0
        %1279 = vdwg.mxu0
        %1280 = vmatprep.subr.mxu0 0.0
        %v1281 = vand.u32 %v382, 4294901760
        %v1282 = vsub.f32 %v382, %v1281
        %1283 = vmatpush1.msra.mxu0 %v1282
        %1284 = vmatprep.subr.mxu0 0.0
        %v1285 = vand.u32 %v381, 4294901760
        %v1286 = vsub.f32 %v381, %v1285
        %1287 = vmatpush1.msra.mxu0 %v1286
        %1288 = vmatprep.subr.mxu0 0.0
        %v1289 = vand.u32 %v380, 4294901760
        %v1290 = vsub.f32 %v380, %v1289
        %1291 = vmatpush1.msra.mxu0 %v1290
        %1292 = vmatprep.subr.mxu0 0.0
        %v1293 = vand.u32 %v379, 4294901760
        %v1294 = vsub.f32 %v379, %v1293
        %1295 = vmatpush1.msra.mxu0 %v1294
        %1296 = vmatprep.subr.mxu0 0.0
        %v1297 = vand.u32 %v378, 4294901760
        %v1298 = vsub.f32 %v378, %v1297
        %1299 = vmatpush1.msra.mxu0 %v1298
        %1300 = vmatprep.subr.mxu0 0.0
        %v1301 = vand.u32 %v377, 4294901760
        %v1302 = vsub.f32 %v377, %v1301
        %1303 = vmatpush1.msra.mxu0 %v1302
        %1304 = vmatprep.subr.mxu0 0.0
        %v1305 = vand.u32 %v376, 4294901760
        %v1306 = vsub.f32 %v376, %v1305
        %1307 = vmatpush1.msra.mxu0 %v1306
        %1308 = vmatprep.subr.mxu0 0.0
        %v1309 = vand.u32 %v375, 4294901760
        %v1310 = vsub.f32 %v375, %v1309
        %1311 = vmatpush1.msra.mxu0 %v1310
        %1312 = vmatprep.subr.mxu0 0.0
        %v1313 = vand.u32 %v374, 4294901760
        %v1314 = vsub.f32 %v374, %v1313
        %1315 = vmatpush1.msra.mxu0 %v1314
        %1316 = vmatprep.subr.mxu0 0.0
        %v1317 = vand.u32 %v373, 4294901760
        %v1318 = vsub.f32 %v373, %v1317
        %1319 = vmatpush1.msra.mxu0 %v1318
        %1320 = vmatprep.subr.mxu0 0.0
        %v1321 = vand.u32 %v372, 4294901760
        %v1322 = vsub.f32 %v372, %v1321
        %1323 = vmatpush1.msra.mxu0 %v1322
        %1324 = vmatprep.subr.mxu0 0.0
        %v1325 = vand.u32 %v371, 4294901760
        %v1326 = vsub.f32 %v371, %v1325
        %1327 = vmatpush1.msra.mxu0 %v1326
        %1328 = vmatprep.subr.mxu0 0.0
        %v1329 = vand.u32 %v370, 4294901760
        %v1330 = vsub.f32 %v370, %v1329
        %1331 = vmatpush1.msra.mxu0 %v1330
        %1332 = vmatprep.subr.mxu0 0.0
        %v1333 = vand.u32 %v369, 4294901760
        %v1334 = vsub.f32 %v369, %v1333
        %1335 = vmatpush1.msra.mxu0 %v1334
        %1336 = vmatprep.subr.mxu0 0.0
        %v1337 = vand.u32 %v368, 4294901760
        %v1338 = vsub.f32 %v368, %v1337
        %1339 = vmatpush1.msra.mxu0 %v1338
        %1340 = vmatprep.subr.mxu0 0.0
        %v1341 = vand.u32 %v367, 4294901760
        %v1342 = vsub.f32 %v367, %v1341
        %1343 = vmatpush1.msra.mxu0 %v1342
        %1344 = vmatprep.subr.mxu0 0.0
        %1345 = vmatpush2.msra.mxu0 0.0
        %1346 = vmatprep.subr.mxu0 0.0
        %1347 = vmatpush2.msra.mxu0 0.0
        %1348 = vmatprep.subr.mxu0 0.0
        %1349 = vmatpush2.msra.mxu0 0.0
        %1350 = vmatprep.subr.mxu0 0.0
        %1351 = vmatpush2.msra.mxu0 0.0
        %1352 = vmatprep.subr.mxu0 0.0
        %1353 = vmatpush2.msra.mxu0 0.0
        %1354 = vmatprep.subr.mxu0 0.0
        %1355 = vmatpush2.msra.mxu0 0.0
        %1356 = vmatprep.subr.mxu0 0.0
        %1357 = vmatpush2.msra.mxu0 0.0
        %1358 = vmatprep.subr.mxu0 0.0
        %1359 = vmatpush2.msra.mxu0 0.0
        %1360 = vmatprep.subr.mxu0 0.0
        %1361 = vmatpush2.msra.mxu0 0.0
        %1362 = vmatprep.subr.mxu0 0.0
        %1363 = vmatpush2.msra.mxu0 0.0
        %1364 = vmatprep.subr.mxu0 0.0
        %1365 = vmatpush2.msra.mxu0 0.0
        %1366 = vmatprep.subr.mxu0 0.0
        %1367 = vmatpush2.msra.mxu0 0.0
        %1368 = vmatprep.subr.mxu0 0.0
        %1369 = vmatpush2.msra.mxu0 0.0
        %1370 = vmatprep.subr.mxu0 0.0
        %1371 = vmatpush2.msra.mxu0 0.0
        %1372 = vmatprep.subr.mxu0 0.0
        %1373 = vmatpush2.msra.mxu0 0.0
        %1374 = vmatprep.subr.mxu0 0.0
        %1375 = vmatpush2.msra.mxu0 0.0
        %1376 = vmatprep.mubr.f32.mxu0 0.0
        %v1377 = vand.u32 %v1036, 4294901760
        %v1378 = vsub.f32 %v1036, %v1377
        %1379 = vmatmul.mubr.f32.gmra.mxu0 %v1378
        %v1380 = vpop.f32.mrf.mxu0
        %v1381 = vadd.f32 %v1277, %v1380
        %v1382 = vpop.f32.mrf.mxu0
        %1383 = vdwg.mxu0
        %1384 = vmatprep.subr.mxu0 0.0
        %v1385 = vand.u32 %v382, 4294901760
        %1386 = vmatpush1.msra.mxu0 %v1385
        %1387 = vmatprep.subr.mxu0 0.0
        %v1388 = vand.u32 %v381, 4294901760
        %1389 = vmatpush1.msra.mxu0 %v1388
        %1390 = vmatprep.subr.mxu0 0.0
        %v1391 = vand.u32 %v380, 4294901760
        %1392 = vmatpush1.msra.mxu0 %v1391
        %1393 = vmatprep.subr.mxu0 0.0
        %v1394 = vand.u32 %v379, 4294901760
        %1395 = vmatpush1.msra.mxu0 %v1394
        %1396 = vmatprep.subr.mxu0 0.0
        %v1397 = vand.u32 %v378, 4294901760
        %1398 = vmatpush1.msra.mxu0 %v1397
        %1399 = vmatprep.subr.mxu0 0.0
        %v1400 = vand.u32 %v377, 4294901760
        %1401 = vmatpush1.msra.mxu0 %v1400
        %1402 = vmatprep.subr.mxu0 0.0
        %v1403 = vand.u32 %v376, 4294901760
        %1404 = vmatpush1.msra.mxu0 %v1403
        %1405 = vmatprep.subr.mxu0 0.0
        %v1406 = vand.u32 %v375, 4294901760
        %1407 = vmatpush1.msra.mxu0 %v1406
        %1408 = vmatprep.subr.mxu0 0.0
        %v1409 = vand.u32 %v374, 4294901760
        %1410 = vmatpush1.msra.mxu0 %v1409
        %1411 = vmatprep.subr.mxu0 0.0
        %v1412 = vand.u32 %v373, 4294901760
        %1413 = vmatpush1.msra.mxu0 %v1412
        %1414 = vmatprep.subr.mxu0 0.0
        %v1415 = vand.u32 %v372, 4294901760
        %1416 = vmatpush1.msra.mxu0 %v1415
        %1417 = vmatprep.subr.mxu0 0.0
        %v1418 = vand.u32 %v371, 4294901760
        %1419 = vmatpush1.msra.mxu0 %v1418
        %1420 = vmatprep.subr.mxu0 0.0
        %v1421 = vand.u32 %v370, 4294901760
        %1422 = vmatpush1.msra.mxu0 %v1421
        %1423 = vmatprep.subr.mxu0 0.0
        %v1424 = vand.u32 %v369, 4294901760
        %1425 = vmatpush1.msra.mxu0 %v1424
        %1426 = vmatprep.subr.mxu0 0.0
        %v1427 = vand.u32 %v368, 4294901760
        %1428 = vmatpush1.msra.mxu0 %v1427
        %1429 = vmatprep.subr.mxu0 0.0
        %v1430 = vand.u32 %v367, 4294901760
        %1431 = vmatpush1.msra.mxu0 %v1430
        %1432 = vmatprep.subr.mxu0 0.0
        %1433 = vmatpush2.msra.mxu0 0.0
        %1434 = vmatprep.subr.mxu0 0.0
        %1435 = vmatpush2.msra.mxu0 0.0
        %1436 = vmatprep.subr.mxu0 0.0
        %1437 = vmatpush2.msra.mxu0 0.0
        %1438 = vmatprep.subr.mxu0 0.0
        %1439 = vmatpush2.msra.mxu0 0.0
        %1440 = vmatprep.subr.mxu0 0.0
        %1441 = vmatpush2.msra.mxu0 0.0
        %1442 = vmatprep.subr.mxu0 0.0
        %1443 = vmatpush2.msra.mxu0 0.0
        %1444 = vmatprep.subr.mxu0 0.0
        %1445 = vmatpush2.msra.mxu0 0.0
        %1446 = vmatprep.subr.mxu0 0.0
        %1447 = vmatpush2.msra.mxu0 0.0
        %1448 = vmatprep.subr.mxu0 0.0
        %1449 = vmatpush2.msra.mxu0 0.0
        %1450 = vmatprep.subr.mxu0 0.0
        %1451 = vmatpush2.msra.mxu0 0.0
        %1452 = vmatprep.subr.mxu0 0.0
        %1453 = vmatpush2.msra.mxu0 0.0
        %1454 = vmatprep.subr.mxu0 0.0
        %1455 = vmatpush2.msra.mxu0 0.0
        %1456 = vmatprep.subr.mxu0 0.0
        %1457 = vmatpush2.msra.mxu0 0.0
        %1458 = vmatprep.subr.mxu0 0.0
        %1459 = vmatpush2.msra.mxu0 0.0
        %1460 = vmatprep.subr.mxu0 0.0
        %1461 = vmatpush2.msra.mxu0 0.0
        %1462 = vmatprep.subr.mxu0 0.0
        %1463 = vmatpush2.msra.mxu0 0.0
        %1464 = vmatprep.mubr.f32.mxu0 0.0
        %v1465 = vand.u32 %v1036, 4294901760
        %v1466 = vsub.f32 %v1036, %v1465
        %v1467 = vand.u32 %v1466, 4294901760
        %1468 = vmatmul.mubr.f32.gmra.mxu0 %v1467
        %v1469 = vpop.f32.mrf.mxu0
        %v1470 = vadd.f32 %v1381, %v1469
        %v1471 = vpop.f32.mrf.mxu0
        %1472 = vdwg.mxu0
        %1473 = vmatprep.subr.mxu0 0.0
        %v1474 = vand.u32 %v382, 4294901760
        %v1475 = vsub.f32 %v382, %v1474
        %v1476 = vand.u32 %v1475, 4294901760
        %1477 = vmatpush1.msra.mxu0 %v1476
        %1478 = vmatprep.subr.mxu0 0.0
        %v1479 = vand.u32 %v381, 4294901760
        %v1480 = vsub.f32 %v381, %v1479
        %v1481 = vand.u32 %v1480, 4294901760
        %1482 = vmatpush1.msra.mxu0 %v1481
        %1483 = vmatprep.subr.mxu0 0.0
        %v1484 = vand.u32 %v380, 4294901760
        %v1485 = vsub.f32 %v380, %v1484
        %v1486 = vand.u32 %v1485, 4294901760
        %1487 = vmatpush1.msra.mxu0 %v1486
        %1488 = vmatprep.subr.mxu0 0.0
        %v1489 = vand.u32 %v379, 4294901760
        %v1490 = vsub.f32 %v379, %v1489
        %v1491 = vand.u32 %v1490, 4294901760
        %1492 = vmatpush1.msra.mxu0 %v1491
        %1493 = vmatprep.subr.mxu0 0.0
        %v1494 = vand.u32 %v378, 4294901760
        %v1495 = vsub.f32 %v378, %v1494
        %v1496 = vand.u32 %v1495, 4294901760
        %1497 = vmatpush1.msra.mxu0 %v1496
        %1498 = vmatprep.subr.mxu0 0.0
        %v1499 = vand.u32 %v377, 4294901760
        %v1500 = vsub.f32 %v377, %v1499
        %v1501 = vand.u32 %v1500, 4294901760
        %1502 = vmatpush1.msra.mxu0 %v1501
        %1503 = vmatprep.subr.mxu0 0.0
        %v1504 = vand.u32 %v376, 4294901760
        %v1505 = vsub.f32 %v376, %v1504
        %v1506 = vand.u32 %v1505, 4294901760
        %1507 = vmatpush1.msra.mxu0 %v1506
        %1508 = vmatprep.subr.mxu0 0.0
        %v1509 = vand.u32 %v375, 4294901760
        %v1510 = vsub.f32 %v375, %v1509
        %v1511 = vand.u32 %v1510, 4294901760
        %1512 = vmatpush1.msra.mxu0 %v1511
        %1513 = vmatprep.subr.mxu0 0.0
        %v1514 = vand.u32 %v374, 4294901760
        %v1515 = vsub.f32 %v374, %v1514
        %v1516 = vand.u32 %v1515, 4294901760
        %1517 = vmatpush1.msra.mxu0 %v1516
        %1518 = vmatprep.subr.mxu0 0.0
        %v1519 = vand.u32 %v373, 4294901760
        %v1520 = vsub.f32 %v373, %v1519
        %v1521 = vand.u32 %v1520, 4294901760
        %1522 = vmatpush1.msra.mxu0 %v1521
        %1523 = vmatprep.subr.mxu0 0.0
        %v1524 = vand.u32 %v372, 4294901760
        %v1525 = vsub.f32 %v372, %v1524
        %v1526 = vand.u32 %v1525, 4294901760
        %1527 = vmatpush1.msra.mxu0 %v1526
        %1528 = vmatprep.subr.mxu0 0.0
        %v1529 = vand.u32 %v371, 4294901760
        %v1530 = vsub.f32 %v371, %v1529
        %v1531 = vand.u32 %v1530, 4294901760
        %1532 = vmatpush1.msra.mxu0 %v1531
        %1533 = vmatprep.subr.mxu0 0.0
        %v1534 = vand.u32 %v370, 4294901760
        %v1535 = vsub.f32 %v370, %v1534
        %v1536 = vand.u32 %v1535, 4294901760
        %1537 = vmatpush1.msra.mxu0 %v1536
        %1538 = vmatprep.subr.mxu0 0.0
        %v1539 = vand.u32 %v369, 4294901760
        %v1540 = vsub.f32 %v369, %v1539
        %v1541 = vand.u32 %v1540, 4294901760
        %1542 = vmatpush1.msra.mxu0 %v1541
        %1543 = vmatprep.subr.mxu0 0.0
        %v1544 = vand.u32 %v368, 4294901760
        %v1545 = vsub.f32 %v368, %v1544
        %v1546 = vand.u32 %v1545, 4294901760
        %1547 = vmatpush1.msra.mxu0 %v1546
        %1548 = vmatprep.subr.mxu0 0.0
        %v1549 = vand.u32 %v367, 4294901760
        %v1550 = vsub.f32 %v367, %v1549
        %v1551 = vand.u32 %v1550, 4294901760
        %1552 = vmatpush1.msra.mxu0 %v1551
        %1553 = vmatprep.subr.mxu0 0.0
        %1554 = vmatpush2.msra.mxu0 0.0
        %1555 = vmatprep.subr.mxu0 0.0
        %1556 = vmatpush2.msra.mxu0 0.0
        %1557 = vmatprep.subr.mxu0 0.0
        %1558 = vmatpush2.msra.mxu0 0.0
        %1559 = vmatprep.subr.mxu0 0.0
        %1560 = vmatpush2.msra.mxu0 0.0
        %1561 = vmatprep.subr.mxu0 0.0
        %1562 = vmatpush2.msra.mxu0 0.0
        %1563 = vmatprep.subr.mxu0 0.0
        %1564 = vmatpush2.msra.mxu0 0.0
        %1565 = vmatprep.subr.mxu0 0.0
        %1566 = vmatpush2.msra.mxu0 0.0
        %1567 = vmatprep.subr.mxu0 0.0
        %1568 = vmatpush2.msra.mxu0 0.0
        %1569 = vmatprep.subr.mxu0 0.0
        %1570 = vmatpush2.msra.mxu0 0.0
        %1571 = vmatprep.subr.mxu0 0.0
        %1572 = vmatpush2.msra.mxu0 0.0
        %1573 = vmatprep.subr.mxu0 0.0
        %1574 = vmatpush2.msra.mxu0 0.0
        %1575 = vmatprep.subr.mxu0 0.0
        %1576 = vmatpush2.msra.mxu0 0.0
        %1577 = vmatprep.subr.mxu0 0.0
        %1578 = vmatpush2.msra.mxu0 0.0
        %1579 = vmatprep.subr.mxu0 0.0
        %1580 = vmatpush2.msra.mxu0 0.0
        %1581 = vmatprep.subr.mxu0 0.0
        %1582 = vmatpush2.msra.mxu0 0.0
        %1583 = vmatprep.subr.mxu0 0.0
        %1584 = vmatpush2.msra.mxu0 0.0
        %1585 = vmatprep.mubr.f32.mxu0 0.0
        %v1586 = vand.u32 %v1036, 4294901760
        %1587 = vmatmul.mubr.f32.gmra.mxu0 %v1586
        %v1588 = vpop.f32.mrf.mxu0
        %v1589 = vadd.f32 %v1470, %v1588
        %v1590 = vpop.f32.mrf.mxu0
        %1591 = vdwg.mxu0
        %1592 = vmatprep.subr.mxu0 0.0
        %v1593 = vand.u32 %v382, 4294901760
        %1594 = vmatpush1.msra.mxu0 %v1593
        %1595 = vmatprep.subr.mxu0 0.0
        %v1596 = vand.u32 %v381, 4294901760
        %1597 = vmatpush1.msra.mxu0 %v1596
        %1598 = vmatprep.subr.mxu0 0.0
        %v1599 = vand.u32 %v380, 4294901760
        %1600 = vmatpush1.msra.mxu0 %v1599
        %1601 = vmatprep.subr.mxu0 0.0
        %v1602 = vand.u32 %v379, 4294901760
        %1603 = vmatpush1.msra.mxu0 %v1602
        %1604 = vmatprep.subr.mxu0 0.0
        %v1605 = vand.u32 %v378, 4294901760
        %1606 = vmatpush1.msra.mxu0 %v1605
        %1607 = vmatprep.subr.mxu0 0.0
        %v1608 = vand.u32 %v377, 4294901760
        %1609 = vmatpush1.msra.mxu0 %v1608
        %1610 = vmatprep.subr.mxu0 0.0
        %v1611 = vand.u32 %v376, 4294901760
        %1612 = vmatpush1.msra.mxu0 %v1611
        %1613 = vmatprep.subr.mxu0 0.0
        %v1614 = vand.u32 %v375, 4294901760
        %1615 = vmatpush1.msra.mxu0 %v1614
        %1616 = vmatprep.subr.mxu0 0.0
        %v1617 = vand.u32 %v374, 4294901760
        %1618 = vmatpush1.msra.mxu0 %v1617
        %1619 = vmatprep.subr.mxu0 0.0
        %v1620 = vand.u32 %v373, 4294901760
        %1621 = vmatpush1.msra.mxu0 %v1620
        %1622 = vmatprep.subr.mxu0 0.0
        %v1623 = vand.u32 %v372, 4294901760
        %1624 = vmatpush1.msra.mxu0 %v1623
        %1625 = vmatprep.subr.mxu0 0.0
        %v1626 = vand.u32 %v371, 4294901760
        %1627 = vmatpush1.msra.mxu0 %v1626
        %1628 = vmatprep.subr.mxu0 0.0
        %v1629 = vand.u32 %v370, 4294901760
        %1630 = vmatpush1.msra.mxu0 %v1629
        %1631 = vmatprep.subr.mxu0 0.0
        %v1632 = vand.u32 %v369, 4294901760
        %1633 = vmatpush1.msra.mxu0 %v1632
        %1634 = vmatprep.subr.mxu0 0.0
        %v1635 = vand.u32 %v368, 4294901760
        %1636 = vmatpush1.msra.mxu0 %v1635
        %1637 = vmatprep.subr.mxu0 0.0
        %v1638 = vand.u32 %v367, 4294901760
        %1639 = vmatpush1.msra.mxu0 %v1638
        %1640 = vmatprep.subr.mxu0 0.0
        %1641 = vmatpush2.msra.mxu0 0.0
        %1642 = vmatprep.subr.mxu0 0.0
        %1643 = vmatpush2.msra.mxu0 0.0
        %1644 = vmatprep.subr.mxu0 0.0
        %1645 = vmatpush2.msra.mxu0 0.0
        %1646 = vmatprep.subr.mxu0 0.0
        %1647 = vmatpush2.msra.mxu0 0.0
        %1648 = vmatprep.subr.mxu0 0.0
        %1649 = vmatpush2.msra.mxu0 0.0
        %1650 = vmatprep.subr.mxu0 0.0
        %1651 = vmatpush2.msra.mxu0 0.0
        %1652 = vmatprep.subr.mxu0 0.0
        %1653 = vmatpush2.msra.mxu0 0.0
        %1654 = vmatprep.subr.mxu0 0.0
        %1655 = vmatpush2.msra.mxu0 0.0
        %1656 = vmatprep.subr.mxu0 0.0
        %1657 = vmatpush2.msra.mxu0 0.0
        %1658 = vmatprep.subr.mxu0 0.0
        %1659 = vmatpush2.msra.mxu0 0.0
        %1660 = vmatprep.subr.mxu0 0.0
        %1661 = vmatpush2.msra.mxu0 0.0
        %1662 = vmatprep.subr.mxu0 0.0
        %1663 = vmatpush2.msra.mxu0 0.0
        %1664 = vmatprep.subr.mxu0 0.0
        %1665 = vmatpush2.msra.mxu0 0.0
        %1666 = vmatprep.subr.mxu0 0.0
        %1667 = vmatpush2.msra.mxu0 0.0
        %1668 = vmatprep.subr.mxu0 0.0
        %1669 = vmatpush2.msra.mxu0 0.0
        %1670 = vmatprep.subr.mxu0 0.0
        %1671 = vmatpush2.msra.mxu0 0.0
        %1672 = vmatprep.mubr.f32.mxu0 0.0
        %v1673 = vand.u32 %v1036, 4294901760
        %1674 = vmatmul.mubr.f32.gmra.mxu0 %v1673
        %v1675 = vpop.f32.mrf.mxu0
        %v1676 = vadd.f32 %v1589, %v1675
        %v1677 = vpop.f32.mrf.mxu0
        %1678 = vdwg.mxu0
        %v1679 = vld [vmem:[#allocation7] sm:$0xff]
        %v1680 = vld [vmem:[#allocation7 + $0x8] sm:$0xff]
        %v1681 = vld [vmem:[#allocation7 + $0x10] sm:$0xff]
        %v1682 = vld [vmem:[#allocation7 + $0x18] sm:$0xff]
        %v1683 = vld [vmem:[#allocation7 + $0x20] sm:$0xff]
        %v1684 = vld [vmem:[#allocation7 + $0x28] sm:$0xff]
        %v1685 = vld [vmem:[#allocation7 + $0x30] sm:$0xff]
        %v1686 = vld [vmem:[#allocation7 + $0x38] sm:$0xff]
        %v1687 = vld [vmem:[#allocation7 + $0x40] sm:$0xff]
        %v1688 = vld [vmem:[#allocation7 + $0x48] sm:$0xff]
        %v1689 = vld [vmem:[#allocation7 + $0x50] sm:$0xff]
        %v1690 = vld [vmem:[#allocation7 + $0x58] sm:$0xff]
        %v1691 = vld [vmem:[#allocation7 + $0x60] sm:$0xff]
        %v1692 = vld [vmem:[#allocation7 + $0x68] sm:$0xff]
        %v1693 = vld [vmem:[#allocation7 + $0x70] sm:$0xff]
        %v1694 = vld [vmem:[#allocation7 + $0x78] sm:$0xff]
        %v1695 = vld [vmem:[#allocation8] sm:$0xff]
        %v1696 = vld [vmem:[#allocation8 + $0x8] sm:$0xff]
        %v1697 = vld [vmem:[#allocation8 + $0x10] sm:$0xff]
        %v1698 = vld [vmem:[#allocation8 + $0x18] sm:$0xff]
        %v1699 = vld [vmem:[#allocation8 + $0x20] sm:$0xff]
        %v1700 = vld [vmem:[#allocation8 + $0x28] sm:$0xff]
        %v1701 = vld [vmem:[#allocation8 + $0x30] sm:$0xff]
        %v1702 = vld [vmem:[#allocation8 + $0x38] sm:$0xff]
        %v1703 = vld [vmem:[#allocation8 + $0x40] sm:$0xff]
        %v1704 = vld [vmem:[#allocation8 + $0x48] sm:$0xff]
        %v1705 = vld [vmem:[#allocation8 + $0x50] sm:$0xff]
        %v1706 = vld [vmem:[#allocation8 + $0x58] sm:$0xff]
        %v1707 = vld [vmem:[#allocation8 + $0x60] sm:$0xff]
        %v1708 = vld [vmem:[#allocation8 + $0x68] sm:$0xff]
        %v1709 = vld [vmem:[#allocation8 + $0x70] sm:$0xff]
        %v1710 = vld [vmem:[#allocation8 + $0x78] sm:$0xff]
        %1711 = vmatprep.subr.mxu0 0.0
        %v1712 = vand.u32 %v1710, 4294901760
        %1713 = vmatpush1.msra.mxu0 %v1712
        %1714 = vmatprep.subr.mxu0 0.0
        %v1715 = vand.u32 %v1709, 4294901760
        %1716 = vmatpush1.msra.mxu0 %v1715
        %1717 = vmatprep.subr.mxu0 0.0
        %v1718 = vand.u32 %v1708, 4294901760
        %1719 = vmatpush1.msra.mxu0 %v1718
        %1720 = vmatprep.subr.mxu0 0.0
        %v1721 = vand.u32 %v1707, 4294901760
        %1722 = vmatpush1.msra.mxu0 %v1721
        %1723 = vmatprep.subr.mxu0 0.0
        %v1724 = vand.u32 %v1706, 4294901760
        %1725 = vmatpush1.msra.mxu0 %v1724
        %1726 = vmatprep.subr.mxu0 0.0
        %v1727 = vand.u32 %v1705, 4294901760
        %1728 = vmatpush1.msra.mxu0 %v1727
        %1729 = vmatprep.subr.mxu0 0.0
        %v1730 = vand.u32 %v1704, 4294901760
        %1731 = vmatpush1.msra.mxu0 %v1730
        %1732 = vmatprep.subr.mxu0 0.0
        %v1733 = vand.u32 %v1703, 4294901760
        %1734 = vmatpush1.msra.mxu0 %v1733
        %1735 = vmatprep.subr.mxu0 0.0
        %v1736 = vand.u32 %v1702, 4294901760
        %1737 = vmatpush1.msra.mxu0 %v1736
        %1738 = vmatprep.subr.mxu0 0.0
        %v1739 = vand.u32 %v1701, 4294901760
        %1740 = vmatpush1.msra.mxu0 %v1739
        %1741 = vmatprep.subr.mxu0 0.0
        %v1742 = vand.u32 %v1700, 4294901760
        %1743 = vmatpush1.msra.mxu0 %v1742
        %1744 = vmatprep.subr.mxu0 0.0
        %v1745 = vand.u32 %v1699, 4294901760
        %1746 = vmatpush1.msra.mxu0 %v1745
        %1747 = vmatprep.subr.mxu0 0.0
        %v1748 = vand.u32 %v1698, 4294901760
        %1749 = vmatpush1.msra.mxu0 %v1748
        %1750 = vmatprep.subr.mxu0 0.0
        %v1751 = vand.u32 %v1697, 4294901760
        %1752 = vmatpush1.msra.mxu0 %v1751
        %1753 = vmatprep.subr.mxu0 0.0
        %v1754 = vand.u32 %v1696, 4294901760
        %1755 = vmatpush1.msra.mxu0 %v1754
        %1756 = vmatprep.subr.mxu0 0.0
        %v1757 = vand.u32 %v1695, 4294901760
        %1758 = vmatpush1.msra.mxu0 %v1757
        %1759 = vmatprep.subr.mxu0 0.0
        %1760 = vmatpush2.msra.mxu0 0.0
        %1761 = vmatprep.subr.mxu0 0.0
        %1762 = vmatpush2.msra.mxu0 0.0
        %1763 = vmatprep.subr.mxu0 0.0
        %1764 = vmatpush2.msra.mxu0 0.0
        %1765 = vmatprep.subr.mxu0 0.0
        %1766 = vmatpush2.msra.mxu0 0.0
        %1767 = vmatprep.subr.mxu0 0.0
        %1768 = vmatpush2.msra.mxu0 0.0
        %1769 = vmatprep.subr.mxu0 0.0
        %1770 = vmatpush2.msra.mxu0 0.0
        %1771 = vmatprep.subr.mxu0 0.0
        %1772 = vmatpush2.msra.mxu0 0.0
        %1773 = vmatprep.subr.mxu0 0.0
        %1774 = vmatpush2.msra.mxu0 0.0
        %1775 = vmatprep.subr.mxu0 0.0
        %1776 = vmatpush2.msra.mxu0 0.0
        %1777 = vmatprep.subr.mxu0 0.0
        %1778 = vmatpush2.msra.mxu0 0.0
        %1779 = vmatprep.subr.mxu0 0.0
        %1780 = vmatpush2.msra.mxu0 0.0
        %1781 = vmatprep.subr.mxu0 0.0
        %1782 = vmatpush2.msra.mxu0 0.0
        %1783 = vmatprep.subr.mxu0 0.0
        %1784 = vmatpush2.msra.mxu0 0.0
        %1785 = vmatprep.subr.mxu0 0.0
        %1786 = vmatpush2.msra.mxu0 0.0
        %1787 = vmatprep.subr.mxu0 0.0
        %1788 = vmatpush2.msra.mxu0 0.0
        %1789 = vmatprep.subr.mxu0 0.0
        %1790 = vmatpush2.msra.mxu0 0.0
        %1791 = vmatprep.mubr.f32.mxu0 0.0
        %v1792 = vand.u32 %v366, 4294901760
        %v1793 = vsub.f32 %v366, %v1792
        %v1794 = vand.u32 %v1793, 4294901760
        %v1795 = vsub.f32 %v1793, %v1794
        %v1796 = vand.u32 %v1795, 4294901760
        %1797 = vmatmul.mubr.f32.gmra.mxu0 %v1796
        %v1798 = vpop.f32.mrf.mxu0
        %v1799 = vadd.f32 0.0, %v1798
        %v1800 = vpop.f32.mrf.mxu0
        %1801 = vdwg.mxu0
        %1802 = vmatprep.subr.mxu0 0.0
        %v1803 = vand.u32 %v1710, 4294901760
        %v1804 = vsub.f32 %v1710, %v1803
        %v1805 = vand.u32 %v1804, 4294901760
        %v1806 = vsub.f32 %v1804, %v1805
        %v1807 = vand.u32 %v1806, 4294901760
        %1808 = vmatpush1.msra.mxu0 %v1807
        %1809 = vmatprep.subr.mxu0 0.0
        %v1810 = vand.u32 %v1709, 4294901760
        %v1811 = vsub.f32 %v1709, %v1810
        %v1812 = vand.u32 %v1811, 4294901760
        %v1813 = vsub.f32 %v1811, %v1812
        %v1814 = vand.u32 %v1813, 4294901760
        %1815 = vmatpush1.msra.mxu0 %v1814
        %1816 = vmatprep.subr.mxu0 0.0
        %v1817 = vand.u32 %v1708, 4294901760
        %v1818 = vsub.f32 %v1708, %v1817
        %v1819 = vand.u32 %v1818, 4294901760
        %v1820 = vsub.f32 %v1818, %v1819
        %v1821 = vand.u32 %v1820, 4294901760
        %1822 = vmatpush1.msra.mxu0 %v1821
        %1823 = vmatprep.subr.mxu0 0.0
        %v1824 = vand.u32 %v1707, 4294901760
        %v1825 = vsub.f32 %v1707, %v1824
        %v1826 = vand.u32 %v1825, 4294901760
        %v1827 = vsub.f32 %v1825, %v1826
        %v1828 = vand.u32 %v1827, 4294901760
        %1829 = vmatpush1.msra.mxu0 %v1828
        %1830 = vmatprep.subr.mxu0 0.0
        %v1831 = vand.u32 %v1706, 4294901760
        %v1832 = vsub.f32 %v1706, %v1831
        %v1833 = vand.u32 %v1832, 4294901760
        %v1834 = vsub.f32 %v1832, %v1833
        %v1835 = vand.u32 %v1834, 4294901760
        %1836 = vmatpush1.msra.mxu0 %v1835
        %1837 = vmatprep.subr.mxu0 0.0
        %v1838 = vand.u32 %v1705, 4294901760
        %v1839 = vsub.f32 %v1705, %v1838
        %v1840 = vand.u32 %v1839, 4294901760
        %v1841 = vsub.f32 %v1839, %v1840
        %v1842 = vand.u32 %v1841, 4294901760
        %1843 = vmatpush1.msra.mxu0 %v1842
        %1844 = vmatprep.subr.mxu0 0.0
        %v1845 = vand.u32 %v1704, 4294901760
        %v1846 = vsub.f32 %v1704, %v1845
        %v1847 = vand.u32 %v1846, 4294901760
        %v1848 = vsub.f32 %v1846, %v1847
        %v1849 = vand.u32 %v1848, 4294901760
        %1850 = vmatpush1.msra.mxu0 %v1849
        %1851 = vmatprep.subr.mxu0 0.0
        %v1852 = vand.u32 %v1703, 4294901760
        %v1853 = vsub.f32 %v1703, %v1852
        %v1854 = vand.u32 %v1853, 4294901760
        %v1855 = vsub.f32 %v1853, %v1854
        %v1856 = vand.u32 %v1855, 4294901760
        %1857 = vmatpush1.msra.mxu0 %v1856
        %1858 = vmatprep.subr.mxu0 0.0
        %v1859 = vand.u32 %v1702, 4294901760
        %v1860 = vsub.f32 %v1702, %v1859
        %v1861 = vand.u32 %v1860, 4294901760
        %v1862 = vsub.f32 %v1860, %v1861
        %v1863 = vand.u32 %v1862, 4294901760
        %1864 = vmatpush1.msra.mxu0 %v1863
        %1865 = vmatprep.subr.mxu0 0.0
        %v1866 = vand.u32 %v1701, 4294901760
        %v1867 = vsub.f32 %v1701, %v1866
        %v1868 = vand.u32 %v1867, 4294901760
        %v1869 = vsub.f32 %v1867, %v1868
        %v1870 = vand.u32 %v1869, 4294901760
        %1871 = vmatpush1.msra.mxu0 %v1870
        %1872 = vmatprep.subr.mxu0 0.0
        %v1873 = vand.u32 %v1700, 4294901760
        %v1874 = vsub.f32 %v1700, %v1873
        %v1875 = vand.u32 %v1874, 4294901760
        %v1876 = vsub.f32 %v1874, %v1875
        %v1877 = vand.u32 %v1876, 4294901760
        %1878 = vmatpush1.msra.mxu0 %v1877
        %1879 = vmatprep.subr.mxu0 0.0
        %v1880 = vand.u32 %v1699, 4294901760
        %v1881 = vsub.f32 %v1699, %v1880
        %v1882 = vand.u32 %v1881, 4294901760
        %v1883 = vsub.f32 %v1881, %v1882
        %v1884 = vand.u32 %v1883, 4294901760
        %1885 = vmatpush1.msra.mxu0 %v1884
        %1886 = vmatprep.subr.mxu0 0.0
        %v1887 = vand.u32 %v1698, 4294901760
        %v1888 = vsub.f32 %v1698, %v1887
        %v1889 = vand.u32 %v1888, 4294901760
        %v1890 = vsub.f32 %v1888, %v1889
        %v1891 = vand.u32 %v1890, 4294901760
        %1892 = vmatpush1.msra.mxu0 %v1891
        %1893 = vmatprep.subr.mxu0 0.0
        %v1894 = vand.u32 %v1697, 4294901760
        %v1895 = vsub.f32 %v1697, %v1894
        %v1896 = vand.u32 %v1895, 4294901760
        %v1897 = vsub.f32 %v1895, %v1896
        %v1898 = vand.u32 %v1897, 4294901760
        %1899 = vmatpush1.msra.mxu0 %v1898
        %1900 = vmatprep.subr.mxu0 0.0
        %v1901 = vand.u32 %v1696, 4294901760
        %v1902 = vsub.f32 %v1696, %v1901
        %v1903 = vand.u32 %v1902, 4294901760
        %v1904 = vsub.f32 %v1902, %v1903
        %v1905 = vand.u32 %v1904, 4294901760
        %1906 = vmatpush1.msra.mxu0 %v1905
        %1907 = vmatprep.subr.mxu0 0.0
        %v1908 = vand.u32 %v1695, 4294901760
        %v1909 = vsub.f32 %v1695, %v1908
        %v1910 = vand.u32 %v1909, 4294901760
        %v1911 = vsub.f32 %v1909, %v1910
        %v1912 = vand.u32 %v1911, 4294901760
        %1913 = vmatpush1.msra.mxu0 %v1912
        %1914 = vmatprep.subr.mxu0 0.0
        %1915 = vmatpush2.msra.mxu0 0.0
        %1916 = vmatprep.subr.mxu0 0.0
        %1917 = vmatpush2.msra.mxu0 0.0
        %1918 = vmatprep.subr.mxu0 0.0
        %1919 = vmatpush2.msra.mxu0 0.0
        %1920 = vmatprep.subr.mxu0 0.0
        %1921 = vmatpush2.msra.mxu0 0.0
        %1922 = vmatprep.subr.mxu0 0.0
        %1923 = vmatpush2.msra.mxu0 0.0
        %1924 = vmatprep.subr.mxu0 0.0
        %1925 = vmatpush2.msra.mxu0 0.0
        %1926 = vmatprep.subr.mxu0 0.0
        %1927 = vmatpush2.msra.mxu0 0.0
        %1928 = vmatprep.subr.mxu0 0.0
        %1929 = vmatpush2.msra.mxu0 0.0
        %1930 = vmatprep.subr.mxu0 0.0
        %1931 = vmatpush2.msra.mxu0 0.0
        %1932 = vmatprep.subr.mxu0 0.0
        %1933 = vmatpush2.msra.mxu0 0.0
        %1934 = vmatprep.subr.mxu0 0.0
        %1935 = vmatpush2.msra.mxu0 0.0
        %1936 = vmatprep.subr.mxu0 0.0
        %1937 = vmatpush2.msra.mxu0 0.0
        %1938 = vmatprep.subr.mxu0 0.0
        %1939 = vmatpush2.msra.mxu0 0.0
        %1940 = vmatprep.subr.mxu0 0.0
        %1941 = vmatpush2.msra.mxu0 0.0
        %1942 = vmatprep.subr.mxu0 0.0
        %1943 = vmatpush2.msra.mxu0 0.0
        %1944 = vmatprep.subr.mxu0 0.0
        %1945 = vmatpush2.msra.mxu0 0.0
        %1946 = vmatprep.mubr.f32.mxu0 0.0
        %v1947 = vand.u32 %v366, 4294901760
        %1948 = vmatmul.mubr.f32.gmra.mxu0 %v1947
        %v1949 = vpop.f32.mrf.mxu0
        %v1950 = vadd.f32 %v1799, %v1949
        %v1951 = vpop.f32.mrf.mxu0
        %1952 = vdwg.mxu0
        %1953 = vmatprep.subr.mxu0 0.0
        %v1954 = vand.u32 %v1710, 4294901760
        %v1955 = vsub.f32 %v1710, %v1954
        %1956 = vmatpush1.msra.mxu0 %v1955
        %1957 = vmatprep.subr.mxu0 0.0
        %v1958 = vand.u32 %v1709, 4294901760
        %v1959 = vsub.f32 %v1709, %v1958
        %1960 = vmatpush1.msra.mxu0 %v1959
        %1961 = vmatprep.subr.mxu0 0.0
        %v1962 = vand.u32 %v1708, 4294901760
        %v1963 = vsub.f32 %v1708, %v1962
        %1964 = vmatpush1.msra.mxu0 %v1963
        %1965 = vmatprep.subr.mxu0 0.0
        %v1966 = vand.u32 %v1707, 4294901760
        %v1967 = vsub.f32 %v1707, %v1966
        %1968 = vmatpush1.msra.mxu0 %v1967
        %1969 = vmatprep.subr.mxu0 0.0
        %v1970 = vand.u32 %v1706, 4294901760
        %v1971 = vsub.f32 %v1706, %v1970
        %1972 = vmatpush1.msra.mxu0 %v1971
        %1973 = vmatprep.subr.mxu0 0.0
        %v1974 = vand.u32 %v1705, 4294901760
        %v1975 = vsub.f32 %v1705, %v1974
        %1976 = vmatpush1.msra.mxu0 %v1975
        %1977 = vmatprep.subr.mxu0 0.0
        %v1978 = vand.u32 %v1704, 4294901760
        %v1979 = vsub.f32 %v1704, %v1978
        %1980 = vmatpush1.msra.mxu0 %v1979
        %1981 = vmatprep.subr.mxu0 0.0
        %v1982 = vand.u32 %v1703, 4294901760
        %v1983 = vsub.f32 %v1703, %v1982
        %1984 = vmatpush1.msra.mxu0 %v1983
        %1985 = vmatprep.subr.mxu0 0.0
        %v1986 = vand.u32 %v1702, 4294901760
        %v1987 = vsub.f32 %v1702, %v1986
        %1988 = vmatpush1.msra.mxu0 %v1987
        %1989 = vmatprep.subr.mxu0 0.0
        %v1990 = vand.u32 %v1701, 4294901760
        %v1991 = vsub.f32 %v1701, %v1990
        %1992 = vmatpush1.msra.mxu0 %v1991
        %1993 = vmatprep.subr.mxu0 0.0
        %v1994 = vand.u32 %v1700, 4294901760
        %v1995 = vsub.f32 %v1700, %v1994
        %1996 = vmatpush1.msra.mxu0 %v1995
        %1997 = vmatprep.subr.mxu0 0.0
        %v1998 = vand.u32 %v1699, 4294901760
        %v1999 = vsub.f32 %v1699, %v1998
        %2000 = vmatpush1.msra.mxu0 %v1999
        %2001 = vmatprep.subr.mxu0 0.0
        %v2002 = vand.u32 %v1698, 4294901760
        %v2003 = vsub.f32 %v1698, %v2002
        %2004 = vmatpush1.msra.mxu0 %v2003
        %2005 = vmatprep.subr.mxu0 0.0
        %v2006 = vand.u32 %v1697, 4294901760
        %v2007 = vsub.f32 %v1697, %v2006
        %2008 = vmatpush1.msra.mxu0 %v2007
        %2009 = vmatprep.subr.mxu0 0.0
        %v2010 = vand.u32 %v1696, 4294901760
        %v2011 = vsub.f32 %v1696, %v2010
        %2012 = vmatpush1.msra.mxu0 %v2011
        %2013 = vmatprep.subr.mxu0 0.0
        %v2014 = vand.u32 %v1695, 4294901760
        %v2015 = vsub.f32 %v1695, %v2014
        %2016 = vmatpush1.msra.mxu0 %v2015
        %2017 = vmatprep.subr.mxu0 0.0
        %2018 = vmatpush2.msra.mxu0 0.0
        %2019 = vmatprep.subr.mxu0 0.0
        %2020 = vmatpush2.msra.mxu0 0.0
        %2021 = vmatprep.subr.mxu0 0.0
        %2022 = vmatpush2.msra.mxu0 0.0
        %2023 = vmatprep.subr.mxu0 0.0
        %2024 = vmatpush2.msra.mxu0 0.0
        %2025 = vmatprep.subr.mxu0 0.0
        %2026 = vmatpush2.msra.mxu0 0.0
        %2027 = vmatprep.subr.mxu0 0.0
        %2028 = vmatpush2.msra.mxu0 0.0
        %2029 = vmatprep.subr.mxu0 0.0
        %2030 = vmatpush2.msra.mxu0 0.0
        %2031 = vmatprep.subr.mxu0 0.0
        %2032 = vmatpush2.msra.mxu0 0.0
        %2033 = vmatprep.subr.mxu0 0.0
        %2034 = vmatpush2.msra.mxu0 0.0
        %2035 = vmatprep.subr.mxu0 0.0
        %2036 = vmatpush2.msra.mxu0 0.0
        %2037 = vmatprep.subr.mxu0 0.0
        %2038 = vmatpush2.msra.mxu0 0.0
        %2039 = vmatprep.subr.mxu0 0.0
        %2040 = vmatpush2.msra.mxu0 0.0
        %2041 = vmatprep.subr.mxu0 0.0
        %2042 = vmatpush2.msra.mxu0 0.0
        %2043 = vmatprep.subr.mxu0 0.0
        %2044 = vmatpush2.msra.mxu0 0.0
        %2045 = vmatprep.subr.mxu0 0.0
        %2046 = vmatpush2.msra.mxu0 0.0
        %2047 = vmatprep.subr.mxu0 0.0
        %2048 = vmatpush2.msra.mxu0 0.0
        %2049 = vmatprep.mubr.f32.mxu0 0.0
        %v2050 = vand.u32 %v366, 4294901760
        %v2051 = vsub.f32 %v366, %v2050
        %2052 = vmatmul.mubr.f32.gmra.mxu0 %v2051
        %v2053 = vpop.f32.mrf.mxu0
        %v2054 = vadd.f32 %v1950, %v2053
        %v2055 = vpop.f32.mrf.mxu0
        %2056 = vdwg.mxu0
        %2057 = vmatprep.subr.mxu0 0.0
        %v2058 = vand.u32 %v1710, 4294901760
        %2059 = vmatpush1.msra.mxu0 %v2058
        %2060 = vmatprep.subr.mxu0 0.0
        %v2061 = vand.u32 %v1709, 4294901760
        %2062 = vmatpush1.msra.mxu0 %v2061
        %2063 = vmatprep.subr.mxu0 0.0
        %v2064 = vand.u32 %v1708, 4294901760
        %2065 = vmatpush1.msra.mxu0 %v2064
        %2066 = vmatprep.subr.mxu0 0.0
        %v2067 = vand.u32 %v1707, 4294901760
        %2068 = vmatpush1.msra.mxu0 %v2067
        %2069 = vmatprep.subr.mxu0 0.0
        %v2070 = vand.u32 %v1706, 4294901760
        %2071 = vmatpush1.msra.mxu0 %v2070
        %2072 = vmatprep.subr.mxu0 0.0
        %v2073 = vand.u32 %v1705, 4294901760
        %2074 = vmatpush1.msra.mxu0 %v2073
        %2075 = vmatprep.subr.mxu0 0.0
        %v2076 = vand.u32 %v1704, 4294901760
        %2077 = vmatpush1.msra.mxu0 %v2076
        %2078 = vmatprep.subr.mxu0 0.0
        %v2079 = vand.u32 %v1703, 4294901760
        %2080 = vmatpush1.msra.mxu0 %v2079
        %2081 = vmatprep.subr.mxu0 0.0
        %v2082 = vand.u32 %v1702, 4294901760
        %2083 = vmatpush1.msra.mxu0 %v2082
        %2084 = vmatprep.subr.mxu0 0.0
        %v2085 = vand.u32 %v1701, 4294901760
        %2086 = vmatpush1.msra.mxu0 %v2085
        %2087 = vmatprep.subr.mxu0 0.0
        %v2088 = vand.u32 %v1700, 4294901760
        %2089 = vmatpush1.msra.mxu0 %v2088
        %2090 = vmatprep.subr.mxu0 0.0
        %v2091 = vand.u32 %v1699, 4294901760
        %2092 = vmatpush1.msra.mxu0 %v2091
        %2093 = vmatprep.subr.mxu0 0.0
        %v2094 = vand.u32 %v1698, 4294901760
        %2095 = vmatpush1.msra.mxu0 %v2094
        %2096 = vmatprep.subr.mxu0 0.0
        %v2097 = vand.u32 %v1697, 4294901760
        %2098 = vmatpush1.msra.mxu0 %v2097
        %2099 = vmatprep.subr.mxu0 0.0
        %v2100 = vand.u32 %v1696, 4294901760
        %2101 = vmatpush1.msra.mxu0 %v2100
        %2102 = vmatprep.subr.mxu0 0.0
        %v2103 = vand.u32 %v1695, 4294901760
        %2104 = vmatpush1.msra.mxu0 %v2103
        %2105 = vmatprep.subr.mxu0 0.0
        %2106 = vmatpush2.msra.mxu0 0.0
        %2107 = vmatprep.subr.mxu0 0.0
        %2108 = vmatpush2.msra.mxu0 0.0
        %2109 = vmatprep.subr.mxu0 0.0
        %2110 = vmatpush2.msra.mxu0 0.0
        %2111 = vmatprep.subr.mxu0 0.0
        %2112 = vmatpush2.msra.mxu0 0.0
        %2113 = vmatprep.subr.mxu0 0.0
        %2114 = vmatpush2.msra.mxu0 0.0
        %2115 = vmatprep.subr.mxu0 0.0
        %2116 = vmatpush2.msra.mxu0 0.0
        %2117 = vmatprep.subr.mxu0 0.0
        %2118 = vmatpush2.msra.mxu0 0.0
        %2119 = vmatprep.subr.mxu0 0.0
        %2120 = vmatpush2.msra.mxu0 0.0
        %2121 = vmatprep.subr.mxu0 0.0
        %2122 = vmatpush2.msra.mxu0 0.0
        %2123 = vmatprep.subr.mxu0 0.0
        %2124 = vmatpush2.msra.mxu0 0.0
        %2125 = vmatprep.subr.mxu0 0.0
        %2126 = vmatpush2.msra.mxu0 0.0
        %2127 = vmatprep.subr.mxu0 0.0
        %2128 = vmatpush2.msra.mxu0 0.0
        %2129 = vmatprep.subr.mxu0 0.0
        %2130 = vmatpush2.msra.mxu0 0.0
        %2131 = vmatprep.subr.mxu0 0.0
        %2132 = vmatpush2.msra.mxu0 0.0
        %2133 = vmatprep.subr.mxu0 0.0
        %2134 = vmatpush2.msra.mxu0 0.0
        %2135 = vmatprep.subr.mxu0 0.0
        %2136 = vmatpush2.msra.mxu0 0.0
        %2137 = vmatprep.mubr.f32.mxu0 0.0
        %v2138 = vand.u32 %v366, 4294901760
        %v2139 = vsub.f32 %v366, %v2138
        %v2140 = vand.u32 %v2139, 4294901760
        %2141 = vmatmul.mubr.f32.gmra.mxu0 %v2140
        %v2142 = vpop.f32.mrf.mxu0
        %v2143 = vadd.f32 %v2054, %v2142
        %v2144 = vpop.f32.mrf.mxu0
        %2145 = vdwg.mxu0
        %2146 = vmatprep.subr.mxu0 0.0
        %v2147 = vand.u32 %v1710, 4294901760
        %v2148 = vsub.f32 %v1710, %v2147
        %v2149 = vand.u32 %v2148, 4294901760
        %2150 = vmatpush1.msra.mxu0 %v2149
        %2151 = vmatprep.subr.mxu0 0.0
        %v2152 = vand.u32 %v1709, 4294901760
        %v2153 = vsub.f32 %v1709, %v2152
        %v2154 = vand.u32 %v2153, 4294901760
        %2155 = vmatpush1.msra.mxu0 %v2154
        %2156 = vmatprep.subr.mxu0 0.0
        %v2157 = vand.u32 %v1708, 4294901760
        %v2158 = vsub.f32 %v1708, %v2157
        %v2159 = vand.u32 %v2158, 4294901760
        %2160 = vmatpush1.msra.mxu0 %v2159
        %2161 = vmatprep.subr.mxu0 0.0
        %v2162 = vand.u32 %v1707, 4294901760
        %v2163 = vsub.f32 %v1707, %v2162
        %v2164 = vand.u32 %v2163, 4294901760
        %2165 = vmatpush1.msra.mxu0 %v2164
        %2166 = vmatprep.subr.mxu0 0.0
        %v2167 = vand.u32 %v1706, 4294901760
        %v2168 = vsub.f32 %v1706, %v2167
        %v2169 = vand.u32 %v2168, 4294901760
        %2170 = vmatpush1.msra.mxu0 %v2169
        %2171 = vmatprep.subr.mxu0 0.0
        %v2172 = vand.u32 %v1705, 4294901760
        %v2173 = vsub.f32 %v1705, %v2172
        %v2174 = vand.u32 %v2173, 4294901760
        %2175 = vmatpush1.msra.mxu0 %v2174
        %2176 = vmatprep.subr.mxu0 0.0
        %v2177 = vand.u32 %v1704, 4294901760
        %v2178 = vsub.f32 %v1704, %v2177
        %v2179 = vand.u32 %v2178, 4294901760
        %2180 = vmatpush1.msra.mxu0 %v2179
        %2181 = vmatprep.subr.mxu0 0.0
        %v2182 = vand.u32 %v1703, 4294901760
        %v2183 = vsub.f32 %v1703, %v2182
        %v2184 = vand.u32 %v2183, 4294901760
        %2185 = vmatpush1.msra.mxu0 %v2184
        %2186 = vmatprep.subr.mxu0 0.0
        %v2187 = vand.u32 %v1702, 4294901760
        %v2188 = vsub.f32 %v1702, %v2187
        %v2189 = vand.u32 %v2188, 4294901760
        %2190 = vmatpush1.msra.mxu0 %v2189
        %2191 = vmatprep.subr.mxu0 0.0
        %v2192 = vand.u32 %v1701, 4294901760
        %v2193 = vsub.f32 %v1701, %v2192
        %v2194 = vand.u32 %v2193, 4294901760
        %2195 = vmatpush1.msra.mxu0 %v2194
        %2196 = vmatprep.subr.mxu0 0.0
        %v2197 = vand.u32 %v1700, 4294901760
        %v2198 = vsub.f32 %v1700, %v2197
        %v2199 = vand.u32 %v2198, 4294901760
        %2200 = vmatpush1.msra.mxu0 %v2199
        %2201 = vmatprep.subr.mxu0 0.0
        %v2202 = vand.u32 %v1699, 4294901760
        %v2203 = vsub.f32 %v1699, %v2202
        %v2204 = vand.u32 %v2203, 4294901760
        %2205 = vmatpush1.msra.mxu0 %v2204
        %2206 = vmatprep.subr.mxu0 0.0
        %v2207 = vand.u32 %v1698, 4294901760
        %v2208 = vsub.f32 %v1698, %v2207
        %v2209 = vand.u32 %v2208, 4294901760
        %2210 = vmatpush1.msra.mxu0 %v2209
        %2211 = vmatprep.subr.mxu0 0.0
        %v2212 = vand.u32 %v1697, 4294901760
        %v2213 = vsub.f32 %v1697, %v2212
        %v2214 = vand.u32 %v2213, 4294901760
        %2215 = vmatpush1.msra.mxu0 %v2214
        %2216 = vmatprep.subr.mxu0 0.0
        %v2217 = vand.u32 %v1696, 4294901760
        %v2218 = vsub.f32 %v1696, %v2217
        %v2219 = vand.u32 %v2218, 4294901760
        %2220 = vmatpush1.msra.mxu0 %v2219
        %2221 = vmatprep.subr.mxu0 0.0
        %v2222 = vand.u32 %v1695, 4294901760
        %v2223 = vsub.f32 %v1695, %v2222
        %v2224 = vand.u32 %v2223, 4294901760
        %2225 = vmatpush1.msra.mxu0 %v2224
        %2226 = vmatprep.subr.mxu0 0.0
        %2227 = vmatpush2.msra.mxu0 0.0
        %2228 = vmatprep.subr.mxu0 0.0
        %2229 = vmatpush2.msra.mxu0 0.0
        %2230 = vmatprep.subr.mxu0 0.0
        %2231 = vmatpush2.msra.mxu0 0.0
        %2232 = vmatprep.subr.mxu0 0.0
        %2233 = vmatpush2.msra.mxu0 0.0
        %2234 = vmatprep.subr.mxu0 0.0
        %2235 = vmatpush2.msra.mxu0 0.0
        %2236 = vmatprep.subr.mxu0 0.0
        %2237 = vmatpush2.msra.mxu0 0.0
        %2238 = vmatprep.subr.mxu0 0.0
        %2239 = vmatpush2.msra.mxu0 0.0
        %2240 = vmatprep.subr.mxu0 0.0
        %2241 = vmatpush2.msra.mxu0 0.0
        %2242 = vmatprep.subr.mxu0 0.0
        %2243 = vmatpush2.msra.mxu0 0.0
        %2244 = vmatprep.subr.mxu0 0.0
        %2245 = vmatpush2.msra.mxu0 0.0
        %2246 = vmatprep.subr.mxu0 0.0
        %2247 = vmatpush2.msra.mxu0 0.0
        %2248 = vmatprep.subr.mxu0 0.0
        %2249 = vmatpush2.msra.mxu0 0.0
        %2250 = vmatprep.subr.mxu0 0.0
        %2251 = vmatpush2.msra.mxu0 0.0
        %2252 = vmatprep.subr.mxu0 0.0
        %2253 = vmatpush2.msra.mxu0 0.0
        %2254 = vmatprep.subr.mxu0 0.0
        %2255 = vmatpush2.msra.mxu0 0.0
        %2256 = vmatprep.subr.mxu0 0.0
        %2257 = vmatpush2.msra.mxu0 0.0
        %2258 = vmatprep.mubr.f32.mxu0 0.0
        %v2259 = vand.u32 %v366, 4294901760
        %2260 = vmatmul.mubr.f32.gmra.mxu0 %v2259
        %v2261 = vpop.f32.mrf.mxu0
        %v2262 = vadd.f32 %v2143, %v2261
        %v2263 = vpop.f32.mrf.mxu0
        %2264 = vdwg.mxu0
        %2265 = vmatprep.subr.mxu0 0.0
        %v2266 = vand.u32 %v1710, 4294901760
        %2267 = vmatpush1.msra.mxu0 %v2266
        %2268 = vmatprep.subr.mxu0 0.0
        %v2269 = vand.u32 %v1709, 4294901760
        %2270 = vmatpush1.msra.mxu0 %v2269
        %2271 = vmatprep.subr.mxu0 0.0
        %v2272 = vand.u32 %v1708, 4294901760
        %2273 = vmatpush1.msra.mxu0 %v2272
        %2274 = vmatprep.subr.mxu0 0.0
        %v2275 = vand.u32 %v1707, 4294901760
        %2276 = vmatpush1.msra.mxu0 %v2275
        %2277 = vmatprep.subr.mxu0 0.0
        %v2278 = vand.u32 %v1706, 4294901760
        %2279 = vmatpush1.msra.mxu0 %v2278
        %2280 = vmatprep.subr.mxu0 0.0
        %v2281 = vand.u32 %v1705, 4294901760
        %2282 = vmatpush1.msra.mxu0 %v2281
        %2283 = vmatprep.subr.mxu0 0.0
        %v2284 = vand.u32 %v1704, 4294901760
        %2285 = vmatpush1.msra.mxu0 %v2284
        %2286 = vmatprep.subr.mxu0 0.0
        %v2287 = vand.u32 %v1703, 4294901760
        %2288 = vmatpush1.msra.mxu0 %v2287
        %2289 = vmatprep.subr.mxu0 0.0
        %v2290 = vand.u32 %v1702, 4294901760
        %2291 = vmatpush1.msra.mxu0 %v2290
        %2292 = vmatprep.subr.mxu0 0.0
        %v2293 = vand.u32 %v1701, 4294901760
        %2294 = vmatpush1.msra.mxu0 %v2293
        %2295 = vmatprep.subr.mxu0 0.0
        %v2296 = vand.u32 %v1700, 4294901760
        %2297 = vmatpush1.msra.mxu0 %v2296
        %2298 = vmatprep.subr.mxu0 0.0
        %v2299 = vand.u32 %v1699, 4294901760
        %2300 = vmatpush1.msra.mxu0 %v2299
        %2301 = vmatprep.subr.mxu0 0.0
        %v2302 = vand.u32 %v1698, 4294901760
        %2303 = vmatpush1.msra.mxu0 %v2302
        %2304 = vmatprep.subr.mxu0 0.0
        %v2305 = vand.u32 %v1697, 4294901760
        %2306 = vmatpush1.msra.mxu0 %v2305
        %2307 = vmatprep.subr.mxu0 0.0
        %v2308 = vand.u32 %v1696, 4294901760
        %2309 = vmatpush1.msra.mxu0 %v2308
        %2310 = vmatprep.subr.mxu0 0.0
        %v2311 = vand.u32 %v1695, 4294901760
        %2312 = vmatpush1.msra.mxu0 %v2311
        %2313 = vmatprep.subr.mxu0 0.0
        %2314 = vmatpush2.msra.mxu0 0.0
        %2315 = vmatprep.subr.mxu0 0.0
        %2316 = vmatpush2.msra.mxu0 0.0
        %2317 = vmatprep.subr.mxu0 0.0
        %2318 = vmatpush2.msra.mxu0 0.0
        %2319 = vmatprep.subr.mxu0 0.0
        %2320 = vmatpush2.msra.mxu0 0.0
        %2321 = vmatprep.subr.mxu0 0.0
        %2322 = vmatpush2.msra.mxu0 0.0
        %2323 = vmatprep.subr.mxu0 0.0
        %2324 = vmatpush2.msra.mxu0 0.0
        %2325 = vmatprep.subr.mxu0 0.0
        %2326 = vmatpush2.msra.mxu0 0.0
        %2327 = vmatprep.subr.mxu0 0.0
        %2328 = vmatpush2.msra.mxu0 0.0
        %2329 = vmatprep.subr.mxu0 0.0
        %2330 = vmatpush2.msra.mxu0 0.0
        %2331 = vmatprep.subr.mxu0 0.0
        %2332 = vmatpush2.msra.mxu0 0.0
        %2333 = vmatprep.subr.mxu0 0.0
        %2334 = vmatpush2.msra.mxu0 0.0
        %2335 = vmatprep.subr.mxu0 0.0
        %2336 = vmatpush2.msra.mxu0 0.0
        %2337 = vmatprep.subr.mxu0 0.0
        %2338 = vmatpush2.msra.mxu0 0.0
        %2339 = vmatprep.subr.mxu0 0.0
        %2340 = vmatpush2.msra.mxu0 0.0
        %2341 = vmatprep.subr.mxu0 0.0
        %2342 = vmatpush2.msra.mxu0 0.0
        %2343 = vmatprep.subr.mxu0 0.0
        %2344 = vmatpush2.msra.mxu0 0.0
        %2345 = vmatprep.mubr.f32.mxu0 0.0
        %v2346 = vand.u32 %v366, 4294901760
        %2347 = vmatmul.mubr.f32.gmra.mxu0 %v2346
        %v2348 = vpop.f32.mrf.mxu0
        %v2349 = vadd.f32 %v2262, %v2348
        %v2350 = vpop.f32.mrf.mxu0
        %2351 = vdwg.mxu0
        %2352 = vmatprep.subr.mxu0 0.0
        %v2353 = vand.u32 %v1694, 4294901760
        %2354 = vmatpush1.msra.mxu0 %v2353
        %2355 = vmatprep.subr.mxu0 0.0
        %v2356 = vand.u32 %v1693, 4294901760
        %2357 = vmatpush1.msra.mxu0 %v2356
        %2358 = vmatprep.subr.mxu0 0.0
        %v2359 = vand.u32 %v1692, 4294901760
        %2360 = vmatpush1.msra.mxu0 %v2359
        %2361 = vmatprep.subr.mxu0 0.0
        %v2362 = vand.u32 %v1691, 4294901760
        %2363 = vmatpush1.msra.mxu0 %v2362
        %2364 = vmatprep.subr.mxu0 0.0
        %v2365 = vand.u32 %v1690, 4294901760
        %2366 = vmatpush1.msra.mxu0 %v2365
        %2367 = vmatprep.subr.mxu0 0.0
        %v2368 = vand.u32 %v1689, 4294901760
        %2369 = vmatpush1.msra.mxu0 %v2368
        %2370 = vmatprep.subr.mxu0 0.0
        %v2371 = vand.u32 %v1688, 4294901760
        %2372 = vmatpush1.msra.mxu0 %v2371
        %2373 = vmatprep.subr.mxu0 0.0
        %v2374 = vand.u32 %v1687, 4294901760
        %2375 = vmatpush1.msra.mxu0 %v2374
        %2376 = vmatprep.subr.mxu0 0.0
        %v2377 = vand.u32 %v1686, 4294901760
        %2378 = vmatpush1.msra.mxu0 %v2377
        %2379 = vmatprep.subr.mxu0 0.0
        %v2380 = vand.u32 %v1685, 4294901760
        %2381 = vmatpush1.msra.mxu0 %v2380
        %2382 = vmatprep.subr.mxu0 0.0
        %v2383 = vand.u32 %v1684, 4294901760
        %2384 = vmatpush1.msra.mxu0 %v2383
        %2385 = vmatprep.subr.mxu0 0.0
        %v2386 = vand.u32 %v1683, 4294901760
        %2387 = vmatpush1.msra.mxu0 %v2386
        %2388 = vmatprep.subr.mxu0 0.0
        %v2389 = vand.u32 %v1682, 4294901760
        %2390 = vmatpush1.msra.mxu0 %v2389
        %2391 = vmatprep.subr.mxu0 0.0
        %v2392 = vand.u32 %v1681, 4294901760
        %2393 = vmatpush1.msra.mxu0 %v2392
        %2394 = vmatprep.subr.mxu0 0.0
        %v2395 = vand.u32 %v1680, 4294901760
        %2396 = vmatpush1.msra.mxu0 %v2395
        %2397 = vmatprep.subr.mxu0 0.0
        %v2398 = vand.u32 %v1679, 4294901760
        %2399 = vmatpush1.msra.mxu0 %v2398
        %2400 = vmatprep.subr.mxu0 0.0
        %2401 = vmatpush2.msra.mxu0 0.0
        %2402 = vmatprep.subr.mxu0 0.0
        %2403 = vmatpush2.msra.mxu0 0.0
        %2404 = vmatprep.subr.mxu0 0.0
        %2405 = vmatpush2.msra.mxu0 0.0
        %2406 = vmatprep.subr.mxu0 0.0
        %2407 = vmatpush2.msra.mxu0 0.0
        %2408 = vmatprep.subr.mxu0 0.0
        %2409 = vmatpush2.msra.mxu0 0.0
        %2410 = vmatprep.subr.mxu0 0.0
        %2411 = vmatpush2.msra.mxu0 0.0
        %2412 = vmatprep.subr.mxu0 0.0
        %2413 = vmatpush2.msra.mxu0 0.0
        %2414 = vmatprep.subr.mxu0 0.0
        %2415 = vmatpush2.msra.mxu0 0.0
        %2416 = vmatprep.subr.mxu0 0.0
        %2417 = vmatpush2.msra.mxu0 0.0
        %2418 = vmatprep.subr.mxu0 0.0
        %2419 = vmatpush2.msra.mxu0 0.0
        %2420 = vmatprep.subr.mxu0 0.0
        %2421 = vmatpush2.msra.mxu0 0.0
        %2422 = vmatprep.subr.mxu0 0.0
        %2423 = vmatpush2.msra.mxu0 0.0
        %2424 = vmatprep.subr.mxu0 0.0
        %2425 = vmatpush2.msra.mxu0 0.0
        %2426 = vmatprep.subr.mxu0 0.0
        %2427 = vmatpush2.msra.mxu0 0.0
        %2428 = vmatprep.subr.mxu0 0.0
        %2429 = vmatpush2.msra.mxu0 0.0
        %2430 = vmatprep.subr.mxu0 0.0
        %2431 = vmatpush2.msra.mxu0 0.0
        %2432 = vmatprep.mubr.f32.mxu0 0.0
        %v2433 = vand.u32 %v1676, 4294901760
        %v2434 = vsub.f32 %v1676, %v2433
        %v2435 = vand.u32 %v2434, 4294901760
        %v2436 = vsub.f32 %v2434, %v2435
        %v2437 = vand.u32 %v2436, 4294901760
        %2438 = vmatmul.mubr.f32.gmra.mxu0 %v2437
        %v2439 = vpop.f32.mrf.mxu0
        %v2440 = vadd.f32 %v2349, %v2439
        %v2441 = vpop.f32.mrf.mxu0
        %2442 = vdwg.mxu0
        %2443 = vmatprep.subr.mxu0 0.0
        %v2444 = vand.u32 %v1694, 4294901760
        %v2445 = vsub.f32 %v1694, %v2444
        %v2446 = vand.u32 %v2445, 4294901760
        %v2447 = vsub.f32 %v2445, %v2446
        %v2448 = vand.u32 %v2447, 4294901760
        %2449 = vmatpush1.msra.mxu0 %v2448
        %2450 = vmatprep.subr.mxu0 0.0
        %v2451 = vand.u32 %v1693, 4294901760
        %v2452 = vsub.f32 %v1693, %v2451
        %v2453 = vand.u32 %v2452, 4294901760
        %v2454 = vsub.f32 %v2452, %v2453
        %v2455 = vand.u32 %v2454, 4294901760
        %2456 = vmatpush1.msra.mxu0 %v2455
        %2457 = vmatprep.subr.mxu0 0.0
        %v2458 = vand.u32 %v1692, 4294901760
        %v2459 = vsub.f32 %v1692, %v2458
        %v2460 = vand.u32 %v2459, 4294901760
        %v2461 = vsub.f32 %v2459, %v2460
        %v2462 = vand.u32 %v2461, 4294901760
        %2463 = vmatpush1.msra.mxu0 %v2462
        %2464 = vmatprep.subr.mxu0 0.0
        %v2465 = vand.u32 %v1691, 4294901760
        %v2466 = vsub.f32 %v1691, %v2465
        %v2467 = vand.u32 %v2466, 4294901760
        %v2468 = vsub.f32 %v2466, %v2467
        %v2469 = vand.u32 %v2468, 4294901760
        %2470 = vmatpush1.msra.mxu0 %v2469
        %2471 = vmatprep.subr.mxu0 0.0
        %v2472 = vand.u32 %v1690, 4294901760
        %v2473 = vsub.f32 %v1690, %v2472
        %v2474 = vand.u32 %v2473, 4294901760
        %v2475 = vsub.f32 %v2473, %v2474
        %v2476 = vand.u32 %v2475, 4294901760
        %2477 = vmatpush1.msra.mxu0 %v2476
        %2478 = vmatprep.subr.mxu0 0.0
        %v2479 = vand.u32 %v1689, 4294901760
        %v2480 = vsub.f32 %v1689, %v2479
        %v2481 = vand.u32 %v2480, 4294901760
        %v2482 = vsub.f32 %v2480, %v2481
        %v2483 = vand.u32 %v2482, 4294901760
        %2484 = vmatpush1.msra.mxu0 %v2483
        %2485 = vmatprep.subr.mxu0 0.0
        %v2486 = vand.u32 %v1688, 4294901760
        %v2487 = vsub.f32 %v1688, %v2486
        %v2488 = vand.u32 %v2487, 4294901760
        %v2489 = vsub.f32 %v2487, %v2488
        %v2490 = vand.u32 %v2489, 4294901760
        %2491 = vmatpush1.msra.mxu0 %v2490
        %2492 = vmatprep.subr.mxu0 0.0
        %v2493 = vand.u32 %v1687, 4294901760
        %v2494 = vsub.f32 %v1687, %v2493
        %v2495 = vand.u32 %v2494, 4294901760
        %v2496 = vsub.f32 %v2494, %v2495
        %v2497 = vand.u32 %v2496, 4294901760
        %2498 = vmatpush1.msra.mxu0 %v2497
        %2499 = vmatprep.subr.mxu0 0.0
        %v2500 = vand.u32 %v1686, 4294901760
        %v2501 = vsub.f32 %v1686, %v2500
        %v2502 = vand.u32 %v2501, 4294901760
        %v2503 = vsub.f32 %v2501, %v2502
        %v2504 = vand.u32 %v2503, 4294901760
        %2505 = vmatpush1.msra.mxu0 %v2504
        %2506 = vmatprep.subr.mxu0 0.0
        %v2507 = vand.u32 %v1685, 4294901760
        %v2508 = vsub.f32 %v1685, %v2507
        %v2509 = vand.u32 %v2508, 4294901760
        %v2510 = vsub.f32 %v2508, %v2509
        %v2511 = vand.u32 %v2510, 4294901760
        %2512 = vmatpush1.msra.mxu0 %v2511
        %2513 = vmatprep.subr.mxu0 0.0
        %v2514 = vand.u32 %v1684, 4294901760
        %v2515 = vsub.f32 %v1684, %v2514
        %v2516 = vand.u32 %v2515, 4294901760
        %v2517 = vsub.f32 %v2515, %v2516
        %v2518 = vand.u32 %v2517, 4294901760
        %2519 = vmatpush1.msra.mxu0 %v2518
        %2520 = vmatprep.subr.mxu0 0.0
        %v2521 = vand.u32 %v1683, 4294901760
        %v2522 = vsub.f32 %v1683, %v2521
        %v2523 = vand.u32 %v2522, 4294901760
        %v2524 = vsub.f32 %v2522, %v2523
        %v2525 = vand.u32 %v2524, 4294901760
        %2526 = vmatpush1.msra.mxu0 %v2525
        %2527 = vmatprep.subr.mxu0 0.0
        %v2528 = vand.u32 %v1682, 4294901760
        %v2529 = vsub.f32 %v1682, %v2528
        %v2530 = vand.u32 %v2529, 4294901760
        %v2531 = vsub.f32 %v2529, %v2530
        %v2532 = vand.u32 %v2531, 4294901760
        %2533 = vmatpush1.msra.mxu0 %v2532
        %2534 = vmatprep.subr.mxu0 0.0
        %v2535 = vand.u32 %v1681, 4294901760
        %v2536 = vsub.f32 %v1681, %v2535
        %v2537 = vand.u32 %v2536, 4294901760
        %v2538 = vsub.f32 %v2536, %v2537
        %v2539 = vand.u32 %v2538, 4294901760
        %2540 = vmatpush1.msra.mxu0 %v2539
        %2541 = vmatprep.subr.mxu0 0.0
        %v2542 = vand.u32 %v1680, 4294901760
        %v2543 = vsub.f32 %v1680, %v2542
        %v2544 = vand.u32 %v2543, 4294901760
        %v2545 = vsub.f32 %v2543, %v2544
        %v2546 = vand.u32 %v2545, 4294901760
        %2547 = vmatpush1.msra.mxu0 %v2546
        %2548 = vmatprep.subr.mxu0 0.0
        %v2549 = vand.u32 %v1679, 4294901760
        %v2550 = vsub.f32 %v1679, %v2549
        %v2551 = vand.u32 %v2550, 4294901760
        %v2552 = vsub.f32 %v2550, %v2551
        %v2553 = vand.u32 %v2552, 4294901760
        %2554 = vmatpush1.msra.mxu0 %v2553
        %2555 = vmatprep.subr.mxu0 0.0
        %2556 = vmatpush2.msra.mxu0 0.0
        %2557 = vmatprep.subr.mxu0 0.0
        %2558 = vmatpush2.msra.mxu0 0.0
        %2559 = vmatprep.subr.mxu0 0.0
        %2560 = vmatpush2.msra.mxu0 0.0
        %2561 = vmatprep.subr.mxu0 0.0
        %2562 = vmatpush2.msra.mxu0 0.0
        %2563 = vmatprep.subr.mxu0 0.0
        %2564 = vmatpush2.msra.mxu0 0.0
        %2565 = vmatprep.subr.mxu0 0.0
        %2566 = vmatpush2.msra.mxu0 0.0
        %2567 = vmatprep.subr.mxu0 0.0
        %2568 = vmatpush2.msra.mxu0 0.0
        %2569 = vmatprep.subr.mxu0 0.0
        %2570 = vmatpush2.msra.mxu0 0.0
        %2571 = vmatprep.subr.mxu0 0.0
        %2572 = vmatpush2.msra.mxu0 0.0
        %2573 = vmatprep.subr.mxu0 0.0
        %2574 = vmatpush2.msra.mxu0 0.0
        %2575 = vmatprep.subr.mxu0 0.0
        %2576 = vmatpush2.msra.mxu0 0.0
        %2577 = vmatprep.subr.mxu0 0.0
        %2578 = vmatpush2.msra.mxu0 0.0
        %2579 = vmatprep.subr.mxu0 0.0
        %2580 = vmatpush2.msra.mxu0 0.0
        %2581 = vmatprep.subr.mxu0 0.0
        %2582 = vmatpush2.msra.mxu0 0.0
        %2583 = vmatprep.subr.mxu0 0.0
        %2584 = vmatpush2.msra.mxu0 0.0
        %2585 = vmatprep.subr.mxu0 0.0
        %2586 = vmatpush2.msra.mxu0 0.0
        %2587 = vmatprep.mubr.f32.mxu0 0.0
        %v2588 = vand.u32 %v1676, 4294901760
        %2589 = vmatmul.mubr.f32.gmra.mxu0 %v2588
        %v2590 = vpop.f32.mrf.mxu0
        %v2591 = vadd.f32 %v2440, %v2590
        %v2592 = vpop.f32.mrf.mxu0
        %2593 = vdwg.mxu0
        %2594 = vmatprep.subr.mxu0 0.0
        %v2595 = vand.u32 %v1694, 4294901760
        %v2596 = vsub.f32 %v1694, %v2595
        %2597 = vmatpush1.msra.mxu0 %v2596
        %2598 = vmatprep.subr.mxu0 0.0
        %v2599 = vand.u32 %v1693, 4294901760
        %v2600 = vsub.f32 %v1693, %v2599
        %2601 = vmatpush1.msra.mxu0 %v2600
        %2602 = vmatprep.subr.mxu0 0.0
        %v2603 = vand.u32 %v1692, 4294901760
        %v2604 = vsub.f32 %v1692, %v2603
        %2605 = vmatpush1.msra.mxu0 %v2604
        %2606 = vmatprep.subr.mxu0 0.0
        %v2607 = vand.u32 %v1691, 4294901760
        %v2608 = vsub.f32 %v1691, %v2607
        %2609 = vmatpush1.msra.mxu0 %v2608
        %2610 = vmatprep.subr.mxu0 0.0
        %v2611 = vand.u32 %v1690, 4294901760
        %v2612 = vsub.f32 %v1690, %v2611
        %2613 = vmatpush1.msra.mxu0 %v2612
        %2614 = vmatprep.subr.mxu0 0.0
        %v2615 = vand.u32 %v1689, 4294901760
        %v2616 = vsub.f32 %v1689, %v2615
        %2617 = vmatpush1.msra.mxu0 %v2616
        %2618 = vmatprep.subr.mxu0 0.0
        %v2619 = vand.u32 %v1688, 4294901760
        %v2620 = vsub.f32 %v1688, %v2619
        %2621 = vmatpush1.msra.mxu0 %v2620
        %2622 = vmatprep.subr.mxu0 0.0
        %v2623 = vand.u32 %v1687, 4294901760
        %v2624 = vsub.f32 %v1687, %v2623
        %2625 = vmatpush1.msra.mxu0 %v2624
        %2626 = vmatprep.subr.mxu0 0.0
        %v2627 = vand.u32 %v1686, 4294901760
        %v2628 = vsub.f32 %v1686, %v2627
        %2629 = vmatpush1.msra.mxu0 %v2628
        %2630 = vmatprep.subr.mxu0 0.0
        %v2631 = vand.u32 %v1685, 4294901760
        %v2632 = vsub.f32 %v1685, %v2631
        %2633 = vmatpush1.msra.mxu0 %v2632
        %2634 = vmatprep.subr.mxu0 0.0
        %v2635 = vand.u32 %v1684, 4294901760
        %v2636 = vsub.f32 %v1684, %v2635
        %2637 = vmatpush1.msra.mxu0 %v2636
        %2638 = vmatprep.subr.mxu0 0.0
        %v2639 = vand.u32 %v1683, 4294901760
        %v2640 = vsub.f32 %v1683, %v2639
        %2641 = vmatpush1.msra.mxu0 %v2640
        %2642 = vmatprep.subr.mxu0 0.0
        %v2643 = vand.u32 %v1682, 4294901760
        %v2644 = vsub.f32 %v1682, %v2643
        %2645 = vmatpush1.msra.mxu0 %v2644
        %2646 = vmatprep.subr.mxu0 0.0
        %v2647 = vand.u32 %v1681, 4294901760
        %v2648 = vsub.f32 %v1681, %v2647
        %2649 = vmatpush1.msra.mxu0 %v2648
        %2650 = vmatprep.subr.mxu0 0.0
        %v2651 = vand.u32 %v1680, 4294901760
        %v2652 = vsub.f32 %v1680, %v2651
        %2653 = vmatpush1.msra.mxu0 %v2652
        %2654 = vmatprep.subr.mxu0 0.0
        %v2655 = vand.u32 %v1679, 4294901760
        %v2656 = vsub.f32 %v1679, %v2655
        %2657 = vmatpush1.msra.mxu0 %v2656
        %2658 = vmatprep.subr.mxu0 0.0
        %2659 = vmatpush2.msra.mxu0 0.0
        %2660 = vmatprep.subr.mxu0 0.0
        %2661 = vmatpush2.msra.mxu0 0.0
        %2662 = vmatprep.subr.mxu0 0.0
        %2663 = vmatpush2.msra.mxu0 0.0
        %2664 = vmatprep.subr.mxu0 0.0
        %2665 = vmatpush2.msra.mxu0 0.0
        %2666 = vmatprep.subr.mxu0 0.0
        %2667 = vmatpush2.msra.mxu0 0.0
        %2668 = vmatprep.subr.mxu0 0.0
        %2669 = vmatpush2.msra.mxu0 0.0
        %2670 = vmatprep.subr.mxu0 0.0
        %2671 = vmatpush2.msra.mxu0 0.0
        %2672 = vmatprep.subr.mxu0 0.0
        %2673 = vmatpush2.msra.mxu0 0.0
        %2674 = vmatprep.subr.mxu0 0.0
        %2675 = vmatpush2.msra.mxu0 0.0
        %2676 = vmatprep.subr.mxu0 0.0
        %2677 = vmatpush2.msra.mxu0 0.0
        %2678 = vmatprep.subr.mxu0 0.0
        %2679 = vmatpush2.msra.mxu0 0.0
        %2680 = vmatprep.subr.mxu0 0.0
        %2681 = vmatpush2.msra.mxu0 0.0
        %2682 = vmatprep.subr.mxu0 0.0
        %2683 = vmatpush2.msra.mxu0 0.0
        %2684 = vmatprep.subr.mxu0 0.0
        %2685 = vmatpush2.msra.mxu0 0.0
        %2686 = vmatprep.subr.mxu0 0.0
        %2687 = vmatpush2.msra.mxu0 0.0
        %2688 = vmatprep.subr.mxu0 0.0
        %2689 = vmatpush2.msra.mxu0 0.0
        %2690 = vmatprep.mubr.f32.mxu0 0.0
        %v2691 = vand.u32 %v1676, 4294901760
        %v2692 = vsub.f32 %v1676, %v2691
        %2693 = vmatmul.mubr.f32.gmra.mxu0 %v2692
        %v2694 = vpop.f32.mrf.mxu0
        %v2695 = vadd.f32 %v2591, %v2694
        %v2696 = vpop.f32.mrf.mxu0
        %2697 = vdwg.mxu0
        %2698 = vmatprep.subr.mxu0 0.0
        %v2699 = vand.u32 %v1694, 4294901760
        %2700 = vmatpush1.msra.mxu0 %v2699
        %2701 = vmatprep.subr.mxu0 0.0
        %v2702 = vand.u32 %v1693, 4294901760
        %2703 = vmatpush1.msra.mxu0 %v2702
        %2704 = vmatprep.subr.mxu0 0.0
        %v2705 = vand.u32 %v1692, 4294901760
        %2706 = vmatpush1.msra.mxu0 %v2705
        %2707 = vmatprep.subr.mxu0 0.0
        %v2708 = vand.u32 %v1691, 4294901760
        %2709 = vmatpush1.msra.mxu0 %v2708
        %2710 = vmatprep.subr.mxu0 0.0
        %v2711 = vand.u32 %v1690, 4294901760
        %2712 = vmatpush1.msra.mxu0 %v2711
        %2713 = vmatprep.subr.mxu0 0.0
        %v2714 = vand.u32 %v1689, 4294901760
        %2715 = vmatpush1.msra.mxu0 %v2714
        %2716 = vmatprep.subr.mxu0 0.0
        %v2717 = vand.u32 %v1688, 4294901760
        %2718 = vmatpush1.msra.mxu0 %v2717
        %2719 = vmatprep.subr.mxu0 0.0
        %v2720 = vand.u32 %v1687, 4294901760
        %2721 = vmatpush1.msra.mxu0 %v2720
        %2722 = vmatprep.subr.mxu0 0.0
        %v2723 = vand.u32 %v1686, 4294901760
        %2724 = vmatpush1.msra.mxu0 %v2723
        %2725 = vmatprep.subr.mxu0 0.0
        %v2726 = vand.u32 %v1685, 4294901760
        %2727 = vmatpush1.msra.mxu0 %v2726
        %2728 = vmatprep.subr.mxu0 0.0
        %v2729 = vand.u32 %v1684, 4294901760
        %2730 = vmatpush1.msra.mxu0 %v2729
        %2731 = vmatprep.subr.mxu0 0.0
        %v2732 = vand.u32 %v1683, 4294901760
        %2733 = vmatpush1.msra.mxu0 %v2732
        %2734 = vmatprep.subr.mxu0 0.0
        %v2735 = vand.u32 %v1682, 4294901760
        %2736 = vmatpush1.msra.mxu0 %v2735
        %2737 = vmatprep.subr.mxu0 0.0
        %v2738 = vand.u32 %v1681, 4294901760
        %2739 = vmatpush1.msra.mxu0 %v2738
        %2740 = vmatprep.subr.mxu0 0.0
        %v2741 = vand.u32 %v1680, 4294901760
        %2742 = vmatpush1.msra.mxu0 %v2741
        %2743 = vmatprep.subr.mxu0 0.0
        %v2744 = vand.u32 %v1679, 4294901760
        %2745 = vmatpush1.msra.mxu0 %v2744
        %2746 = vmatprep.subr.mxu0 0.0
        %2747 = vmatpush2.msra.mxu0 0.0
        %2748 = vmatprep.subr.mxu0 0.0
        %2749 = vmatpush2.msra.mxu0 0.0
        %2750 = vmatprep.subr.mxu0 0.0
        %2751 = vmatpush2.msra.mxu0 0.0
        %2752 = vmatprep.subr.mxu0 0.0
        %2753 = vmatpush2.msra.mxu0 0.0
        %2754 = vmatprep.subr.mxu0 0.0
        %2755 = vmatpush2.msra.mxu0 0.0
        %2756 = vmatprep.subr.mxu0 0.0
        %2757 = vmatpush2.msra.mxu0 0.0
        %2758 = vmatprep.subr.mxu0 0.0
        %2759 = vmatpush2.msra.mxu0 0.0
        %2760 = vmatprep.subr.mxu0 0.0
        %2761 = vmatpush2.msra.mxu0 0.0
        %2762 = vmatprep.subr.mxu0 0.0
        %2763 = vmatpush2.msra.mxu0 0.0
        %2764 = vmatprep.subr.mxu0 0.0
        %2765 = vmatpush2.msra.mxu0 0.0
        %2766 = vmatprep.subr.mxu0 0.0
        %2767 = vmatpush2.msra.mxu0 0.0
        %2768 = vmatprep.subr.mxu0 0.0
        %2769 = vmatpush2.msra.mxu0 0.0
        %2770 = vmatprep.subr.mxu0 0.0
        %2771 = vmatpush2.msra.mxu0 0.0
        %2772 = vmatprep.subr.mxu0 0.0
        %2773 = vmatpush2.msra.mxu0 0.0
        %2774 = vmatprep.subr.mxu0 0.0
        %2775 = vmatpush2.msra.mxu0 0.0
        %2776 = vmatprep.subr.mxu0 0.0
        %2777 = vmatpush2.msra.mxu0 0.0
        %2778 = vmatprep.mubr.f32.mxu0 0.0
        %v2779 = vand.u32 %v1676, 4294901760
        %v2780 = vsub.f32 %v1676, %v2779
        %v2781 = vand.u32 %v2780, 4294901760
        %2782 = vmatmul.mubr.f32.gmra.mxu0 %v2781
        %v2783 = vpop.f32.mrf.mxu0
        %v2784 = vadd.f32 %v2695, %v2783
        %v2785 = vpop.f32.mrf.mxu0
        %2786 = vdwg.mxu0
        %2787 = vmatprep.subr.mxu0 0.0
        %v2788 = vand.u32 %v1694, 4294901760
        %v2789 = vsub.f32 %v1694, %v2788
        %v2790 = vand.u32 %v2789, 4294901760
        %2791 = vmatpush1.msra.mxu0 %v2790
        %2792 = vmatprep.subr.mxu0 0.0
        %v2793 = vand.u32 %v1693, 4294901760
        %v2794 = vsub.f32 %v1693, %v2793
        %v2795 = vand.u32 %v2794, 4294901760
        %2796 = vmatpush1.msra.mxu0 %v2795
        %2797 = vmatprep.subr.mxu0 0.0
        %v2798 = vand.u32 %v1692, 4294901760
        %v2799 = vsub.f32 %v1692, %v2798
        %v2800 = vand.u32 %v2799, 4294901760
        %2801 = vmatpush1.msra.mxu0 %v2800
        %2802 = vmatprep.subr.mxu0 0.0
        %v2803 = vand.u32 %v1691, 4294901760
        %v2804 = vsub.f32 %v1691, %v2803
        %v2805 = vand.u32 %v2804, 4294901760
        %2806 = vmatpush1.msra.mxu0 %v2805
        %2807 = vmatprep.subr.mxu0 0.0
        %v2808 = vand.u32 %v1690, 4294901760
        %v2809 = vsub.f32 %v1690, %v2808
        %v2810 = vand.u32 %v2809, 4294901760
        %2811 = vmatpush1.msra.mxu0 %v2810
        %2812 = vmatprep.subr.mxu0 0.0
        %v2813 = vand.u32 %v1689, 4294901760
        %v2814 = vsub.f32 %v1689, %v2813
        %v2815 = vand.u32 %v2814, 4294901760
        %2816 = vmatpush1.msra.mxu0 %v2815
        %2817 = vmatprep.subr.mxu0 0.0
        %v2818 = vand.u32 %v1688, 4294901760
        %v2819 = vsub.f32 %v1688, %v2818
        %v2820 = vand.u32 %v2819, 4294901760
        %2821 = vmatpush1.msra.mxu0 %v2820
        %2822 = vmatprep.subr.mxu0 0.0
        %v2823 = vand.u32 %v1687, 4294901760
        %v2824 = vsub.f32 %v1687, %v2823
        %v2825 = vand.u32 %v2824, 4294901760
        %2826 = vmatpush1.msra.mxu0 %v2825
        %2827 = vmatprep.subr.mxu0 0.0
        %v2828 = vand.u32 %v1686, 4294901760
        %v2829 = vsub.f32 %v1686, %v2828
        %v2830 = vand.u32 %v2829, 4294901760
        %2831 = vmatpush1.msra.mxu0 %v2830
        %2832 = vmatprep.subr.mxu0 0.0
        %v2833 = vand.u32 %v1685, 4294901760
        %v2834 = vsub.f32 %v1685, %v2833
        %v2835 = vand.u32 %v2834, 4294901760
        %2836 = vmatpush1.msra.mxu0 %v2835
        %2837 = vmatprep.subr.mxu0 0.0
        %v2838 = vand.u32 %v1684, 4294901760
        %v2839 = vsub.f32 %v1684, %v2838
        %v2840 = vand.u32 %v2839, 4294901760
        %2841 = vmatpush1.msra.mxu0 %v2840
        %2842 = vmatprep.subr.mxu0 0.0
        %v2843 = vand.u32 %v1683, 4294901760
        %v2844 = vsub.f32 %v1683, %v2843
        %v2845 = vand.u32 %v2844, 4294901760
        %2846 = vmatpush1.msra.mxu0 %v2845
        %2847 = vmatprep.subr.mxu0 0.0
        %v2848 = vand.u32 %v1682, 4294901760
        %v2849 = vsub.f32 %v1682, %v2848
        %v2850 = vand.u32 %v2849, 4294901760
        %2851 = vmatpush1.msra.mxu0 %v2850
        %2852 = vmatprep.subr.mxu0 0.0
        %v2853 = vand.u32 %v1681, 4294901760
        %v2854 = vsub.f32 %v1681, %v2853
        %v2855 = vand.u32 %v2854, 4294901760
        %2856 = vmatpush1.msra.mxu0 %v2855
        %2857 = vmatprep.subr.mxu0 0.0
        %v2858 = vand.u32 %v1680, 4294901760
        %v2859 = vsub.f32 %v1680, %v2858
        %v2860 = vand.u32 %v2859, 4294901760
        %2861 = vmatpush1.msra.mxu0 %v2860
        %2862 = vmatprep.subr.mxu0 0.0
        %v2863 = vand.u32 %v1679, 4294901760
        %v2864 = vsub.f32 %v1679, %v2863
        %v2865 = vand.u32 %v2864, 4294901760
        %2866 = vmatpush1.msra.mxu0 %v2865
        %2867 = vmatprep.subr.mxu0 0.0
        %2868 = vmatpush2.msra.mxu0 0.0
        %2869 = vmatprep.subr.mxu0 0.0
        %2870 = vmatpush2.msra.mxu0 0.0
        %2871 = vmatprep.subr.mxu0 0.0
        %2872 = vmatpush2.msra.mxu0 0.0
        %2873 = vmatprep.subr.mxu0 0.0
        %2874 = vmatpush2.msra.mxu0 0.0
        %2875 = vmatprep.subr.mxu0 0.0
        %2876 = vmatpush2.msra.mxu0 0.0
        %2877 = vmatprep.subr.mxu0 0.0
        %2878 = vmatpush2.msra.mxu0 0.0
        %2879 = vmatprep.subr.mxu0 0.0
        %2880 = vmatpush2.msra.mxu0 0.0
        %2881 = vmatprep.subr.mxu0 0.0
        %2882 = vmatpush2.msra.mxu0 0.0
        %2883 = vmatprep.subr.mxu0 0.0
        %2884 = vmatpush2.msra.mxu0 0.0
        %2885 = vmatprep.subr.mxu0 0.0
        %2886 = vmatpush2.msra.mxu0 0.0
        %2887 = vmatprep.subr.mxu0 0.0
        %2888 = vmatpush2.msra.mxu0 0.0
        %2889 = vmatprep.subr.mxu0 0.0
        %2890 = vmatpush2.msra.mxu0 0.0
        %2891 = vmatprep.subr.mxu0 0.0
        %2892 = vmatpush2.msra.mxu0 0.0
        %2893 = vmatprep.subr.mxu0 0.0
        %2894 = vmatpush2.msra.mxu0 0.0
        %2895 = vmatprep.subr.mxu0 0.0
        %2896 = vmatpush2.msra.mxu0 0.0
        %2897 = vmatprep.subr.mxu0 0.0
        %2898 = vmatpush2.msra.mxu0 0.0
        %2899 = vmatprep.mubr.f32.mxu0 0.0
        %v2900 = vand.u32 %v1676, 4294901760
        %2901 = vmatmul.mubr.f32.gmra.mxu0 %v2900
        %v2902 = vpop.f32.mrf.mxu0
        %v2903 = vadd.f32 %v2784, %v2902
        %v2904 = vpop.f32.mrf.mxu0
        %2905 = vdwg.mxu0
        %2906 = vmatprep.subr.mxu0 0.0
        %v2907 = vand.u32 %v1694, 4294901760
        %2908 = vmatpush1.msra.mxu0 %v2907
        %2909 = vmatprep.subr.mxu0 0.0
        %v2910 = vand.u32 %v1693, 4294901760
        %2911 = vmatpush1.msra.mxu0 %v2910
        %2912 = vmatprep.subr.mxu0 0.0
        %v2913 = vand.u32 %v1692, 4294901760
        %2914 = vmatpush1.msra.mxu0 %v2913
        %2915 = vmatprep.subr.mxu0 0.0
        %v2916 = vand.u32 %v1691, 4294901760
        %2917 = vmatpush1.msra.mxu0 %v2916
        %2918 = vmatprep.subr.mxu0 0.0
        %v2919 = vand.u32 %v1690, 4294901760
        %2920 = vmatpush1.msra.mxu0 %v2919
        %2921 = vmatprep.subr.mxu0 0.0
        %v2922 = vand.u32 %v1689, 4294901760
        %2923 = vmatpush1.msra.mxu0 %v2922
        %2924 = vmatprep.subr.mxu0 0.0
        %v2925 = vand.u32 %v1688, 4294901760
        %2926 = vmatpush1.msra.mxu0 %v2925
        %2927 = vmatprep.subr.mxu0 0.0
        %v2928 = vand.u32 %v1687, 4294901760
        %2929 = vmatpush1.msra.mxu0 %v2928
        %2930 = vmatprep.subr.mxu0 0.0
        %v2931 = vand.u32 %v1686, 4294901760
        %2932 = vmatpush1.msra.mxu0 %v2931
        %2933 = vmatprep.subr.mxu0 0.0
        %v2934 = vand.u32 %v1685, 4294901760
        %2935 = vmatpush1.msra.mxu0 %v2934
        %2936 = vmatprep.subr.mxu0 0.0
        %v2937 = vand.u32 %v1684, 4294901760
        %2938 = vmatpush1.msra.mxu0 %v2937
        %2939 = vmatprep.subr.mxu0 0.0
        %v2940 = vand.u32 %v1683, 4294901760
        %2941 = vmatpush1.msra.mxu0 %v2940
        %2942 = vmatprep.subr.mxu0 0.0
        %v2943 = vand.u32 %v1682, 4294901760
        %2944 = vmatpush1.msra.mxu0 %v2943
        %2945 = vmatprep.subr.mxu0 0.0
        %v2946 = vand.u32 %v1681, 4294901760
        %2947 = vmatpush1.msra.mxu0 %v2946
        %2948 = vmatprep.subr.mxu0 0.0
        %v2949 = vand.u32 %v1680, 4294901760
        %2950 = vmatpush1.msra.mxu0 %v2949
        %2951 = vmatprep.subr.mxu0 0.0
        %v2952 = vand.u32 %v1679, 4294901760
        %2953 = vmatpush1.msra.mxu0 %v2952
        %2954 = vmatprep.subr.mxu0 0.0
        %2955 = vmatpush2.msra.mxu0 0.0
        %2956 = vmatprep.subr.mxu0 0.0
        %2957 = vmatpush2.msra.mxu0 0.0
        %2958 = vmatprep.subr.mxu0 0.0
        %2959 = vmatpush2.msra.mxu0 0.0
        %2960 = vmatprep.subr.mxu0 0.0
        %2961 = vmatpush2.msra.mxu0 0.0
        %2962 = vmatprep.subr.mxu0 0.0
        %2963 = vmatpush2.msra.mxu0 0.0
        %2964 = vmatprep.subr.mxu0 0.0
        %2965 = vmatpush2.msra.mxu0 0.0
        %2966 = vmatprep.subr.mxu0 0.0
        %2967 = vmatpush2.msra.mxu0 0.0
        %2968 = vmatprep.subr.mxu0 0.0
        %2969 = vmatpush2.msra.mxu0 0.0
        %2970 = vmatprep.subr.mxu0 0.0
        %2971 = vmatpush2.msra.mxu0 0.0
        %2972 = vmatprep.subr.mxu0 0.0
        %2973 = vmatpush2.msra.mxu0 0.0
        %2974 = vmatprep.subr.mxu0 0.0
        %2975 = vmatpush2.msra.mxu0 0.0
        %2976 = vmatprep.subr.mxu0 0.0
        %2977 = vmatpush2.msra.mxu0 0.0
        %2978 = vmatprep.subr.mxu0 0.0
        %2979 = vmatpush2.msra.mxu0 0.0
        %2980 = vmatprep.subr.mxu0 0.0
        %2981 = vmatpush2.msra.mxu0 0.0
        %2982 = vmatprep.subr.mxu0 0.0
        %2983 = vmatpush2.msra.mxu0 0.0
        %2984 = vmatprep.subr.mxu0 0.0
        %2985 = vmatpush2.msra.mxu0 0.0
        %2986 = vmatprep.mubr.f32.mxu0 0.0
        %v2987 = vand.u32 %v1676, 4294901760
        %2988 = vmatmul.mubr.f32.gmra.mxu0 %v2987
        %v2989 = vpop.f32.mrf.mxu0
        %v2990 = vadd.f32 %v2903, %v2989
        %v2991 = vpop.f32.mrf.mxu0
        %2992 = vdwg.mxu0
        %v2993 = vld [vmem:[%s4] sm:$0x1]
        %v2995 = vlaneseq
        %v2996 = vshrl.u32 %v2995, 7
        %v2997 = vsub.s32 0, %v2996
        %v2998 = vrot.slane %v2993, %v2997
        %v3000 = vadd.f32 %v2990, %v2998
        %v3001 = vtanh.pop %v3000
        %3002 = vst [vmem:[%s358] sm:$0xff] %v3001
        %s3003 = sand.u32 %s170, 1
        %s3004 = scalar_lea.sflag [#allocation4], %s3003
        %s3005 = sand.u32 %s170, 1
        %s3006 = smul.addr %s3005, 8
        %s3007 = scalar_lea.vmem [#allocation10], %s3006
        %s3008 = sand.u32 %s198, 1
        %s3009 = scalar_lea.sflag [#allocation12], %s3008
        %s3010 = sand.u32 %s198, 1
        %s3011 = smul.addr %s3010, 8
        %s3012 = scalar_lea.vmem [#allocation11], %s3011
        // Predicated region
        $region57: #{tpu_custom_call.1} parent=39 // pred_check
          %p3013 = pneg %p180
        $region58: #{tpu_custom_call.1} parent=39 // pred_check_branch
          %3015 = sbr.rel (%p3013) target = $region60
        $region59: #{tpu_custom_call.1} parent=39 // pred_region
          %s3017 = ssub.s32 128, 128
          %3018 = vsyncadd %s3004, %s3017
          %s3019 = sadd.s32 %s36, %s35
          %s3020 = smul.addr %s3019, 128
          %s3021 = scalar_lea.hbm %s5, %s3020
          %s3023 = sshll.u32 %s3007, 4
          %s3024 = int_to_ptr.vmem [resolvable:$true] %s3023
          %3026 = dma.vmem_to_hbm [thread:$0]  %s3024, 128, %s3021, %s3004
        $region60: #{tpu_custom_call.1} parent=39 // pred_fallthru
          _
        // Predicated region
        $region61: #{tpu_custom_call.1} parent=39 // pred_check
          %p3027 = pneg %p208
        $region62: #{tpu_custom_call.1} parent=39 // pred_check_branch
          %3029 = sbr.rel (%p3027) target = $region64
        $region63: #{tpu_custom_call.1} parent=39 // pred_region
          %s3031 = ssub.s32 128, 128
          %3032 = vsyncadd %s3009, %s3031
          %s3033 = sadd.s32 %s36, %s35
          %s3034 = smul.addr %s3033, 128
          %s3035 = scalar_lea.hbm %s6, %s3034
          %s3037 = sshll.u32 %s3012, 4
          %s3038 = int_to_ptr.vmem [resolvable:$true] %s3037
          %3040 = dma.vmem_to_hbm [thread:$0]  %s3038, 128, %s3035, %s3009
        $region64: #{tpu_custom_call.1} parent=39 // pred_fallthru
          _
      $region40: #{tpu_custom_call.1} parent=5 // pred_fallthru
        _
      %p3041 = scmp.le.s32.totalorder 2, %s26
      // Predicated region
      $region65: #{tpu_custom_call.1} parent=5 // pred_check
        %p3042 = pneg %p3041
      $region66: #{tpu_custom_call.1} parent=5 // pred_check_branch
        %3044 = sbr.rel (%p3042) target = $region68
      $region67: #{tpu_custom_call.1} parent=5 // pred_region
        %s3045 = ssub.s32 %s26, 2
        // Predicated region
        $region69: #{tpu_custom_call.1} parent=67 // pred_check
          %p3046 = pneg %p186
        $region70: #{tpu_custom_call.1} parent=67 // pred_check_branch
          %3048 = sbr.rel (%p3046) target = $region72
        $region71: #{tpu_custom_call.1} parent=67 // pred_region
          %s3049 = sand.u32 %s171, 1
          %s3050 = scalar_lea.sflag [#allocation4], %s3049
          %s3051 = sand.u32 %s171, 1
          %s3052 = smul.addr %s3051, 8
          %s3053 = scalar_lea.vmem [#allocation10], %s3052
          %3054 = dma.done %s3050, 128
        $region72: #{tpu_custom_call.1} parent=67 // pred_fallthru
          _
        // Predicated region
        $region73: #{tpu_custom_call.1} parent=67 // pred_check
          %p3055 = pneg %p214
        $region74: #{tpu_custom_call.1} parent=67 // pred_check_branch
          %3057 = sbr.rel (%p3055) target = $region76
        $region75: #{tpu_custom_call.1} parent=67 // pred_region
          %s3058 = sand.u32 %s199, 1
          %s3059 = scalar_lea.sflag [#allocation12], %s3058
          %s3060 = sand.u32 %s199, 1
          %s3061 = smul.addr %s3060, 8
          %s3062 = scalar_lea.vmem [#allocation11], %s3061
          %3063 = dma.done %s3059, 128
        $region76: #{tpu_custom_call.1} parent=67 // pred_fallthru
          _
      $region68: #{tpu_custom_call.1} parent=5 // pred_fallthru
        _
    $region6: #{tpu_custom_call.1} parent=1 // loop_footer
      %s30 = sadd.s32 1, %s26
    $region7: #{tpu_custom_call.1} parent=1 // loop_footer_branch
      %25 = sbr.rel target = $region3
    $region8: #{tpu_custom_call.1} parent=1 // loop_exit
      _
    %3064 = vsyncpa [#allocation3], 1
    %s3065 = scalar_lea.sflag [#allocation3], 1
    %3066 = vsyncpa %s3065, 1
    %3067 = vsyncpa [#allocation6], 1
    %s3068 = scalar_lea.sflag [#allocation6], 1
    %3069 = vsyncpa %s3068, 1
    %3070 = vsyncpa [#allocation9], 1
    %3071 = vsyncpa [#allocation4], 1
    %s3072 = scalar_lea.sflag [#allocation4], 1
    %3073 = vsyncpa %s3072, 1
    %3074 = vsyncpa [#allocation12], 1
    %s3075 = scalar_lea.sflag [#allocation12], 1
    %3076 = vsyncpa %s3075, 1

</llo_original>
